<compile_context>
chip_gen: v7x
topology: tpu7x:2x2x1
jax: 0.10.0
libtpu: 0.0.40
codegen_flags: <defaults>
</compile_context>

<pallas_src>
import jax
import jax.numpy as jnp
from jax.experimental import pallas as pl
from jax.experimental.pallas import tpu as pltpu

# Original module:
#   encoder: 784 -> 512 -> 256 -> 128 -> 64 -> 4    (ReLU between, none after 4)
#   decoder: 4 -> 64 -> 128 -> 256 -> 512 -> 784    (ReLU between, Sigmoid at end)
LAYER_DIMS = [
    (784, 512), (512, 256), (256, 128), (128, 64), (64, 4),   # encoder
    (4, 64), (64, 128), (128, 256), (256, 512), (512, 784),   # decoder
]
N_LAYERS = len(LAYER_DIMS)

F_IN = 784
F_PAD = 896           # 7 * 128 -> lane-dense first/last feature dim
TILE_B_MAX = 512      # amortizes per-step overhead + MXU drain
TILE_B_MIN = 16       # bf16 sublane packing (16, 128)

# After fusing the 64->4->4->64 bottleneck into a single 64->64 layer.
FUSED_LAYER_DIMS = [
    (784, 512), (512, 256), (256, 128), (128, 64), (64, 64),
    (64, 128), (128, 256), (256, 512), (512, 784),
]
N_FUSED = len(FUSED_LAYER_DIMS)
PADDED_FUSED_DIMS = [
    (F_PAD, 512), (512, 256), (256, 128), (128, 64), (64, 64),
    (64, 128), (128, 256), (256, 512), (512, F_PAD),
]


def _round_up(n, m):
    return ((n + m - 1) // m) * m


def autoencoder_kernel(x_ref, *refs):
    """Forward pass for one (tile_b, F_PAD) bf16 batch tile.

    refs = (w0, b0, ..., w8, b8, out_ref).  All parameters (~2.5 MB bf16) stay
    VMEM-resident across grid steps; the whole 9-layer (fused) chain of matmuls,
    bias adds, ReLUs and the final sigmoid runs inside the body.
    """
    out_ref = refs[-1]
    params = refs[:-1]

    h = x_ref[...]                                    # (tile_b, F_PAD) bf16
    # Unrolled Python loop: each bias broadcast happens exactly once per layer.
    for i in range(N_FUSED):
        w = params[2 * i][...]                        # bf16 (in, out)
        b = params[2 * i + 1][...]                    # f32  (1, out)
        y = jnp.dot(h, w, preferred_element_type=jnp.float32) + b
        if i < N_FUSED - 1:
            h = jnp.maximum(y, 0.0).astype(jnp.bfloat16)   # ReLU, bf16 for next dot
        else:
            h = jax.nn.sigmoid(y)                          # final Sigmoid (f32, EUP)
    out_ref[...] = h.astype(out_ref.dtype)            # bf16 lane-dense store


def init_params(key):
    """Deterministic PyTorch-style init: U(-1/sqrt(fan_in), 1/sqrt(fan_in))."""
    params = []
    for (fan_in, fan_out) in LAYER_DIMS:
        key, kw, kb = jax.random.split(key, 3)
        bound = 1.0 / jnp.sqrt(fan_in)
        # stored as (in, out), i.e. transpose of PyTorch's (out, in)
        w = jax.random.uniform(kw, (fan_in, fan_out), jnp.float32, -bound, bound)
        b = jax.random.uniform(kb, (1, fan_out), jnp.float32, -bound, bound)
        params.append((w, b))
    return params


def fuse_bottleneck(params):
    """Fuse layers 4 (64->4) and 5 (4->64) — no activation between them — into a
    single 64->64 layer, composed in f32."""
    w4, b4 = params[4]
    w5, b5 = params[5]
    w45 = jnp.dot(w4, w5, preferred_element_type=jnp.float32)   # (64, 64)
    b45 = jnp.dot(b4, w5, preferred_element_type=jnp.float32) + b5
    return params[:4] + [(w45, b45)] + params[6:]


def prepare_params(fused_params):
    """Zero-pad the 784 feature dim to F_PAD (first/last layer) and cast weights
    to bf16 (biases stay f32 for the f32 elementwise path)."""
    flat = []
    for i, (w, b) in enumerate(fused_params):
        if i == 0:
            w = jnp.pad(w, ((0, F_PAD - F_IN), (0, 0)))
        if i == N_FUSED - 1:
            w = jnp.pad(w, ((0, 0), (0, F_PAD - F_IN)))
            b = jnp.pad(b, ((0, 0), (0, F_PAD - F_IN)))
        flat.append(w.astype(jnp.bfloat16))
        flat.append(b.astype(jnp.float32))
    return tuple(flat)


@jax.jit
def autoencoder_forward(x, flat_params):
    batch = x.shape[0]

    # Batch tiling: multiple of 16 (bf16 sublane packing), capped at TILE_B_MAX,
    # and always >= 2 grid steps so the "parallel" axis shards across v7x's 2 TCs.
    per_core = _round_up(max(1, (batch + 1) // 2), TILE_B_MIN)
    tile_b = max(TILE_B_MIN, min(TILE_B_MAX, per_core))
    padded_b = _round_up(batch, tile_b)
    if padded_b // tile_b < 2:
        padded_b = 2 * tile_b

    # Zero-pad batch to a tile multiple and features 784 -> 896; stream as bf16.
    xp = jnp.zeros((padded_b, F_PAD), jnp.bfloat16)
    xp = xp.at[:batch, :F_IN].set(x.astype(jnp.bfloat16))

    grid = (padded_b // tile_b,)

    x_spec = pl.BlockSpec((tile_b, F_PAD), lambda i: (i, 0))
    # Constant block index => parameters stay resident in VMEM across grid steps.
    param_specs = [pl.BlockSpec(p.shape, lambda i: (0, 0)) for p in flat_params]
    out_spec = pl.BlockSpec((tile_b, F_PAD), lambda i: (i, 0))

    flops = 2 * padded_b * sum(fi * fo for fi, fo in PADDED_FUSED_DIMS)
    weight_bytes = sum(fi * fo * 2 + fo * 4 for fi, fo in PADDED_FUSED_DIMS)
    bytes_accessed = weight_bytes + 2 * padded_b * F_PAD * 2     # bf16 in + out
    cost = pl.CostEstimate(
        flops=flops,
        transcendentals=padded_b * F_PAD,          # final sigmoid
        bytes_accessed=bytes_accessed,
    )

    out = pl.pallas_call(
        autoencoder_kernel,
        out_shape=jax.ShapeDtypeStruct((padded_b, F_PAD), jnp.bfloat16),
        grid=grid,
        in_specs=[x_spec] + param_specs,
        out_specs=out_spec,
        compiler_params=pltpu.CompilerParams(
            dimension_semantics=("parallel",),     # megacore sharding on v7x
            vmem_limit_bytes=32 << 20,             # actual use ~10 MiB; headroom on v7x
        ),
        cost_estimate=cost,
    )(xp, *flat_params)

    return out[:batch, :F_IN].astype(jnp.float32)


def reference_forward_f32(x, params):
    """Pure f32, unfused reference — PyTorch-equivalent semantics."""
    h = x.astype(jnp.float32)
    for i, (w, b) in enumerate(params):
        h = h @ w + b
        if i < 4 or (5 <= i <= 8):
            h = jnp.maximum(h, 0.0)
        elif i == N_LAYERS - 1:
            h = jax.nn.sigmoid(h)
    return h


def reference_forward_recipe(x, fused_params):
    """Pure-JAX reference mirroring the kernel's numeric recipe (fused bottleneck,
    bf16 weights/activations at the MXU, f32 accumulation, bf16 output)."""
    h = x.astype(jnp.bfloat16)
    for i, (w, b) in enumerate(fused_params):
        y = jnp.dot(h, w.astype(jnp.bfloat16),
                    preferred_element_type=jnp.float32) + b.astype(jnp.float32)
        if i < N_FUSED - 1:
            h = jnp.maximum(y, 0.0).astype(jnp.bfloat16)
        else:
            h = jax.nn.sigmoid(y).astype(jnp.bfloat16).astype(jnp.float32)
    return h


if __name__ == "__main__":
    key = jax.random.PRNGKey(0)
    key, kx = jax.random.split(key)

    # small batch of flattened 28x28 images
    x = jax.random.uniform(kx, (2, 28 * 28), jnp.float32)

    params = init_params(key)
    fused_params = fuse_bottleneck(params)
    flat_params = prepare_params(fused_params)

    out = autoencoder_forward(x, flat_params)
    out = jax.block_until_ready(out)
    assert out.shape == (2, 784)

    # Tight check against a reference that mirrors the kernel's bf16 recipe.
    ref_recipe = reference_forward_recipe(x, fused_params)
    err_recipe = float(jnp.max(jnp.abs(out - ref_recipe)))
    assert jnp.allclose(out, ref_recipe, atol=2e-3, rtol=2e-3), err_recipe

    # Looser check against the f32, unfused (PyTorch-equivalent) reference.
    ref_f32 = reference_forward_f32(x, params)
    err_f32 = float(jnp.max(jnp.abs(out - ref_f32)))
    assert jnp.allclose(out, ref_f32, atol=2.5e-2, rtol=2.5e-2), err_f32

    print("KERNEL_OK")
</pallas_src>

<mosaic_0001>
module attributes {stable_mosaic.version = 11 : i64} {
  func.func @autoencoder_kernel(%arg0: i32, %arg1: memref<16x896xbf16, #tpu.memory_space<vmem>>, %arg2: memref<896x512xbf16, #tpu.memory_space<vmem>>, %arg3: memref<1x512xf32, #tpu.memory_space<vmem>>, %arg4: memref<512x256xbf16, #tpu.memory_space<vmem>>, %arg5: memref<1x256xf32, #tpu.memory_space<vmem>>, %arg6: memref<256x128xbf16, #tpu.memory_space<vmem>>, %arg7: memref<1x128xf32, #tpu.memory_space<vmem>>, %arg8: memref<128x64xbf16, #tpu.memory_space<vmem>>, %arg9: memref<1x64xf32, #tpu.memory_space<vmem>>, %arg10: memref<64x64xbf16, #tpu.memory_space<vmem>>, %arg11: memref<1x64xf32, #tpu.memory_space<vmem>>, %arg12: memref<64x128xbf16, #tpu.memory_space<vmem>>, %arg13: memref<1x128xf32, #tpu.memory_space<vmem>>, %arg14: memref<128x256xbf16, #tpu.memory_space<vmem>>, %arg15: memref<1x256xf32, #tpu.memory_space<vmem>>, %arg16: memref<256x512xbf16, #tpu.memory_space<vmem>>, %arg17: memref<1x512xf32, #tpu.memory_space<vmem>>, %arg18: memref<512x896xbf16, #tpu.memory_space<vmem>>, %arg19: memref<1x896xf32, #tpu.memory_space<vmem>>, %arg20: memref<16x896xbf16, #tpu.memory_space<vmem>>) attributes {dimension_semantics = [#tpu.dimension_semantics<parallel>], iteration_bounds = array<i64: 2>, scalar_prefetch = 0 : i64, scratch_operands = 0 : i64, tpu.core_type = #tpu.core_type<tc>, window_params = [{transform_indices = @transform_0, window_bounds = array<i64: 16, 896>}, {pipeline_mode = #tpu.pipeline_mode<synchronous>, transform_indices = @transform_1, window_bounds = array<i64: 896, 512>}, {pipeline_mode = #tpu.pipeline_mode<synchronous>, transform_indices = @transform_2, window_bounds = array<i64: 1, 512>}, {pipeline_mode = #tpu.pipeline_mode<synchronous>, transform_indices = @transform_3, window_bounds = array<i64: 512, 256>}, {pipeline_mode = #tpu.pipeline_mode<synchronous>, transform_indices = @transform_4, window_bounds = array<i64: 1, 256>}, {pipeline_mode = #tpu.pipeline_mode<synchronous>, transform_indices = @transform_5, window_bounds = array<i64: 256, 128>}, {pipeline_mode = #tpu.pipeline_mode<synchronous>, transform_indices = @transform_6, window_bounds = array<i64: 1, 128>}, {pipeline_mode = #tpu.pipeline_mode<synchronous>, transform_indices = @transform_7, window_bounds = array<i64: 128, 64>}, {pipeline_mode = #tpu.pipeline_mode<synchronous>, transform_indices = @transform_8, window_bounds = array<i64: 1, 64>}, {pipeline_mode = #tpu.pipeline_mode<synchronous>, transform_indices = @transform_9, window_bounds = array<i64: 64, 64>}, {pipeline_mode = #tpu.pipeline_mode<synchronous>, transform_indices = @transform_10, window_bounds = array<i64: 1, 64>}, {pipeline_mode = #tpu.pipeline_mode<synchronous>, transform_indices = @transform_11, window_bounds = array<i64: 64, 128>}, {pipeline_mode = #tpu.pipeline_mode<synchronous>, transform_indices = @transform_12, window_bounds = array<i64: 1, 128>}, {pipeline_mode = #tpu.pipeline_mode<synchronous>, transform_indices = @transform_13, window_bounds = array<i64: 128, 256>}, {pipeline_mode = #tpu.pipeline_mode<synchronous>, transform_indices = @transform_14, window_bounds = array<i64: 1, 256>}, {pipeline_mode = #tpu.pipeline_mode<synchronous>, transform_indices = @transform_15, window_bounds = array<i64: 256, 512>}, {pipeline_mode = #tpu.pipeline_mode<synchronous>, transform_indices = @transform_16, window_bounds = array<i64: 1, 512>}, {pipeline_mode = #tpu.pipeline_mode<synchronous>, transform_indices = @transform_17, window_bounds = array<i64: 512, 896>}, {pipeline_mode = #tpu.pipeline_mode<synchronous>, transform_indices = @transform_18, window_bounds = array<i64: 1, 896>}, {transform_indices = @transform_19, window_bounds = array<i64: 16, 896>}]} {
    %c0 = arith.constant 0 : index
    %c0_0 = arith.constant 0 : index
    %0 = vector.load %arg1[%c0, %c0_0] : memref<16x896xbf16, #tpu.memory_space<vmem>>, vector<16x896xbf16>
    %c0_1 = arith.constant 0 : index
    %c0_2 = arith.constant 0 : index
    %1 = vector.load %arg2[%c0_1, %c0_2] : memref<896x512xbf16, #tpu.memory_space<vmem>>, vector<896x512xbf16>
    %c0_3 = arith.constant 0 : index
    %c0_4 = arith.constant 0 : index
    %2 = vector.load %arg3[%c0_3, %c0_4] : memref<1x512xf32, #tpu.memory_space<vmem>>, vector<1x512xf32>
    %cst = arith.constant dense<0.000000e+00> : vector<16x512xf32>
    %3 = tpu.matmul %0, %1, %cst {dimension_numbers = #tpu.dot_dimension_numbers<[1], [0], [0], [1], [0, 0, 1, 1], [], []>} : vector<16x896xbf16>, vector<896x512xbf16>, vector<16x512xf32> -> vector<16x512xf32>
    %4 = vector.broadcast %2 : vector<1x512xf32> to vector<16x512xf32>
    %5 = arith.addf %3, %4 : vector<16x512xf32>
    %cst_5 = arith.constant 0.000000e+00 : f32
    %6 = vector.broadcast %cst_5 : f32 to vector<16x512xf32>
    %7 = arith.maximumf %5, %6 : vector<16x512xf32>
    %8 = arith.truncf %7 : vector<16x512xf32> to vector<16x512xbf16>
    %c0_6 = arith.constant 0 : index
    %c0_7 = arith.constant 0 : index
    %9 = vector.load %arg4[%c0_6, %c0_7] : memref<512x256xbf16, #tpu.memory_space<vmem>>, vector<512x256xbf16>
    %c0_8 = arith.constant 0 : index
    %c0_9 = arith.constant 0 : index
    %10 = vector.load %arg5[%c0_8, %c0_9] : memref<1x256xf32, #tpu.memory_space<vmem>>, vector<1x256xf32>
    %cst_10 = arith.constant dense<0.000000e+00> : vector<16x256xf32>
    %11 = tpu.matmul %8, %9, %cst_10 {dimension_numbers = #tpu.dot_dimension_numbers<[1], [0], [0], [1], [0, 0, 1, 1], [], []>} : vector<16x512xbf16>, vector<512x256xbf16>, vector<16x256xf32> -> vector<16x256xf32>
    %12 = vector.broadcast %10 : vector<1x256xf32> to vector<16x256xf32>
    %13 = arith.addf %11, %12 : vector<16x256xf32>
    %cst_11 = arith.constant 0.000000e+00 : f32
    %14 = vector.broadcast %cst_11 : f32 to vector<16x256xf32>
    %15 = arith.maximumf %13, %14 : vector<16x256xf32>
    %16 = arith.truncf %15 : vector<16x256xf32> to vector<16x256xbf16>
    %c0_12 = arith.constant 0 : index
    %c0_13 = arith.constant 0 : index
    %17 = vector.load %arg6[%c0_12, %c0_13] : memref<256x128xbf16, #tpu.memory_space<vmem>>, vector<256x128xbf16>
    %c0_14 = arith.constant 0 : index
    %c0_15 = arith.constant 0 : index
    %18 = vector.load %arg7[%c0_14, %c0_15] : memref<1x128xf32, #tpu.memory_space<vmem>>, vector<1x128xf32>
    %cst_16 = arith.constant dense<0.000000e+00> : vector<16x128xf32>
    %19 = tpu.matmul %16, %17, %cst_16 {dimension_numbers = #tpu.dot_dimension_numbers<[1], [0], [0], [1], [0, 0, 1, 1], [], []>} : vector<16x256xbf16>, vector<256x128xbf16>, vector<16x128xf32> -> vector<16x128xf32>
    %20 = vector.broadcast %18 : vector<1x128xf32> to vector<16x128xf32>
    %21 = arith.addf %19, %20 : vector<16x128xf32>
    %cst_17 = arith.constant 0.000000e+00 : f32
    %22 = vector.broadcast %cst_17 : f32 to vector<16x128xf32>
    %23 = arith.maximumf %21, %22 : vector<16x128xf32>
    %24 = arith.truncf %23 : vector<16x128xf32> to vector<16x128xbf16>
    %c0_18 = arith.constant 0 : index
    %c0_19 = arith.constant 0 : index
    %25 = vector.load %arg8[%c0_18, %c0_19] : memref<128x64xbf16, #tpu.memory_space<vmem>>, vector<128x64xbf16>
    %c0_20 = arith.constant 0 : index
    %c0_21 = arith.constant 0 : index
    %26 = vector.load %arg9[%c0_20, %c0_21] : memref<1x64xf32, #tpu.memory_space<vmem>>, vector<1x64xf32>
    %cst_22 = arith.constant dense<0.000000e+00> : vector<16x64xf32>
    %27 = tpu.matmul %24, %25, %cst_22 {dimension_numbers = #tpu.dot_dimension_numbers<[1], [0], [0], [1], [0, 0, 1, 1], [], []>} : vector<16x128xbf16>, vector<128x64xbf16>, vector<16x64xf32> -> vector<16x64xf32>
    %28 = vector.broadcast %26 : vector<1x64xf32> to vector<16x64xf32>
    %29 = arith.addf %27, %28 : vector<16x64xf32>
    %cst_23 = arith.constant 0.000000e+00 : f32
    %30 = vector.broadcast %cst_23 : f32 to vector<16x64xf32>
    %31 = arith.maximumf %29, %30 : vector<16x64xf32>
    %32 = arith.truncf %31 : vector<16x64xf32> to vector<16x64xbf16>
    %c0_24 = arith.constant 0 : index
    %c0_25 = arith.constant 0 : index
    %33 = vector.load %arg10[%c0_24, %c0_25] : memref<64x64xbf16, #tpu.memory_space<vmem>>, vector<64x64xbf16>
    %c0_26 = arith.constant 0 : index
    %c0_27 = arith.constant 0 : index
    %34 = vector.load %arg11[%c0_26, %c0_27] : memref<1x64xf32, #tpu.memory_space<vmem>>, vector<1x64xf32>
    %cst_28 = arith.constant dense<0.000000e+00> : vector<16x64xf32>
    %35 = tpu.matmul %32, %33, %cst_28 {dimension_numbers = #tpu.dot_dimension_numbers<[1], [0], [0], [1], [0, 0, 1, 1], [], []>} : vector<16x64xbf16>, vector<64x64xbf16>, vector<16x64xf32> -> vector<16x64xf32>
    %36 = vector.broadcast %34 : vector<1x64xf32> to vector<16x64xf32>
    %37 = arith.addf %35, %36 : vector<16x64xf32>
    %cst_29 = arith.constant 0.000000e+00 : f32
    %38 = vector.broadcast %cst_29 : f32 to vector<16x64xf32>
    %39 = arith.maximumf %37, %38 : vector<16x64xf32>
    %40 = arith.truncf %39 : vector<16x64xf32> to vector<16x64xbf16>
    %c0_30 = arith.constant 0 : index
    %c0_31 = arith.constant 0 : index
    %41 = vector.load %arg12[%c0_30, %c0_31] : memref<64x128xbf16, #tpu.memory_space<vmem>>, vector<64x128xbf16>
    %c0_32 = arith.constant 0 : index
    %c0_33 = arith.constant 0 : index
    %42 = vector.load %arg13[%c0_32, %c0_33] : memref<1x128xf32, #tpu.memory_space<vmem>>, vector<1x128xf32>
    %cst_34 = arith.constant dense<0.000000e+00> : vector<16x128xf32>
    %43 = tpu.matmul %40, %41, %cst_34 {dimension_numbers = #tpu.dot_dimension_numbers<[1], [0], [0], [1], [0, 0, 1, 1], [], []>} : vector<16x64xbf16>, vector<64x128xbf16>, vector<16x128xf32> -> vector<16x128xf32>
    %44 = vector.broadcast %42 : vector<1x128xf32> to vector<16x128xf32>
    %45 = arith.addf %43, %44 : vector<16x128xf32>
    %cst_35 = arith.constant 0.000000e+00 : f32
    %46 = vector.broadcast %cst_35 : f32 to vector<16x128xf32>
    %47 = arith.maximumf %45, %46 : vector<16x128xf32>
    %48 = arith.truncf %47 : vector<16x128xf32> to vector<16x128xbf16>
    %c0_36 = arith.constant 0 : index
    %c0_37 = arith.constant 0 : index
    %49 = vector.load %arg14[%c0_36, %c0_37] : memref<128x256xbf16, #tpu.memory_space<vmem>>, vector<128x256xbf16>
    %c0_38 = arith.constant 0 : index
    %c0_39 = arith.constant 0 : index
    %50 = vector.load %arg15[%c0_38, %c0_39] : memref<1x256xf32, #tpu.memory_space<vmem>>, vector<1x256xf32>
    %cst_40 = arith.constant dense<0.000000e+00> : vector<16x256xf32>
    %51 = tpu.matmul %48, %49, %cst_40 {dimension_numbers = #tpu.dot_dimension_numbers<[1], [0], [0], [1], [0, 0, 1, 1], [], []>} : vector<16x128xbf16>, vector<128x256xbf16>, vector<16x256xf32> -> vector<16x256xf32>
    %52 = vector.broadcast %50 : vector<1x256xf32> to vector<16x256xf32>
    %53 = arith.addf %51, %52 : vector<16x256xf32>
    %cst_41 = arith.constant 0.000000e+00 : f32
    %54 = vector.broadcast %cst_41 : f32 to vector<16x256xf32>
    %55 = arith.maximumf %53, %54 : vector<16x256xf32>
    %56 = arith.truncf %55 : vector<16x256xf32> to vector<16x256xbf16>
    %c0_42 = arith.constant 0 : index
    %c0_43 = arith.constant 0 : index
    %57 = vector.load %arg16[%c0_42, %c0_43] : memref<256x512xbf16, #tpu.memory_space<vmem>>, vector<256x512xbf16>
    %c0_44 = arith.constant 0 : index
    %c0_45 = arith.constant 0 : index
    %58 = vector.load %arg17[%c0_44, %c0_45] : memref<1x512xf32, #tpu.memory_space<vmem>>, vector<1x512xf32>
    %cst_46 = arith.constant dense<0.000000e+00> : vector<16x512xf32>
    %59 = tpu.matmul %56, %57, %cst_46 {dimension_numbers = #tpu.dot_dimension_numbers<[1], [0], [0], [1], [0, 0, 1, 1], [], []>} : vector<16x256xbf16>, vector<256x512xbf16>, vector<16x512xf32> -> vector<16x512xf32>
    %60 = vector.broadcast %58 : vector<1x512xf32> to vector<16x512xf32>
    %61 = arith.addf %59, %60 : vector<16x512xf32>
    %cst_47 = arith.constant 0.000000e+00 : f32
    %62 = vector.broadcast %cst_47 : f32 to vector<16x512xf32>
    %63 = arith.maximumf %61, %62 : vector<16x512xf32>
    %64 = arith.truncf %63 : vector<16x512xf32> to vector<16x512xbf16>
    %c0_48 = arith.constant 0 : index
    %c0_49 = arith.constant 0 : index
    %65 = vector.load %arg18[%c0_48, %c0_49] : memref<512x896xbf16, #tpu.memory_space<vmem>>, vector<512x896xbf16>
    %c0_50 = arith.constant 0 : index
    %c0_51 = arith.constant 0 : index
    %66 = vector.load %arg19[%c0_50, %c0_51] : memref<1x896xf32, #tpu.memory_space<vmem>>, vector<1x896xf32>
    %cst_52 = arith.constant dense<0.000000e+00> : vector<16x896xf32>
    %67 = tpu.matmul %64, %65, %cst_52 {dimension_numbers = #tpu.dot_dimension_numbers<[1], [0], [0], [1], [0, 0, 1, 1], [], []>} : vector<16x512xbf16>, vector<512x896xbf16>, vector<16x896xf32> -> vector<16x896xf32>
    %68 = vector.broadcast %66 : vector<1x896xf32> to vector<16x896xf32>
    %69 = arith.addf %67, %68 : vector<16x896xf32>
    %70 = arith.negf %69 : vector<16x896xf32>
    %71 = math.exp %70 : vector<16x896xf32>
    %cst_53 = arith.constant 1.000000e+00 : f32
    %72 = vector.broadcast %cst_53 : f32 to vector<16x896xf32>
    %73 = arith.addf %72, %71 : vector<16x896xf32>
    %74 = arith.divf %72, %73 : vector<16x896xf32>
    %75 = arith.truncf %74 : vector<16x896xf32> to vector<16x896xbf16>
    %c0_54 = arith.constant 0 : index
    %c0_55 = arith.constant 0 : index
    %76 = vector.load %arg20[%c0_54, %c0_55] : memref<16x896xbf16, #tpu.memory_space<vmem>>, vector<16x896xbf16>
    tpu.vector_store %arg20[%c0_54, %c0_55], %75 {strides = array<i32>} : memref<16x896xbf16, #tpu.memory_space<vmem>>, vector<16x896xbf16>,
    return
  }
  func.func @transform_0(%arg0: i32) -> (i32, i32) {
    %c0_i32 = arith.constant 0 : i32
    %c0_i32_0 = arith.constant 0 : i32
    return %arg0, %c0_i32 : i32, i32
  }
  func.func @transform_1(%arg0: i32) -> (i32, i32) {
    %c0_i32 = arith.constant 0 : i32
    %c0_i32_0 = arith.constant 0 : i32
    %c0_i32_1 = arith.constant 0 : i32
    return %c0_i32, %c0_i32_0 : i32, i32
  }
  func.func @transform_2(%arg0: i32) -> (i32, i32) {
    %c0_i32 = arith.constant 0 : i32
    %c0_i32_0 = arith.constant 0 : i32
    %c0_i32_1 = arith.constant 0 : i32
    return %c0_i32, %c0_i32_0 : i32, i32
  }
  func.func @transform_3(%arg0: i32) -> (i32, i32) {
    %c0_i32 = arith.constant 0 : i32
    %c0_i32_0 = arith.constant 0 : i32
    %c0_i32_1 = arith.constant 0 : i32
    return %c0_i32, %c0_i32_0 : i32, i32
  }
  func.func @transform_4(%arg0: i32) -> (i32, i32) {
    %c0_i32 = arith.constant 0 : i32
    %c0_i32_0 = arith.constant 0 : i32
    %c0_i32_1 = arith.constant 0 : i32
    return %c0_i32, %c0_i32_0 : i32, i32
  }
  func.func @transform_5(%arg0: i32) -> (i32, i32) {
    %c0_i32 = arith.constant 0 : i32
    %c0_i32_0 = arith.constant 0 : i32
    %c0_i32_1 = arith.constant 0 : i32
    return %c0_i32, %c0_i32_0 : i32, i32
  }
  func.func @transform_6(%arg0: i32) -> (i32, i32) {
    %c0_i32 = arith.constant 0 : i32
    %c0_i32_0 = arith.constant 0 : i32
    %c0_i32_1 = arith.constant 0 : i32
    return %c0_i32, %c0_i32_0 : i32, i32
  }
  func.func @transform_7(%arg0: i32) -> (i32, i32) {
    %c0_i32 = arith.constant 0 : i32
    %c0_i32_0 = arith.constant 0 : i32
    %c0_i32_1 = arith.constant 0 : i32
    return %c0_i32, %c0_i32_0 : i32, i32
  }
  func.func @transform_8(%arg0: i32) -> (i32, i32) {
    %c0_i32 = arith.constant 0 : i32
    %c0_i32_0 = arith.constant 0 : i32
    %c0_i32_1 = arith.constant 0 : i32
    return %c0_i32, %c0_i32_0 : i32, i32
  }
  func.func @transform_9(%arg0: i32) -> (i32, i32) {
    %c0_i32 = arith.constant 0 : i32
    %c0_i32_0 = arith.constant 0 : i32
    %c0_i32_1 = arith.constant 0 : i32
    return %c0_i32, %c0_i32_0 : i32, i32
  }
  func.func @transform_10(%arg0: i32) -> (i32, i32) {
    %c0_i32 = arith.constant 0 : i32
    %c0_i32_0 = arith.constant 0 : i32
    %c0_i32_1 = arith.constant 0 : i32
    return %c0_i32, %c0_i32_0 : i32, i32
  }
  func.func @transform_11(%arg0: i32) -> (i32, i32) {
    %c0_i32 = arith.constant 0 : i32
    %c0_i32_0 = arith.constant 0 : i32
    %c0_i32_1 = arith.constant 0 : i32
    return %c0_i32, %c0_i32_0 : i32, i32
  }
  func.func @transform_12(%arg0: i32) -> (i32, i32) {
    %c0_i32 = arith.constant 0 : i32
    %c0_i32_0 = arith.constant 0 : i32
    %c0_i32_1 = arith.constant 0 : i32
    return %c0_i32, %c0_i32_0 : i32, i32
  }
  func.func @transform_13(%arg0: i32) -> (i32, i32) {
    %c0_i32 = arith.constant 0 : i32
    %c0_i32_0 = arith.constant 0 : i32
    %c0_i32_1 = arith.constant 0 : i32
    return %c0_i32, %c0_i32_0 : i32, i32
  }
  func.func @transform_14(%arg0: i32) -> (i32, i32) {
    %c0_i32 = arith.constant 0 : i32
    %c0_i32_0 = arith.constant 0 : i32
    %c0_i32_1 = arith.constant 0 : i32
    return %c0_i32, %c0_i32_0 : i32, i32
  }
  func.func @transform_15(%arg0: i32) -> (i32, i32) {
    %c0_i32 = arith.constant 0 : i32
    %c0_i32_0 = arith.constant 0 : i32
    %c0_i32_1 = arith.constant 0 : i32
    return %c0_i32, %c0_i32_0 : i32, i32
  }
  func.func @transform_16(%arg0: i32) -> (i32, i32) {
    %c0_i32 = arith.constant 0 : i32
    %c0_i32_0 = arith.constant 0 : i32
    %c0_i32_1 = arith.constant 0 : i32
    return %c0_i32, %c0_i32_0 : i32, i32
  }
  func.func @transform_17(%arg0: i32) -> (i32, i32) {
    %c0_i32 = arith.constant 0 : i32
    %c0_i32_0 = arith.constant 0 : i32
    %c0_i32_1 = arith.constant 0 : i32
    return %c0_i32, %c0_i32_0 : i32, i32
  }
  func.func @transform_18(%arg0: i32) -> (i32, i32) {
    %c0_i32 = arith.constant 0 : i32
    %c0_i32_0 = arith.constant 0 : i32
    %c0_i32_1 = arith.constant 0 : i32
    return %c0_i32, %c0_i32_0 : i32, i32
  }
  func.func @transform_19(%arg0: i32) -> (i32, i32) {
    %c0_i32 = arith.constant 0 : i32
    %c0_i32_0 = arith.constant 0 : i32
    return %arg0, %c0_i32 : i32, i32
  }
}

</mosaic_0001>

<llo_original>
// kernel: autoencoder_forward.1
$region0: #{autoencoder_forward.1}
  #allocation0 [shape = 'u32[]', space=smem, size = 0x4, offset = 0x4, fixed_abs, tag = 'smem constant byte address 0x4 - core index']
  #allocation1 [shape = 'u32[144,128]{1,0:T(1,128)}', space=vmem, size = 0x12000, scoped, tag = 'internal scratch']
  %s0 = inlined_call_operand.vmem [shape: bf16[32,896], index: 0, kind: input, shape index: {}]
  %s1 = inlined_call_operand.hbm [shape: bf16[896,512], index: 1, kind: input, shape index: {}]
  %s2 = inlined_call_operand.hbm [shape: f32[1,512], index: 2, kind: input, shape index: {}]
  %s3 = inlined_call_operand.hbm [shape: bf16[512,256], index: 3, kind: input, shape index: {}]
  %s4 = inlined_call_operand.hbm [shape: f32[1,256], index: 4, kind: input, shape index: {}]
  %s5 = inlined_call_operand.vmem [shape: bf16[256,128], index: 5, kind: input, shape index: {}]
  %s6 = inlined_call_operand.hbm [shape: f32[1,128], index: 6, kind: input, shape index: {}]
  %s7 = inlined_call_operand.vmem [shape: bf16[128,64], index: 7, kind: input, shape index: {}]
  %s8 = inlined_call_operand.hbm [shape: f32[1,64], index: 8, kind: input, shape index: {}]
  %s9 = inlined_call_operand.hbm [shape: bf16[64,64], index: 9, kind: input, shape index: {}]
  %s10 = inlined_call_operand.vmem [shape: f32[1,64], index: 10, kind: input, shape index: {}]
  %s11 = inlined_call_operand.hbm [shape: bf16[64,128], index: 11, kind: input, shape index: {}]
  %s12 = inlined_call_operand.vmem [shape: f32[1,128], index: 12, kind: input, shape index: {}]
  %s13 = inlined_call_operand.vmem [shape: bf16[128,256], index: 13, kind: input, shape index: {}]
  %s14 = inlined_call_operand.vmem [shape: f32[1,256], index: 14, kind: input, shape index: {}]
  %s15 = inlined_call_operand.hbm [shape: bf16[256,512], index: 15, kind: input, shape index: {}]
  %s16 = inlined_call_operand.vmem [shape: f32[1,512], index: 16, kind: input, shape index: {}]
  %s17 = inlined_call_operand.hbm [shape: bf16[512,896], index: 17, kind: input, shape index: {}]
  %s18 = inlined_call_operand.vmem [shape: f32[1,896], index: 18, kind: input, shape index: {}]
  %s19 = inlined_call_operand.vmem [shape: bf16[32,896], index: 19, kind: output, shape index: {}]
  %s20 = sld [smem:[#allocation0]]
  $region149: #{autoencoder_forward.1} parent=0
    _
  %s22 = ssub.s32 1, %s20
  %s23 = scalar_select 0, %s22, %s20
  $region1: #{autoencoder_forward.1} parent=0
    #allocation2 [shape = 'u8[917504]{0}', space=vmem, size = 0xe0000, scoped, tag = 'input window, operand 1, single buffered']
    #allocation3 [shape = 's32[2]{0}', space=sflag, size = 0x8, scoped, tag = 'scoped memory for autoencoder_forward.1']
    #allocation4 [shape = 'u8[2048]{0}', space=vmem, size = 0x800, scoped, tag = 'input window, operand 2, single buffered']
    #allocation5 [shape = 's32[1]{0}', space=sflag, size = 0x4, scoped, tag = 'scoped memory for autoencoder_forward.1']
    #allocation6 [shape = 'u8[262144]{0}', space=vmem, size = 0x40000, scoped, tag = 'input window, operand 3, single buffered']
    #allocation7 [shape = 'u8[1024]{0}', space=vmem, size = 0x400, scoped, tag = 'input window, operand 4, single buffered']
    #allocation8 [shape = 's32[1]{0}', space=sflag, size = 0x4, scoped, tag = 'scoped memory for autoencoder_forward.1']
    #allocation9 [shape = 'u8[512]{0}', space=vmem, size = 0x400, scoped, tag = 'input window, operand 6, single buffered']
    #allocation10 [shape = 'u8[512]{0}', space=vmem, size = 0x400, scoped, tag = 'input window, operand 8, single buffered']
    #allocation11 [shape = 's32[1]{0}', space=sflag, size = 0x4, scoped, tag = 'scoped memory for autoencoder_forward.1']
    #allocation12 [shape = 'u8[16384]{0}', space=vmem, size = 0x4000, scoped, tag = 'input window, operand 9, single buffered']
    #allocation13 [shape = 'u8[16384]{0}', space=vmem, size = 0x4000, scoped, tag = 'input window, operand 11, single buffered']
    #allocation14 [shape = 's32[1]{0}', space=sflag, size = 0x4, scoped, tag = 'scoped memory for autoencoder_forward.1']
    #allocation15 [shape = 'u8[262144]{0}', space=vmem, size = 0x40000, scoped, tag = 'input window, operand 15, single buffered']
    #allocation16 [shape = 'u8[917504]{0}', space=vmem, size = 0xe0000, scoped, tag = 'input window, operand 17, single buffered']
    #allocation17 [shape = 's32[1]{0}', space=sflag, size = 0x4, scoped, tag = 'scoped memory for autoencoder_forward.1']
    %24 = vsyncpa [#allocation3], 0
    %25 = vsyncpa [#allocation5], 0
    %26 = vsyncpa [#allocation8], 0
    %27 = vsyncpa [#allocation11], 0
    %28 = vsyncpa [#allocation14], 0
    %29 = vsyncpa [#allocation17], 0
    loop: start=0, step=1, limit=4
    $region2: #{autoencoder_forward.1} parent=1 // loop_pre_header
      _
    $region3: #{autoencoder_forward.1} parent=1 // loop_header
      %s31 = sphi 0, %s35
      %p32 = scmp.ge.s32.totalorder %s31, 4
      %s41 = sphi 0, %s43
      %s44 = sphi 0, %s41
      %s45 = sphi 0, %s44
      %s61 = sphi 0, %s45
      %s65 = sphi 0, %s65
      %s67 = sphi 0, %s65
      %s68 = sphi 0, %s67
      %s82 = sphi 0, %s68
      %s86 = sphi 0, %s86
      %s88 = sphi 0, %s86
      %s89 = sphi 0, %s88
      %s103 = sphi 0, %s89
      %s107 = sphi 0, %s107
      %s109 = sphi 0, %s107
      %s110 = sphi 0, %s109
      %s124 = sphi 0, %s110
      %s128 = sphi 0, %s128
      %s130 = sphi 0, %s128
      %s131 = sphi 0, %s130
      %s145 = sphi 0, %s131
      %s149 = sphi 0, %s149
      %s151 = sphi 0, %s149
      %s152 = sphi 0, %s151
      %s166 = sphi 0, %s152
      %s170 = sphi 0, %s170
      %s172 = sphi 0, %s170
      %s173 = sphi 0, %s172
      %s187 = sphi 0, %s173
      %s191 = sphi 0, %s191
      %s193 = sphi 0, %s191
      %s194 = sphi 0, %s193
      %s208 = sphi 0, %s194
      %s212 = sphi 0, %s212
      %s214 = sphi 0, %s212
      %s215 = sphi 0, %s214
      %s229 = sphi 0, %s215
      %s233 = sphi 0, %s233
      %s235 = sphi 0, %s233
      %s236 = sphi 0, %s235
      %s250 = sphi 0, %s236
      %s254 = sphi 0, %s254
      %s256 = sphi 0, %s254
      %s257 = sphi 0, %s256
      %s271 = sphi 0, %s257
      %s275 = sphi 0, %s275
      %s277 = sphi 0, %s275
      %s278 = sphi 0, %s277
      %s292 = sphi 0, %s278
      %s296 = sphi 0, %s296
      %s298 = sphi 0, %s296
      %s299 = sphi 0, %s298
      %s313 = sphi 0, %s299
      %s317 = sphi 0, %s317
      %s319 = sphi 0, %s317
      %s320 = sphi 0, %s319
      %s334 = sphi 0, %s320
      %s338 = sphi 0, %s338
      %s340 = sphi 0, %s338
      %s341 = sphi 0, %s340
      %s355 = sphi 0, %s341
      %s359 = sphi 0, %s359
      %s361 = sphi 0, %s359
      %s362 = sphi 0, %s361
      %s376 = sphi 0, %s362
      %s380 = sphi 0, %s380
      %s382 = sphi 0, %s380
      %s383 = sphi 0, %s382
      %s397 = sphi 0, %s383
      %s401 = sphi 0, %s401
      %s403 = sphi 0, %s401
      %s404 = sphi 0, %s403
      %s418 = sphi 0, %s404
      %s422 = sphi 0, %s422
      %s424 = sphi 0, %s422
      %s425 = sphi 0, %s424
      %s439 = sphi 0, %s425
      %s445 = sphi 0, %s447
      %s448 = sphi 0, %s445
      %s449 = sphi 0, %s448
      %s465 = sphi 0, %s449
    $region4: #{autoencoder_forward.1} parent=1 // loop_header_branch
      %34 = sbr.rel (%p32) target = $region8
    $region5: #{autoencoder_forward.1} parent=1 // loop_body
      %s36 = ssub.s32 %s31, 1
      %s37 = ssub.s32 %s31, 2
      %s38 = sadd.s32 %s31, 1
      %s39 = ssub.s32 %s31, %s38
      %p40 = scmp.eq.s32.totalorder %s39, 0
      %s42 = sadd.s32 %s41, 1
      %s43 = scalar_select %p40, %s41, %s42
      %p46 = pneg %p40
      %p47 = scmp.eq.s32.totalorder %s31, 1
      %p48 = por %p46, %p47
      %p49 = scmp.ne.s32.totalorder %s41, %s44
      %p50 = scmp.eq.s32.totalorder %s31, 0
      %p51 = por %p49, %p50
      %p52 = scmp.ne.s32.totalorder %s41, %s44
      %p53 = scmp.eq.s32.totalorder %s36, 1
      %p54 = por %p52, %p53
      %p55 = scmp.ne.s32.totalorder %s44, %s45
      %p56 = scmp.eq.s32.totalorder %s36, 0
      %p57 = por %p55, %p56
      %p58 = scmp.ne.s32.totalorder %s44, %s45
      %p59 = scmp.eq.s32.totalorder %s37, 1
      %p60 = por %p58, %p59
      %p62 = scmp.ne.s32.totalorder %s45, %s61
      %p63 = scmp.eq.s32.totalorder %s37, 0
      %p64 = por %p62, %p63
      %s66 = sadd.s32 %s65, 1
      %p69 = scmp.eq.s32.totalorder %s31, 1
      %p70 = scmp.ne.s32.totalorder %s65, %s67
      %p71 = scmp.eq.s32.totalorder %s31, 0
      %p72 = por %p70, %p71
      %p73 = scmp.ne.s32.totalorder %s65, %s67
      %p74 = scmp.eq.s32.totalorder %s36, 1
      %p75 = por %p73, %p74
      %p76 = scmp.ne.s32.totalorder %s67, %s68
      %p77 = scmp.eq.s32.totalorder %s36, 0
      %p78 = por %p76, %p77
      %p79 = scmp.ne.s32.totalorder %s67, %s68
      %p80 = scmp.eq.s32.totalorder %s37, 1
      %p81 = por %p79, %p80
      %p83 = scmp.ne.s32.totalorder %s68, %s82
      %p84 = scmp.eq.s32.totalorder %s37, 0
      %p85 = por %p83, %p84
      %s87 = sadd.s32 %s86, 1
      %p90 = scmp.eq.s32.totalorder %s31, 1
      %p91 = scmp.ne.s32.totalorder %s86, %s88
      %p92 = scmp.eq.s32.totalorder %s31, 0
      %p93 = por %p91, %p92
      %p94 = scmp.ne.s32.totalorder %s86, %s88
      %p95 = scmp.eq.s32.totalorder %s36, 1
      %p96 = por %p94, %p95
      %p97 = scmp.ne.s32.totalorder %s88, %s89
      %p98 = scmp.eq.s32.totalorder %s36, 0
      %p99 = por %p97, %p98
      %p100 = scmp.ne.s32.totalorder %s88, %s89
      %p101 = scmp.eq.s32.totalorder %s37, 1
      %p102 = por %p100, %p101
      %p104 = scmp.ne.s32.totalorder %s89, %s103
      %p105 = scmp.eq.s32.totalorder %s37, 0
      %p106 = por %p104, %p105
      %s108 = sadd.s32 %s107, 1
      %p111 = scmp.eq.s32.totalorder %s31, 1
      %p112 = scmp.ne.s32.totalorder %s107, %s109
      %p113 = scmp.eq.s32.totalorder %s31, 0
      %p114 = por %p112, %p113
      %p115 = scmp.ne.s32.totalorder %s107, %s109
      %p116 = scmp.eq.s32.totalorder %s36, 1
      %p117 = por %p115, %p116
      %p118 = scmp.ne.s32.totalorder %s109, %s110
      %p119 = scmp.eq.s32.totalorder %s36, 0
      %p120 = por %p118, %p119
      %p121 = scmp.ne.s32.totalorder %s109, %s110
      %p122 = scmp.eq.s32.totalorder %s37, 1
      %p123 = por %p121, %p122
      %p125 = scmp.ne.s32.totalorder %s110, %s124
      %p126 = scmp.eq.s32.totalorder %s37, 0
      %p127 = por %p125, %p126
      %s129 = sadd.s32 %s128, 1
      %p132 = scmp.eq.s32.totalorder %s31, 1
      %p133 = scmp.ne.s32.totalorder %s128, %s130
      %p134 = scmp.eq.s32.totalorder %s31, 0
      %p135 = por %p133, %p134
      %p136 = scmp.ne.s32.totalorder %s128, %s130
      %p137 = scmp.eq.s32.totalorder %s36, 1
      %p138 = por %p136, %p137
      %p139 = scmp.ne.s32.totalorder %s130, %s131
      %p140 = scmp.eq.s32.totalorder %s36, 0
      %p141 = por %p139, %p140
      %p142 = scmp.ne.s32.totalorder %s130, %s131
      %p143 = scmp.eq.s32.totalorder %s37, 1
      %p144 = por %p142, %p143
      %p146 = scmp.ne.s32.totalorder %s131, %s145
      %p147 = scmp.eq.s32.totalorder %s37, 0
      %p148 = por %p146, %p147
      %s150 = sadd.s32 %s149, 1
      %p153 = scmp.eq.s32.totalorder %s31, 1
      %p154 = scmp.ne.s32.totalorder %s149, %s151
      %p155 = scmp.eq.s32.totalorder %s31, 0
      %p156 = por %p154, %p155
      %p157 = scmp.ne.s32.totalorder %s149, %s151
      %p158 = scmp.eq.s32.totalorder %s36, 1
      %p159 = por %p157, %p158
      %p160 = scmp.ne.s32.totalorder %s151, %s152
      %p161 = scmp.eq.s32.totalorder %s36, 0
      %p162 = por %p160, %p161
      %p163 = scmp.ne.s32.totalorder %s151, %s152
      %p164 = scmp.eq.s32.totalorder %s37, 1
      %p165 = por %p163, %p164
      %p167 = scmp.ne.s32.totalorder %s152, %s166
      %p168 = scmp.eq.s32.totalorder %s37, 0
      %p169 = por %p167, %p168
      %s171 = sadd.s32 %s170, 1
      %p174 = scmp.eq.s32.totalorder %s31, 1
      %p175 = scmp.ne.s32.totalorder %s170, %s172
      %p176 = scmp.eq.s32.totalorder %s31, 0
      %p177 = por %p175, %p176
      %p178 = scmp.ne.s32.totalorder %s170, %s172
      %p179 = scmp.eq.s32.totalorder %s36, 1
      %p180 = por %p178, %p179
      %p181 = scmp.ne.s32.totalorder %s172, %s173
      %p182 = scmp.eq.s32.totalorder %s36, 0
      %p183 = por %p181, %p182
      %p184 = scmp.ne.s32.totalorder %s172, %s173
      %p185 = scmp.eq.s32.totalorder %s37, 1
      %p186 = por %p184, %p185
      %p188 = scmp.ne.s32.totalorder %s173, %s187
      %p189 = scmp.eq.s32.totalorder %s37, 0
      %p190 = por %p188, %p189
      %s192 = sadd.s32 %s191, 1
      %p195 = scmp.eq.s32.totalorder %s31, 1
      %p196 = scmp.ne.s32.totalorder %s191, %s193
      %p197 = scmp.eq.s32.totalorder %s31, 0
      %p198 = por %p196, %p197
      %p199 = scmp.ne.s32.totalorder %s191, %s193
      %p200 = scmp.eq.s32.totalorder %s36, 1
      %p201 = por %p199, %p200
      %p202 = scmp.ne.s32.totalorder %s193, %s194
      %p203 = scmp.eq.s32.totalorder %s36, 0
      %p204 = por %p202, %p203
      %p205 = scmp.ne.s32.totalorder %s193, %s194
      %p206 = scmp.eq.s32.totalorder %s37, 1
      %p207 = por %p205, %p206
      %p209 = scmp.ne.s32.totalorder %s194, %s208
      %p210 = scmp.eq.s32.totalorder %s37, 0
      %p211 = por %p209, %p210
      %s213 = sadd.s32 %s212, 1
      %p216 = scmp.eq.s32.totalorder %s31, 1
      %p217 = scmp.ne.s32.totalorder %s212, %s214
      %p218 = scmp.eq.s32.totalorder %s31, 0
      %p219 = por %p217, %p218
      %p220 = scmp.ne.s32.totalorder %s212, %s214
      %p221 = scmp.eq.s32.totalorder %s36, 1
      %p222 = por %p220, %p221
      %p223 = scmp.ne.s32.totalorder %s214, %s215
      %p224 = scmp.eq.s32.totalorder %s36, 0
      %p225 = por %p223, %p224
      %p226 = scmp.ne.s32.totalorder %s214, %s215
      %p227 = scmp.eq.s32.totalorder %s37, 1
      %p228 = por %p226, %p227
      %p230 = scmp.ne.s32.totalorder %s215, %s229
      %p231 = scmp.eq.s32.totalorder %s37, 0
      %p232 = por %p230, %p231
      %s234 = sadd.s32 %s233, 1
      %p237 = scmp.eq.s32.totalorder %s31, 1
      %p238 = scmp.ne.s32.totalorder %s233, %s235
      %p239 = scmp.eq.s32.totalorder %s31, 0
      %p240 = por %p238, %p239
      %p241 = scmp.ne.s32.totalorder %s233, %s235
      %p242 = scmp.eq.s32.totalorder %s36, 1
      %p243 = por %p241, %p242
      %p244 = scmp.ne.s32.totalorder %s235, %s236
      %p245 = scmp.eq.s32.totalorder %s36, 0
      %p246 = por %p244, %p245
      %p247 = scmp.ne.s32.totalorder %s235, %s236
      %p248 = scmp.eq.s32.totalorder %s37, 1
      %p249 = por %p247, %p248
      %p251 = scmp.ne.s32.totalorder %s236, %s250
      %p252 = scmp.eq.s32.totalorder %s37, 0
      %p253 = por %p251, %p252
      %s255 = sadd.s32 %s254, 1
      %p258 = scmp.eq.s32.totalorder %s31, 1
      %p259 = scmp.ne.s32.totalorder %s254, %s256
      %p260 = scmp.eq.s32.totalorder %s31, 0
      %p261 = por %p259, %p260
      %p262 = scmp.ne.s32.totalorder %s254, %s256
      %p263 = scmp.eq.s32.totalorder %s36, 1
      %p264 = por %p262, %p263
      %p265 = scmp.ne.s32.totalorder %s256, %s257
      %p266 = scmp.eq.s32.totalorder %s36, 0
      %p267 = por %p265, %p266
      %p268 = scmp.ne.s32.totalorder %s256, %s257
      %p269 = scmp.eq.s32.totalorder %s37, 1
      %p270 = por %p268, %p269
      %p272 = scmp.ne.s32.totalorder %s257, %s271
      %p273 = scmp.eq.s32.totalorder %s37, 0
      %p274 = por %p272, %p273
      %s276 = sadd.s32 %s275, 1
      %p279 = scmp.eq.s32.totalorder %s31, 1
      %p280 = scmp.ne.s32.totalorder %s275, %s277
      %p281 = scmp.eq.s32.totalorder %s31, 0
      %p282 = por %p280, %p281
      %p283 = scmp.ne.s32.totalorder %s275, %s277
      %p284 = scmp.eq.s32.totalorder %s36, 1
      %p285 = por %p283, %p284
      %p286 = scmp.ne.s32.totalorder %s277, %s278
      %p287 = scmp.eq.s32.totalorder %s36, 0
      %p288 = por %p286, %p287
      %p289 = scmp.ne.s32.totalorder %s277, %s278
      %p290 = scmp.eq.s32.totalorder %s37, 1
      %p291 = por %p289, %p290
      %p293 = scmp.ne.s32.totalorder %s278, %s292
      %p294 = scmp.eq.s32.totalorder %s37, 0
      %p295 = por %p293, %p294
      %s297 = sadd.s32 %s296, 1
      %p300 = scmp.eq.s32.totalorder %s31, 1
      %p301 = scmp.ne.s32.totalorder %s296, %s298
      %p302 = scmp.eq.s32.totalorder %s31, 0
      %p303 = por %p301, %p302
      %p304 = scmp.ne.s32.totalorder %s296, %s298
      %p305 = scmp.eq.s32.totalorder %s36, 1
      %p306 = por %p304, %p305
      %p307 = scmp.ne.s32.totalorder %s298, %s299
      %p308 = scmp.eq.s32.totalorder %s36, 0
      %p309 = por %p307, %p308
      %p310 = scmp.ne.s32.totalorder %s298, %s299
      %p311 = scmp.eq.s32.totalorder %s37, 1
      %p312 = por %p310, %p311
      %p314 = scmp.ne.s32.totalorder %s299, %s313
      %p315 = scmp.eq.s32.totalorder %s37, 0
      %p316 = por %p314, %p315
      %s318 = sadd.s32 %s317, 1
      %p321 = scmp.eq.s32.totalorder %s31, 1
      %p322 = scmp.ne.s32.totalorder %s317, %s319
      %p323 = scmp.eq.s32.totalorder %s31, 0
      %p324 = por %p322, %p323
      %p325 = scmp.ne.s32.totalorder %s317, %s319
      %p326 = scmp.eq.s32.totalorder %s36, 1
      %p327 = por %p325, %p326
      %p328 = scmp.ne.s32.totalorder %s319, %s320
      %p329 = scmp.eq.s32.totalorder %s36, 0
      %p330 = por %p328, %p329
      %p331 = scmp.ne.s32.totalorder %s319, %s320
      %p332 = scmp.eq.s32.totalorder %s37, 1
      %p333 = por %p331, %p332
      %p335 = scmp.ne.s32.totalorder %s320, %s334
      %p336 = scmp.eq.s32.totalorder %s37, 0
      %p337 = por %p335, %p336
      %s339 = sadd.s32 %s338, 1
      %p342 = scmp.eq.s32.totalorder %s31, 1
      %p343 = scmp.ne.s32.totalorder %s338, %s340
      %p344 = scmp.eq.s32.totalorder %s31, 0
      %p345 = por %p343, %p344
      %p346 = scmp.ne.s32.totalorder %s338, %s340
      %p347 = scmp.eq.s32.totalorder %s36, 1
      %p348 = por %p346, %p347
      %p349 = scmp.ne.s32.totalorder %s340, %s341
      %p350 = scmp.eq.s32.totalorder %s36, 0
      %p351 = por %p349, %p350
      %p352 = scmp.ne.s32.totalorder %s340, %s341
      %p353 = scmp.eq.s32.totalorder %s37, 1
      %p354 = por %p352, %p353
      %p356 = scmp.ne.s32.totalorder %s341, %s355
      %p357 = scmp.eq.s32.totalorder %s37, 0
      %p358 = por %p356, %p357
      %s360 = sadd.s32 %s359, 1
      %p363 = scmp.eq.s32.totalorder %s31, 1
      %p364 = scmp.ne.s32.totalorder %s359, %s361
      %p365 = scmp.eq.s32.totalorder %s31, 0
      %p366 = por %p364, %p365
      %p367 = scmp.ne.s32.totalorder %s359, %s361
      %p368 = scmp.eq.s32.totalorder %s36, 1
      %p369 = por %p367, %p368
      %p370 = scmp.ne.s32.totalorder %s361, %s362
      %p371 = scmp.eq.s32.totalorder %s36, 0
      %p372 = por %p370, %p371
      %p373 = scmp.ne.s32.totalorder %s361, %s362
      %p374 = scmp.eq.s32.totalorder %s37, 1
      %p375 = por %p373, %p374
      %p377 = scmp.ne.s32.totalorder %s362, %s376
      %p378 = scmp.eq.s32.totalorder %s37, 0
      %p379 = por %p377, %p378
      %s381 = sadd.s32 %s380, 1
      %p384 = scmp.eq.s32.totalorder %s31, 1
      %p385 = scmp.ne.s32.totalorder %s380, %s382
      %p386 = scmp.eq.s32.totalorder %s31, 0
      %p387 = por %p385, %p386
      %p388 = scmp.ne.s32.totalorder %s380, %s382
      %p389 = scmp.eq.s32.totalorder %s36, 1
      %p390 = por %p388, %p389
      %p391 = scmp.ne.s32.totalorder %s382, %s383
      %p392 = scmp.eq.s32.totalorder %s36, 0
      %p393 = por %p391, %p392
      %p394 = scmp.ne.s32.totalorder %s382, %s383
      %p395 = scmp.eq.s32.totalorder %s37, 1
      %p396 = por %p394, %p395
      %p398 = scmp.ne.s32.totalorder %s383, %s397
      %p399 = scmp.eq.s32.totalorder %s37, 0
      %p400 = por %p398, %p399
      %s402 = sadd.s32 %s401, 1
      %p405 = scmp.eq.s32.totalorder %s31, 1
      %p406 = scmp.ne.s32.totalorder %s401, %s403
      %p407 = scmp.eq.s32.totalorder %s31, 0
      %p408 = por %p406, %p407
      %p409 = scmp.ne.s32.totalorder %s401, %s403
      %p410 = scmp.eq.s32.totalorder %s36, 1
      %p411 = por %p409, %p410
      %p412 = scmp.ne.s32.totalorder %s403, %s404
      %p413 = scmp.eq.s32.totalorder %s36, 0
      %p414 = por %p412, %p413
      %p415 = scmp.ne.s32.totalorder %s403, %s404
      %p416 = scmp.eq.s32.totalorder %s37, 1
      %p417 = por %p415, %p416
      %p419 = scmp.ne.s32.totalorder %s404, %s418
      %p420 = scmp.eq.s32.totalorder %s37, 0
      %p421 = por %p419, %p420
      %s423 = sadd.s32 %s422, 1
      %p426 = scmp.eq.s32.totalorder %s31, 1
      %p427 = scmp.ne.s32.totalorder %s422, %s424
      %p428 = scmp.eq.s32.totalorder %s31, 0
      %p429 = por %p427, %p428
      %p430 = scmp.ne.s32.totalorder %s422, %s424
      %p431 = scmp.eq.s32.totalorder %s36, 1
      %p432 = por %p430, %p431
      %p433 = scmp.ne.s32.totalorder %s424, %s425
      %p434 = scmp.eq.s32.totalorder %s36, 0
      %p435 = por %p433, %p434
      %p436 = scmp.ne.s32.totalorder %s424, %s425
      %p437 = scmp.eq.s32.totalorder %s37, 1
      %p438 = por %p436, %p437
      %p440 = scmp.ne.s32.totalorder %s425, %s439
      %p441 = scmp.eq.s32.totalorder %s37, 0
      %p442 = por %p440, %p441
      %s443 = ssub.s32 %s31, %s38
      %p444 = scmp.eq.s32.totalorder %s443, 0
      %s446 = sadd.s32 %s445, 1
      %s447 = scalar_select %p444, %s445, %s446
      %p450 = pneg %p444
      %p451 = scmp.eq.s32.totalorder %s31, 1
      %p452 = por %p450, %p451
      %p453 = scmp.ne.s32.totalorder %s445, %s448
      %p454 = scmp.eq.s32.totalorder %s31, 0
      %p455 = por %p453, %p454
      %p456 = scmp.ne.s32.totalorder %s445, %s448
      %p457 = scmp.eq.s32.totalorder %s36, 1
      %p458 = por %p456, %p457
      %p459 = scmp.ne.s32.totalorder %s448, %s449
      %p460 = scmp.eq.s32.totalorder %s36, 0
      %p461 = por %p459, %p460
      %p462 = scmp.ne.s32.totalorder %s448, %s449
      %p463 = scmp.eq.s32.totalorder %s37, 1
      %p464 = por %p462, %p463
      %p466 = scmp.ne.s32.totalorder %s449, %s465
      %p467 = scmp.eq.s32.totalorder %s37, 0
      %p468 = por %p466, %p467
      %p469 = scmp.le.s32.totalorder 1, %s31
      %p470 = scmp.lt.s32.totalorder %s31, 3
      %p471 = pnand %p469, %p470
      %p472 = pneg %p471
      // Predicated region
      $region9: #{autoencoder_forward.1} parent=5 // pred_check
        _
      $region10: #{autoencoder_forward.1} parent=5 // pred_check_branch
        %474 = sbr.rel (%p471) target = $region12
      $region11: #{autoencoder_forward.1} parent=5 // pred_region
        %s475 = ssub.s32 %s31, 1
        // Predicated region
        $region13: #{autoencoder_forward.1} parent=11 // pred_check
          %p476 = pneg %p78
        $region14: #{autoencoder_forward.1} parent=11 // pred_check_branch
          %478 = sbr.rel (%p476) target = $region16
        $region15: #{autoencoder_forward.1} parent=11 // pred_region
          %s480 = ssub.s32 28672, 28672
          %481 = vsyncadd [#allocation3], %s480
          %s482 = sshll.u32 [#allocation2], 4
          %s483 = int_to_ptr.vmem [resolvable:$true] %s482
          %488 = dma.hbm_to_vmem [thread:$0]  %s1, 28672, %s483, [#allocation3], 256, 256, 16
        $region16: #{autoencoder_forward.1} parent=11 // pred_fallthru
          _
        // Predicated region
        $region17: #{autoencoder_forward.1} parent=11 // pred_check
          %p489 = pneg %p99
        $region18: #{autoencoder_forward.1} parent=11 // pred_check_branch
          %491 = sbr.rel (%p489) target = $region20
        $region19: #{autoencoder_forward.1} parent=11 // pred_region
          %s493 = ssub.s32 64, 64
          %494 = vsyncadd [#allocation5], %s493
          %s496 = sshll.u32 [#allocation4], 4
          %s497 = int_to_ptr.vmem [resolvable:$true] %s496
          %499 = dma.hbm_to_vmem [thread:$0]  %s2, 64, %s497, [#allocation5]
        $region20: #{autoencoder_forward.1} parent=11 // pred_fallthru
          _
        // Predicated region
        $region21: #{autoencoder_forward.1} parent=11 // pred_check
          %p500 = pneg %p120
        $region22: #{autoencoder_forward.1} parent=11 // pred_check_branch
          %502 = sbr.rel (%p500) target = $region24
        $region23: #{autoencoder_forward.1} parent=11 // pred_region
          %s504 = ssub.s32 8192, 8192
          %505 = vsyncadd [#allocation5], %s504
          %s506 = sshll.u32 [#allocation6], 4
          %s507 = int_to_ptr.vmem [resolvable:$true] %s506
          %512 = dma.hbm_to_vmem [thread:$0]  %s3, 8192, %s507, [#allocation5], 128, 128, 8
        $region24: #{autoencoder_forward.1} parent=11 // pred_fallthru
          _
        // Predicated region
        $region25: #{autoencoder_forward.1} parent=11 // pred_check
          %p513 = pneg %p141
        $region26: #{autoencoder_forward.1} parent=11 // pred_check_branch
          %515 = sbr.rel (%p513) target = $region28
        $region27: #{autoencoder_forward.1} parent=11 // pred_region
          %s517 = ssub.s32 32, 32
          %518 = vsyncadd [#allocation8], %s517
          %s520 = sshll.u32 [#allocation7], 4
          %s521 = int_to_ptr.vmem [resolvable:$true] %s520
          %523 = dma.hbm_to_vmem [thread:$0]  %s4, 32, %s521, [#allocation8]
        $region28: #{autoencoder_forward.1} parent=11 // pred_fallthru
          _
        // Predicated region
        $region29: #{autoencoder_forward.1} parent=11 // pred_check
          %p524 = pneg %p162
        $region30: #{autoencoder_forward.1} parent=11 // pred_check_branch
          %526 = sbr.rel (%p524) target = $region32
        $region31: #{autoencoder_forward.1} parent=11 // pred_region
          _
        $region32: #{autoencoder_forward.1} parent=11 // pred_fallthru
          _
        // Predicated region
        $region33: #{autoencoder_forward.1} parent=11 // pred_check
          %p527 = pneg %p183
        $region34: #{autoencoder_forward.1} parent=11 // pred_check_branch
          %529 = sbr.rel (%p527) target = $region36
        $region35: #{autoencoder_forward.1} parent=11 // pred_region
          %s531 = ssub.s32 16, 16
          %532 = vsyncadd [#allocation8], %s531
          %s534 = sshll.u32 [#allocation9], 4
          %s535 = int_to_ptr.vmem [resolvable:$true] %s534
          %537 = dma.hbm_to_vmem [thread:$0]  %s6, 16, %s535, [#allocation8]
        $region36: #{autoencoder_forward.1} parent=11 // pred_fallthru
          _
        // Predicated region
        $region37: #{autoencoder_forward.1} parent=11 // pred_check
          %p538 = pneg %p204
        $region38: #{autoencoder_forward.1} parent=11 // pred_check_branch
          %540 = sbr.rel (%p538) target = $region40
        $region39: #{autoencoder_forward.1} parent=11 // pred_region
          _
        $region40: #{autoencoder_forward.1} parent=11 // pred_fallthru
          _
        // Predicated region
        $region41: #{autoencoder_forward.1} parent=11 // pred_check
          %p541 = pneg %p225
        $region42: #{autoencoder_forward.1} parent=11 // pred_check_branch
          %543 = sbr.rel (%p541) target = $region44
        $region43: #{autoencoder_forward.1} parent=11 // pred_region
          %s545 = ssub.s32 16, 16
          %546 = vsyncadd [#allocation11], %s545
          %s548 = sshll.u32 [#allocation10], 4
          %s549 = int_to_ptr.vmem [resolvable:$true] %s548
          %551 = dma.hbm_to_vmem [thread:$0]  %s8, 16, %s549, [#allocation11]
        $region44: #{autoencoder_forward.1} parent=11 // pred_fallthru
          _
        // Predicated region
        $region45: #{autoencoder_forward.1} parent=11 // pred_check
          %p552 = pneg %p246
        $region46: #{autoencoder_forward.1} parent=11 // pred_check_branch
          %554 = sbr.rel (%p552) target = $region48
        $region47: #{autoencoder_forward.1} parent=11 // pred_region
          %s556 = ssub.s32 512, 512
          %557 = vsyncadd [#allocation11], %s556
          %s558 = sshll.u32 [#allocation12], 4
          %s559 = int_to_ptr.vmem [resolvable:$true] %s558
          %564 = dma.hbm_to_vmem [thread:$0]  %s9, 512, %s559, [#allocation11], 64, 64, 4
        $region48: #{autoencoder_forward.1} parent=11 // pred_fallthru
          _
        // Predicated region
        $region49: #{autoencoder_forward.1} parent=11 // pred_check
          %p565 = pneg %p267
        $region50: #{autoencoder_forward.1} parent=11 // pred_check_branch
          %567 = sbr.rel (%p565) target = $region52
        $region51: #{autoencoder_forward.1} parent=11 // pred_region
          _
        $region52: #{autoencoder_forward.1} parent=11 // pred_fallthru
          _
        // Predicated region
        $region53: #{autoencoder_forward.1} parent=11 // pred_check
          %p568 = pneg %p288
        $region54: #{autoencoder_forward.1} parent=11 // pred_check_branch
          %570 = sbr.rel (%p568) target = $region56
        $region55: #{autoencoder_forward.1} parent=11 // pred_region
          %s572 = ssub.s32 512, 512
          %573 = vsyncadd [#allocation14], %s572
          %s574 = sshll.u32 [#allocation13], 4
          %s575 = int_to_ptr.vmem [resolvable:$true] %s574
          %580 = dma.hbm_to_vmem [thread:$0]  %s11, 512, %s575, [#allocation14], 64, 64, 4
        $region56: #{autoencoder_forward.1} parent=11 // pred_fallthru
          _
        // Predicated region
        $region57: #{autoencoder_forward.1} parent=11 // pred_check
          %p581 = pneg %p309
        $region58: #{autoencoder_forward.1} parent=11 // pred_check_branch
          %583 = sbr.rel (%p581) target = $region60
        $region59: #{autoencoder_forward.1} parent=11 // pred_region
          _
        $region60: #{autoencoder_forward.1} parent=11 // pred_fallthru
          _
        // Predicated region
        $region61: #{autoencoder_forward.1} parent=11 // pred_check
          %p584 = pneg %p330
        $region62: #{autoencoder_forward.1} parent=11 // pred_check_branch
          %586 = sbr.rel (%p584) target = $region64
        $region63: #{autoencoder_forward.1} parent=11 // pred_region
          _
        $region64: #{autoencoder_forward.1} parent=11 // pred_fallthru
          _
        // Predicated region
        $region65: #{autoencoder_forward.1} parent=11 // pred_check
          %p587 = pneg %p351
        $region66: #{autoencoder_forward.1} parent=11 // pred_check_branch
          %589 = sbr.rel (%p587) target = $region68
        $region67: #{autoencoder_forward.1} parent=11 // pred_region
          _
        $region68: #{autoencoder_forward.1} parent=11 // pred_fallthru
          _
        // Predicated region
        $region69: #{autoencoder_forward.1} parent=11 // pred_check
          %p590 = pneg %p372
        $region70: #{autoencoder_forward.1} parent=11 // pred_check_branch
          %592 = sbr.rel (%p590) target = $region72
        $region71: #{autoencoder_forward.1} parent=11 // pred_region
          %s594 = ssub.s32 8192, 8192
          %595 = vsyncadd [#allocation14], %s594
          %s596 = sshll.u32 [#allocation15], 4
          %s597 = int_to_ptr.vmem [resolvable:$true] %s596
          %602 = dma.hbm_to_vmem [thread:$0]  %s15, 8192, %s597, [#allocation14], 256, 256, 16
        $region72: #{autoencoder_forward.1} parent=11 // pred_fallthru
          _
        // Predicated region
        $region73: #{autoencoder_forward.1} parent=11 // pred_check
          %p603 = pneg %p393
        $region74: #{autoencoder_forward.1} parent=11 // pred_check_branch
          %605 = sbr.rel (%p603) target = $region76
        $region75: #{autoencoder_forward.1} parent=11 // pred_region
          _
        $region76: #{autoencoder_forward.1} parent=11 // pred_fallthru
          _
        // Predicated region
        $region77: #{autoencoder_forward.1} parent=11 // pred_check
          %p606 = pneg %p414
        $region78: #{autoencoder_forward.1} parent=11 // pred_check_branch
          %608 = sbr.rel (%p606) target = $region80
        $region79: #{autoencoder_forward.1} parent=11 // pred_region
          %s610 = ssub.s32 28672, 28672
          %611 = vsyncadd [#allocation17], %s610
          %s612 = sshll.u32 [#allocation16], 4
          %s613 = int_to_ptr.vmem [resolvable:$true] %s612
          %618 = dma.hbm_to_vmem [thread:$0]  %s17, 28672, %s613, [#allocation17], 448, 448, 28
        $region80: #{autoencoder_forward.1} parent=11 // pred_fallthru
          _
        // Predicated region
        $region81: #{autoencoder_forward.1} parent=11 // pred_check
          %p619 = pneg %p435
        $region82: #{autoencoder_forward.1} parent=11 // pred_check_branch
          %621 = sbr.rel (%p619) target = $region84
        $region83: #{autoencoder_forward.1} parent=11 // pred_region
          _
        $region84: #{autoencoder_forward.1} parent=11 // pred_fallthru
          _
      $region12: #{autoencoder_forward.1} parent=5 // pred_fallthru
        _
      %p622 = scmp.lt.s32.totalorder %s31, 2
      // Predicated region
      $region85: #{autoencoder_forward.1} parent=5 // pred_check
        %p623 = pneg %p622
      $region86: #{autoencoder_forward.1} parent=5 // pred_check_branch
        %625 = sbr.rel (%p623) target = $region88
      $region87: #{autoencoder_forward.1} parent=5 // pred_region
        // Predicated region
        $region89: #{autoencoder_forward.1} parent=87 // pred_check
          %p626 = pneg %p51
        $region90: #{autoencoder_forward.1} parent=87 // pred_check_branch
          %628 = sbr.rel (%p626) target = $region92
        $region91: #{autoencoder_forward.1} parent=87 // pred_region
          %s629 = smul.u32 2, %s31
          %p630 = scmp.lt.s32.totalorder %s629, 3
          %s631 = scalar_select %p630, %s629, 3
          %s632 = smul.addr %s631, 7
          %s633 = smul.addr %s632, 4
          %s634 = scalar_lea.vmem %s0, %s633
          %s635 = smul.u32 2, %s31
        $region92: #{autoencoder_forward.1} parent=87 // pred_fallthru
          _
      $region88: #{autoencoder_forward.1} parent=5 // pred_fallthru
        _
      %p636 = scmp.le.s32.totalorder 1, %s31
      %p637 = scmp.lt.s32.totalorder %s31, 3
      %p638 = pnand %p636, %p637
      %p639 = pneg %p638
      // Predicated region
      $region93: #{autoencoder_forward.1} parent=5 // pred_check
        _
      $region94: #{autoencoder_forward.1} parent=5 // pred_check_branch
        %641 = sbr.rel (%p638) target = $region96
      $region95: #{autoencoder_forward.1} parent=5 // pred_region
        %s642 = ssub.s32 %s31, 1
        // Predicated region
        $region97: #{autoencoder_forward.1} parent=95 // pred_check
          %p643 = pneg %p78
        $region98: #{autoencoder_forward.1} parent=95 // pred_check_branch
          %645 = sbr.rel (%p643) target = $region100
        $region99: #{autoencoder_forward.1} parent=95 // pred_region
          %646 = dma.done [#allocation3], 28672
        $region100: #{autoencoder_forward.1} parent=95 // pred_fallthru
          _
        // Predicated region
        $region101: #{autoencoder_forward.1} parent=95 // pred_check
          %p647 = pneg %p99
        $region102: #{autoencoder_forward.1} parent=95 // pred_check_branch
          %649 = sbr.rel (%p647) target = $region104
        $region103: #{autoencoder_forward.1} parent=95 // pred_region
          %650 = dma.done [#allocation5], 64
        $region104: #{autoencoder_forward.1} parent=95 // pred_fallthru
          _
        // Predicated region
        $region105: #{autoencoder_forward.1} parent=95 // pred_check
          %p651 = pneg %p120
        $region106: #{autoencoder_forward.1} parent=95 // pred_check_branch
          %653 = sbr.rel (%p651) target = $region108
        $region107: #{autoencoder_forward.1} parent=95 // pred_region
          %654 = dma.done [#allocation5], 8192
        $region108: #{autoencoder_forward.1} parent=95 // pred_fallthru
          _
        // Predicated region
        $region109: #{autoencoder_forward.1} parent=95 // pred_check
          %p655 = pneg %p141
        $region110: #{autoencoder_forward.1} parent=95 // pred_check_branch
          %657 = sbr.rel (%p655) target = $region112
        $region111: #{autoencoder_forward.1} parent=95 // pred_region
          %658 = dma.done [#allocation8], 32
        $region112: #{autoencoder_forward.1} parent=95 // pred_fallthru
          _
        // Predicated region
        $region113: #{autoencoder_forward.1} parent=95 // pred_check
          %p659 = pneg %p183
        $region114: #{autoencoder_forward.1} parent=95 // pred_check_branch
          %661 = sbr.rel (%p659) target = $region116
        $region115: #{autoencoder_forward.1} parent=95 // pred_region
          %662 = dma.done [#allocation8], 16
        $region116: #{autoencoder_forward.1} parent=95 // pred_fallthru
          _
        // Predicated region
        $region117: #{autoencoder_forward.1} parent=95 // pred_check
          %p663 = pneg %p225
        $region118: #{autoencoder_forward.1} parent=95 // pred_check_branch
          %665 = sbr.rel (%p663) target = $region120
        $region119: #{autoencoder_forward.1} parent=95 // pred_region
          %666 = dma.done [#allocation11], 16
        $region120: #{autoencoder_forward.1} parent=95 // pred_fallthru
          _
        // Predicated region
        $region121: #{autoencoder_forward.1} parent=95 // pred_check
          %p667 = pneg %p246
        $region122: #{autoencoder_forward.1} parent=95 // pred_check_branch
          %669 = sbr.rel (%p667) target = $region124
        $region123: #{autoencoder_forward.1} parent=95 // pred_region
          %670 = dma.done [#allocation11], 512
        $region124: #{autoencoder_forward.1} parent=95 // pred_fallthru
          _
        // Predicated region
        $region125: #{autoencoder_forward.1} parent=95 // pred_check
          %p671 = pneg %p288
        $region126: #{autoencoder_forward.1} parent=95 // pred_check_branch
          %673 = sbr.rel (%p671) target = $region128
        $region127: #{autoencoder_forward.1} parent=95 // pred_region
          %674 = dma.done [#allocation14], 512
        $region128: #{autoencoder_forward.1} parent=95 // pred_fallthru
          _
        // Predicated region
        $region129: #{autoencoder_forward.1} parent=95 // pred_check
          %p675 = pneg %p372
        $region130: #{autoencoder_forward.1} parent=95 // pred_check_branch
          %677 = sbr.rel (%p675) target = $region132
        $region131: #{autoencoder_forward.1} parent=95 // pred_region
          %678 = dma.done [#allocation14], 8192
        $region132: #{autoencoder_forward.1} parent=95 // pred_fallthru
          _
        // Predicated region
        $region133: #{autoencoder_forward.1} parent=95 // pred_check
          %p679 = pneg %p414
        $region134: #{autoencoder_forward.1} parent=95 // pred_check_branch
          %681 = sbr.rel (%p679) target = $region136
        $region135: #{autoencoder_forward.1} parent=95 // pred_region
          %682 = dma.done [#allocation17], 28672
        $region136: #{autoencoder_forward.1} parent=95 // pred_fallthru
          _
        %s683 = smul.u32 2, %s36
        %p684 = scmp.lt.s32.totalorder %s683, 3
        %s685 = scalar_select %p684, %s683, 3
        %s686 = smul.addr %s685, 7
        %s687 = smul.addr %s686, 4
        %s688 = scalar_lea.vmem %s0, %s687
        %p689 = pneg %p57
        %p690 = pneg %p54
        %p691 = pneg %p78
        %p692 = pneg %p75
        %p693 = pneg %p99
        %p694 = pneg %p96
        %p695 = pneg %p120
        %p696 = pneg %p117
        %p697 = pneg %p141
        %p698 = pneg %p138
        %p699 = pneg %p162
        %p700 = pneg %p159
        %p701 = pneg %p183
        %p702 = pneg %p180
        %p703 = pneg %p204
        %p704 = pneg %p201
        %p705 = pneg %p225
        %p706 = pneg %p222
        %p707 = pneg %p246
        %p708 = pneg %p243
        %p709 = pneg %p267
        %p710 = pneg %p264
        %p711 = pneg %p288
        %p712 = pneg %p285
        %p713 = pneg %p309
        %p714 = pneg %p306
        %p715 = pneg %p330
        %p716 = pneg %p327
        %p717 = pneg %p351
        %p718 = pneg %p348
        %p719 = pneg %p372
        %p720 = pneg %p369
        %p721 = pneg %p393
        %p722 = pneg %p390
        %p723 = pneg %p414
        %p724 = pneg %p411
        %p725 = pneg %p435
        %p726 = pneg %p432
        %p727 = pneg %p461
        %p728 = pneg %p458
        %s729 = smul.u32 2, %s36
        %p730 = scmp.lt.s32.totalorder %s729, 3
        %s731 = scalar_select %p730, %s729, 3
        %s732 = smul.addr %s731, 7
        %s733 = smul.addr %s732, 4
        %s734 = scalar_lea.vmem %s19, %s733
        %s735 = smul.u32 2, %s36
        %p736 = scmp.lt.s32.totalorder %s735, 3
        %s737 = scalar_select %p736, %s735, 3
        %s738 = smul.addr %s737, 7
        %s739 = smul.addr %s738, 4
        %s740 = scalar_lea.vmem %s0, %s739
        %s741 = smul.u32 2, %s36
        %s742 = smul.u32 2, %s36
        %p743 = scmp.lt.s32.totalorder %s742, 3
        %s744 = scalar_select %p743, %s742, 3
        %s745 = smul.addr %s744, 7
        %s746 = smul.addr %s745, 4
        %s747 = scalar_lea.vmem %s19, %s746
        %s748 = smul.u32 2, %s36
        %v750 = vld [vmem:[%s740] sm:$0xff]
        %v751 = vld [vmem:[%s740 + $0x8] sm:$0xff]
        %v752 = vld [vmem:[%s740 + $0x10] sm:$0xff]
        %v753 = vld [vmem:[%s740 + $0x18] sm:$0xf]
        %v754 = vld [vmem:[%s740 + $0x1c] sm:$0xff]
        %v755 = vld [vmem:[%s740 + $0x24] sm:$0xff]
        %v756 = vld [vmem:[%s740 + $0x2c] sm:$0xff]
        %v757 = vld [vmem:[%s740 + $0x34] sm:$0xf]
        %v758 = vld [vmem:[#allocation2] sm:$0xff]
        %v759 = vld [vmem:[#allocation2 + $0x8] sm:$0xff]
        %v760 = vld [vmem:[#allocation2 + $0x10] sm:$0xff]
        %v761 = vld [vmem:[#allocation2 + $0x18] sm:$0xff]
        %v762 = vld [vmem:[#allocation2 + $0x20] sm:$0xff]
        %v763 = vld [vmem:[#allocation2 + $0x28] sm:$0xff]
        %v764 = vld [vmem:[#allocation2 + $0x30] sm:$0xff]
        %v765 = vld [vmem:[#allocation2 + $0x38] sm:$0xff]
        %v766 = vld [vmem:[#allocation2 + $0x40] sm:$0xff]
        %v767 = vld [vmem:[#allocation2 + $0x48] sm:$0xff]
        %v768 = vld [vmem:[#allocation2 + $0x50] sm:$0xff]
        %v769 = vld [vmem:[#allocation2 + $0x58] sm:$0xff]
        %v770 = vld [vmem:[#allocation2 + $0x60] sm:$0xff]
        %v771 = vld [vmem:[#allocation2 + $0x68] sm:$0xff]
        %v772 = vld [vmem:[#allocation2 + $0x70] sm:$0xff]
        %v773 = vld [vmem:[#allocation2 + $0x78] sm:$0xff]
        %v774 = vld [vmem:[#allocation2 + $0x80] sm:$0xff]
        %v775 = vld [vmem:[#allocation2 + $0x88] sm:$0xff]
        %v776 = vld [vmem:[#allocation2 + $0x90] sm:$0xff]
        %v777 = vld [vmem:[#allocation2 + $0x98] sm:$0xff]
        %v778 = vld [vmem:[#allocation2 + $0xa0] sm:$0xff]
        %v779 = vld [vmem:[#allocation2 + $0xa8] sm:$0xff]
        %v780 = vld [vmem:[#allocation2 + $0xb0] sm:$0xff]
        %v781 = vld [vmem:[#allocation2 + $0xb8] sm:$0xff]
        %v782 = vld [vmem:[#allocation2 + $0xc0] sm:$0xff]
        %v783 = vld [vmem:[#allocation2 + $0xc8] sm:$0xff]
        %v784 = vld [vmem:[#allocation2 + $0xd0] sm:$0xff]
        %v785 = vld [vmem:[#allocation2 + $0xd8] sm:$0xff]
        %v786 = vld [vmem:[#allocation2 + $0xe0] sm:$0xff]
        %v787 = vld [vmem:[#allocation2 + $0xe8] sm:$0xff]
        %v788 = vld [vmem:[#allocation2 + $0xf0] sm:$0xff]
        %v789 = vld [vmem:[#allocation2 + $0xf8] sm:$0xff]
        %v790 = vld [vmem:[#allocation2 + $0x100] sm:$0xff]
        %v791 = vld [vmem:[#allocation2 + $0x108] sm:$0xff]
        %v792 = vld [vmem:[#allocation2 + $0x110] sm:$0xff]
        %v793 = vld [vmem:[#allocation2 + $0x118] sm:$0xff]
        %v794 = vld [vmem:[#allocation2 + $0x120] sm:$0xff]
        %v795 = vld [vmem:[#allocation2 + $0x128] sm:$0xff]
        %v796 = vld [vmem:[#allocation2 + $0x130] sm:$0xff]
        %v797 = vld [vmem:[#allocation2 + $0x138] sm:$0xff]
        %v798 = vld [vmem:[#allocation2 + $0x140] sm:$0xff]
        %v799 = vld [vmem:[#allocation2 + $0x148] sm:$0xff]
        %v800 = vld [vmem:[#allocation2 + $0x150] sm:$0xff]
        %v801 = vld [vmem:[#allocation2 + $0x158] sm:$0xff]
        %v802 = vld [vmem:[#allocation2 + $0x160] sm:$0xff]
        %v803 = vld [vmem:[#allocation2 + $0x168] sm:$0xff]
        %v804 = vld [vmem:[#allocation2 + $0x170] sm:$0xff]
        %v805 = vld [vmem:[#allocation2 + $0x178] sm:$0xff]
        %v806 = vld [vmem:[#allocation2 + $0x180] sm:$0xff]
        %v807 = vld [vmem:[#allocation2 + $0x188] sm:$0xff]
        %v808 = vld [vmem:[#allocation2 + $0x190] sm:$0xff]
        %v809 = vld [vmem:[#allocation2 + $0x198] sm:$0xff]
        %v810 = vld [vmem:[#allocation2 + $0x1a0] sm:$0xff]
        %v811 = vld [vmem:[#allocation2 + $0x1a8] sm:$0xff]
        %v812 = vld [vmem:[#allocation2 + $0x1b0] sm:$0xff]
        %v813 = vld [vmem:[#allocation2 + $0x1b8] sm:$0xff]
        %v814 = vld [vmem:[#allocation2 + $0x1c0] sm:$0xff]
        %v815 = vld [vmem:[#allocation2 + $0x1c8] sm:$0xff]
        %v816 = vld [vmem:[#allocation2 + $0x1d0] sm:$0xff]
        %v817 = vld [vmem:[#allocation2 + $0x1d8] sm:$0xff]
        %v818 = vld [vmem:[#allocation2 + $0x1e0] sm:$0xff]
        %v819 = vld [vmem:[#allocation2 + $0x1e8] sm:$0xff]
        %v820 = vld [vmem:[#allocation2 + $0x1f0] sm:$0xff]
        %v821 = vld [vmem:[#allocation2 + $0x1f8] sm:$0xff]
        %v822 = vld [vmem:[#allocation2 + $0x200] sm:$0xff]
        %v823 = vld [vmem:[#allocation2 + $0x208] sm:$0xff]
        %v824 = vld [vmem:[#allocation2 + $0x210] sm:$0xff]
        %v825 = vld [vmem:[#allocation2 + $0x218] sm:$0xff]
        %v826 = vld [vmem:[#allocation2 + $0x220] sm:$0xff]
        %v827 = vld [vmem:[#allocation2 + $0x228] sm:$0xff]
        %v828 = vld [vmem:[#allocation2 + $0x230] sm:$0xff]
        %v829 = vld [vmem:[#allocation2 + $0x238] sm:$0xff]
        %v830 = vld [vmem:[#allocation2 + $0x240] sm:$0xff]
        %v831 = vld [vmem:[#allocation2 + $0x248] sm:$0xff]
        %v832 = vld [vmem:[#allocation2 + $0x250] sm:$0xff]
        %v833 = vld [vmem:[#allocation2 + $0x258] sm:$0xff]
        %v834 = vld [vmem:[#allocation2 + $0x260] sm:$0xff]
        %v835 = vld [vmem:[#allocation2 + $0x268] sm:$0xff]
        %v836 = vld [vmem:[#allocation2 + $0x270] sm:$0xff]
        %v837 = vld [vmem:[#allocation2 + $0x278] sm:$0xff]
        %v838 = vld [vmem:[#allocation2 + $0x280] sm:$0xff]
        %v839 = vld [vmem:[#allocation2 + $0x288] sm:$0xff]
        %v840 = vld [vmem:[#allocation2 + $0x290] sm:$0xff]
        %v841 = vld [vmem:[#allocation2 + $0x298] sm:$0xff]
        %v842 = vld [vmem:[#allocation2 + $0x2a0] sm:$0xff]
        %v843 = vld [vmem:[#allocation2 + $0x2a8] sm:$0xff]
        %v844 = vld [vmem:[#allocation2 + $0x2b0] sm:$0xff]
        %v845 = vld [vmem:[#allocation2 + $0x2b8] sm:$0xff]
        %v846 = vld [vmem:[#allocation2 + $0x2c0] sm:$0xff]
        %v847 = vld [vmem:[#allocation2 + $0x2c8] sm:$0xff]
        %v848 = vld [vmem:[#allocation2 + $0x2d0] sm:$0xff]
        %v849 = vld [vmem:[#allocation2 + $0x2d8] sm:$0xff]
        %v850 = vld [vmem:[#allocation2 + $0x2e0] sm:$0xff]
        %v851 = vld [vmem:[#allocation2 + $0x2e8] sm:$0xff]
        %v852 = vld [vmem:[#allocation2 + $0x2f0] sm:$0xff]
        %v853 = vld [vmem:[#allocation2 + $0x2f8] sm:$0xff]
        %v854 = vld [vmem:[#allocation2 + $0x300] sm:$0xff]
        %v855 = vld [vmem:[#allocation2 + $0x308] sm:$0xff]
        %v856 = vld [vmem:[#allocation2 + $0x310] sm:$0xff]
        %v857 = vld [vmem:[#allocation2 + $0x318] sm:$0xff]
        %v858 = vld [vmem:[#allocation2 + $0x320] sm:$0xff]
        %v859 = vld [vmem:[#allocation2 + $0x328] sm:$0xff]
        %v860 = vld [vmem:[#allocation2 + $0x330] sm:$0xff]
        %v861 = vld [vmem:[#allocation2 + $0x338] sm:$0xff]
        %v862 = vld [vmem:[#allocation2 + $0x340] sm:$0xff]
        %v863 = vld [vmem:[#allocation2 + $0x348] sm:$0xff]
        %v864 = vld [vmem:[#allocation2 + $0x350] sm:$0xff]
        %v865 = vld [vmem:[#allocation2 + $0x358] sm:$0xff]
        %v866 = vld [vmem:[#allocation2 + $0x360] sm:$0xff]
        %v867 = vld [vmem:[#allocation2 + $0x368] sm:$0xff]
        %v868 = vld [vmem:[#allocation2 + $0x370] sm:$0xff]
        %v869 = vld [vmem:[#allocation2 + $0x378] sm:$0xff]
        %v870 = vld [vmem:[#allocation2 + $0x380] sm:$0xff]
        %v871 = vld [vmem:[#allocation2 + $0x388] sm:$0xff]
        %v872 = vld [vmem:[#allocation2 + $0x390] sm:$0xff]
        %v873 = vld [vmem:[#allocation2 + $0x398] sm:$0xff]
        %v874 = vld [vmem:[#allocation2 + $0x3a0] sm:$0xff]
        %v875 = vld [vmem:[#allocation2 + $0x3a8] sm:$0xff]
        %v876 = vld [vmem:[#allocation2 + $0x3b0] sm:$0xff]
        %v877 = vld [vmem:[#allocation2 + $0x3b8] sm:$0xff]
        %v878 = vld [vmem:[#allocation2 + $0x3c0] sm:$0xff]
        %v879 = vld [vmem:[#allocation2 + $0x3c8] sm:$0xff]
        %v880 = vld [vmem:[#allocation2 + $0x3d0] sm:$0xff]
        %v881 = vld [vmem:[#allocation2 + $0x3d8] sm:$0xff]
        %v882 = vld [vmem:[#allocation2 + $0x3e0] sm:$0xff]
        %v883 = vld [vmem:[#allocation2 + $0x3e8] sm:$0xff]
        %v884 = vld [vmem:[#allocation2 + $0x3f0] sm:$0xff]
        %v885 = vld [vmem:[#allocation2 + $0x3f8] sm:$0xff]
        %v886 = vld [vmem:[#allocation2 + $0x400] sm:$0xff]
        %v887 = vld [vmem:[#allocation2 + $0x408] sm:$0xff]
        %v888 = vld [vmem:[#allocation2 + $0x410] sm:$0xff]
        %v889 = vld [vmem:[#allocation2 + $0x418] sm:$0xff]
        %v890 = vld [vmem:[#allocation2 + $0x420] sm:$0xff]
        %v891 = vld [vmem:[#allocation2 + $0x428] sm:$0xff]
        %v892 = vld [vmem:[#allocation2 + $0x430] sm:$0xff]
        %v893 = vld [vmem:[#allocation2 + $0x438] sm:$0xff]
        %v894 = vld [vmem:[#allocation2 + $0x440] sm:$0xff]
        %v895 = vld [vmem:[#allocation2 + $0x448] sm:$0xff]
        %v896 = vld [vmem:[#allocation2 + $0x450] sm:$0xff]
        %v897 = vld [vmem:[#allocation2 + $0x458] sm:$0xff]
        %v898 = vld [vmem:[#allocation2 + $0x460] sm:$0xff]
        %v899 = vld [vmem:[#allocation2 + $0x468] sm:$0xff]
        %v900 = vld [vmem:[#allocation2 + $0x470] sm:$0xff]
        %v901 = vld [vmem:[#allocation2 + $0x478] sm:$0xff]
        %v902 = vld [vmem:[#allocation2 + $0x480] sm:$0xff]
        %v903 = vld [vmem:[#allocation2 + $0x488] sm:$0xff]
        %v904 = vld [vmem:[#allocation2 + $0x490] sm:$0xff]
        %v905 = vld [vmem:[#allocation2 + $0x498] sm:$0xff]
        %v906 = vld [vmem:[#allocation2 + $0x4a0] sm:$0xff]
        %v907 = vld [vmem:[#allocation2 + $0x4a8] sm:$0xff]
        %v908 = vld [vmem:[#allocation2 + $0x4b0] sm:$0xff]
        %v909 = vld [vmem:[#allocation2 + $0x4b8] sm:$0xff]
        %v910 = vld [vmem:[#allocation2 + $0x4c0] sm:$0xff]
        %v911 = vld [vmem:[#allocation2 + $0x4c8] sm:$0xff]
        %v912 = vld [vmem:[#allocation2 + $0x4d0] sm:$0xff]
        %v913 = vld [vmem:[#allocation2 + $0x4d8] sm:$0xff]
        %v914 = vld [vmem:[#allocation2 + $0x4e0] sm:$0xff]
        %v915 = vld [vmem:[#allocation2 + $0x4e8] sm:$0xff]
        %v916 = vld [vmem:[#allocation2 + $0x4f0] sm:$0xff]
        %v917 = vld [vmem:[#allocation2 + $0x4f8] sm:$0xff]
        %v918 = vld [vmem:[#allocation2 + $0x500] sm:$0xff]
        %v919 = vld [vmem:[#allocation2 + $0x508] sm:$0xff]
        %v920 = vld [vmem:[#allocation2 + $0x510] sm:$0xff]
        %v921 = vld [vmem:[#allocation2 + $0x518] sm:$0xff]
        %v922 = vld [vmem:[#allocation2 + $0x520] sm:$0xff]
        %v923 = vld [vmem:[#allocation2 + $0x528] sm:$0xff]
        %v924 = vld [vmem:[#allocation2 + $0x530] sm:$0xff]
        %v925 = vld [vmem:[#allocation2 + $0x538] sm:$0xff]
        %v926 = vld [vmem:[#allocation2 + $0x540] sm:$0xff]
        %v927 = vld [vmem:[#allocation2 + $0x548] sm:$0xff]
        %v928 = vld [vmem:[#allocation2 + $0x550] sm:$0xff]
        %v929 = vld [vmem:[#allocation2 + $0x558] sm:$0xff]
        %v930 = vld [vmem:[#allocation2 + $0x560] sm:$0xff]
        %v931 = vld [vmem:[#allocation2 + $0x568] sm:$0xff]
        %v932 = vld [vmem:[#allocation2 + $0x570] sm:$0xff]
        %v933 = vld [vmem:[#allocation2 + $0x578] sm:$0xff]
        %v934 = vld [vmem:[#allocation2 + $0x580] sm:$0xff]
        %v935 = vld [vmem:[#allocation2 + $0x588] sm:$0xff]
        %v936 = vld [vmem:[#allocation2 + $0x590] sm:$0xff]
        %v937 = vld [vmem:[#allocation2 + $0x598] sm:$0xff]
        %v938 = vld [vmem:[#allocation2 + $0x5a0] sm:$0xff]
        %v939 = vld [vmem:[#allocation2 + $0x5a8] sm:$0xff]
        %v940 = vld [vmem:[#allocation2 + $0x5b0] sm:$0xff]
        %v941 = vld [vmem:[#allocation2 + $0x5b8] sm:$0xff]
        %v942 = vld [vmem:[#allocation2 + $0x5c0] sm:$0xff]
        %v943 = vld [vmem:[#allocation2 + $0x5c8] sm:$0xff]
        %v944 = vld [vmem:[#allocation2 + $0x5d0] sm:$0xff]
        %v945 = vld [vmem:[#allocation2 + $0x5d8] sm:$0xff]
        %v946 = vld [vmem:[#allocation2 + $0x5e0] sm:$0xff]
        %v947 = vld [vmem:[#allocation2 + $0x5e8] sm:$0xff]
        %v948 = vld [vmem:[#allocation2 + $0x5f0] sm:$0xff]
        %v949 = vld [vmem:[#allocation2 + $0x5f8] sm:$0xff]
        %v950 = vld [vmem:[#allocation2 + $0x600] sm:$0xff]
        %v951 = vld [vmem:[#allocation2 + $0x608] sm:$0xff]
        %v952 = vld [vmem:[#allocation2 + $0x610] sm:$0xff]
        %v953 = vld [vmem:[#allocation2 + $0x618] sm:$0xff]
        %v954 = vld [vmem:[#allocation2 + $0x620] sm:$0xff]
        %v955 = vld [vmem:[#allocation2 + $0x628] sm:$0xff]
        %v956 = vld [vmem:[#allocation2 + $0x630] sm:$0xff]
        %v957 = vld [vmem:[#allocation2 + $0x638] sm:$0xff]
        %v958 = vld [vmem:[#allocation2 + $0x640] sm:$0xff]
        %v959 = vld [vmem:[#allocation2 + $0x648] sm:$0xff]
        %v960 = vld [vmem:[#allocation2 + $0x650] sm:$0xff]
        %v961 = vld [vmem:[#allocation2 + $0x658] sm:$0xff]
        %v962 = vld [vmem:[#allocation2 + $0x660] sm:$0xff]
        %v963 = vld [vmem:[#allocation2 + $0x668] sm:$0xff]
        %v964 = vld [vmem:[#allocation2 + $0x670] sm:$0xff]
        %v965 = vld [vmem:[#allocation2 + $0x678] sm:$0xff]
        %v966 = vld [vmem:[#allocation2 + $0x680] sm:$0xff]
        %v967 = vld [vmem:[#allocation2 + $0x688] sm:$0xff]
        %v968 = vld [vmem:[#allocation2 + $0x690] sm:$0xff]
        %v969 = vld [vmem:[#allocation2 + $0x698] sm:$0xff]
        %v970 = vld [vmem:[#allocation2 + $0x6a0] sm:$0xff]
        %v971 = vld [vmem:[#allocation2 + $0x6a8] sm:$0xff]
        %v972 = vld [vmem:[#allocation2 + $0x6b0] sm:$0xff]
        %v973 = vld [vmem:[#allocation2 + $0x6b8] sm:$0xff]
        %v974 = vld [vmem:[#allocation2 + $0x6c0] sm:$0xff]
        %v975 = vld [vmem:[#allocation2 + $0x6c8] sm:$0xff]
        %v976 = vld [vmem:[#allocation2 + $0x6d0] sm:$0xff]
        %v977 = vld [vmem:[#allocation2 + $0x6d8] sm:$0xff]
        %v978 = vld [vmem:[#allocation2 + $0x6e0] sm:$0xff]
        %v979 = vld [vmem:[#allocation2 + $0x6e8] sm:$0xff]
        %v980 = vld [vmem:[#allocation2 + $0x6f0] sm:$0xff]
        %v981 = vld [vmem:[#allocation2 + $0x6f8] sm:$0xff]
        %v982 = vld [vmem:[#allocation4] sm:$0xf]
        %v984 = vlaneseq
        %v985 = vshrl.u32 %v984, 7
        %v986 = vsub.s32 0, %v985
        %v987 = vrot.slane %v982, %v986
        %v988 = vlaneseq
        %v989 = vshrl.u32 %v988, 7
        %v990 = vsub.s32 1, %v989
        %v991 = vrot.slane %v982, %v990
        %v992 = vlaneseq
        %v993 = vshrl.u32 %v992, 7
        %v994 = vsub.s32 2, %v993
        %v995 = vrot.slane %v982, %v994
        %v996 = vlaneseq
        %v997 = vshrl.u32 %v996, 7
        %v998 = vsub.s32 3, %v997
        %v999 = vrot.slane %v982, %v998
        %v1012 = vunpack.c.l.b16 %v750
        %v1013 = vunpack.c.h.b16 %v750
        %v1014 = vunpack.c.l.b16 %v751
        %v1015 = vunpack.c.h.b16 %v751
        %v1016 = vunpack.c.l.b16 %v752
        %v1017 = vunpack.c.h.b16 %v752
        %v1018 = vunpack.c.l.b16 %v753
        %v1019 = vunpack.c.l.b16 %v754
        %v1020 = vunpack.c.h.b16 %v754
        %v1021 = vunpack.c.l.b16 %v755
        %v1022 = vunpack.c.h.b16 %v755
        %v1023 = vunpack.c.l.b16 %v756
        %v1024 = vunpack.c.h.b16 %v756
        %v1025 = vunpack.c.l.b16 %v757
        %v1026 = vpack.c.b16 %v1019, %v1012
        %v1027 = vpack.c.b16 %v1020, %v1013
        %v1028 = vpack.c.b16 %v1021, %v1014
        %v1029 = vpack.c.b16 %v1022, %v1015
        %v1030 = vpack.c.b16 %v1023, %v1016
        %v1031 = vpack.c.b16 %v1024, %v1017
        %v1032 = vpack.c.b16 %v1025, %v1018
        %v1264 = vunpack.c.l.b16 %v758
        %v1265 = vunpack.c.h.b16 %v758
        %v1266 = vunpack.c.l.b16 %v759
        %v1267 = vunpack.c.h.b16 %v759
        %v1268 = vunpack.c.l.b16 %v760
        %v1269 = vunpack.c.h.b16 %v760
        %v1270 = vunpack.c.l.b16 %v761
        %v1271 = vunpack.c.h.b16 %v761
        %v1272 = vunpack.c.l.b16 %v762
        %v1273 = vunpack.c.h.b16 %v762
        %v1274 = vunpack.c.l.b16 %v763
        %v1275 = vunpack.c.h.b16 %v763
        %v1276 = vunpack.c.l.b16 %v764
        %v1277 = vunpack.c.h.b16 %v764
        %v1278 = vunpack.c.l.b16 %v765
        %v1279 = vunpack.c.h.b16 %v765
        %v1280 = vunpack.c.l.b16 %v766
        %v1281 = vunpack.c.h.b16 %v766
        %v1282 = vunpack.c.l.b16 %v767
        %v1283 = vunpack.c.h.b16 %v767
        %v1284 = vunpack.c.l.b16 %v768
        %v1285 = vunpack.c.h.b16 %v768
        %v1286 = vunpack.c.l.b16 %v769
        %v1287 = vunpack.c.h.b16 %v769
        %v1288 = vunpack.c.l.b16 %v770
        %v1289 = vunpack.c.h.b16 %v770
        %v1290 = vunpack.c.l.b16 %v771
        %v1291 = vunpack.c.h.b16 %v771
        %v1292 = vunpack.c.l.b16 %v772
        %v1293 = vunpack.c.h.b16 %v772
        %v1294 = vunpack.c.l.b16 %v773
        %v1295 = vunpack.c.h.b16 %v773
        %v1296 = vunpack.c.l.b16 %v774
        %v1297 = vunpack.c.h.b16 %v774
        %v1298 = vunpack.c.l.b16 %v775
        %v1299 = vunpack.c.h.b16 %v775
        %v1300 = vunpack.c.l.b16 %v776
        %v1301 = vunpack.c.h.b16 %v776
        %v1302 = vunpack.c.l.b16 %v777
        %v1303 = vunpack.c.h.b16 %v777
        %v1304 = vunpack.c.l.b16 %v778
        %v1305 = vunpack.c.h.b16 %v778
        %v1306 = vunpack.c.l.b16 %v779
        %v1307 = vunpack.c.h.b16 %v779
        %v1308 = vunpack.c.l.b16 %v780
        %v1309 = vunpack.c.h.b16 %v780
        %v1310 = vunpack.c.l.b16 %v781
        %v1311 = vunpack.c.h.b16 %v781
        %v1312 = vunpack.c.l.b16 %v782
        %v1313 = vunpack.c.h.b16 %v782
        %v1314 = vunpack.c.l.b16 %v783
        %v1315 = vunpack.c.h.b16 %v783
        %v1316 = vunpack.c.l.b16 %v784
        %v1317 = vunpack.c.h.b16 %v784
        %v1318 = vunpack.c.l.b16 %v785
        %v1319 = vunpack.c.h.b16 %v785
        %v1320 = vunpack.c.l.b16 %v786
        %v1321 = vunpack.c.h.b16 %v786
        %v1322 = vunpack.c.l.b16 %v787
        %v1323 = vunpack.c.h.b16 %v787
        %v1324 = vunpack.c.l.b16 %v788
        %v1325 = vunpack.c.h.b16 %v788
        %v1326 = vunpack.c.l.b16 %v789
        %v1327 = vunpack.c.h.b16 %v789
        %v1328 = vunpack.c.l.b16 %v790
        %v1329 = vunpack.c.h.b16 %v790
        %v1330 = vunpack.c.l.b16 %v791
        %v1331 = vunpack.c.h.b16 %v791
        %v1332 = vunpack.c.l.b16 %v792
        %v1333 = vunpack.c.h.b16 %v792
        %v1334 = vunpack.c.l.b16 %v793
        %v1335 = vunpack.c.h.b16 %v793
        %v1336 = vunpack.c.l.b16 %v794
        %v1337 = vunpack.c.h.b16 %v794
        %v1338 = vunpack.c.l.b16 %v795
        %v1339 = vunpack.c.h.b16 %v795
        %v1340 = vunpack.c.l.b16 %v796
        %v1341 = vunpack.c.h.b16 %v796
        %v1342 = vunpack.c.l.b16 %v797
        %v1343 = vunpack.c.h.b16 %v797
        %v1344 = vunpack.c.l.b16 %v798
        %v1345 = vunpack.c.h.b16 %v798
        %v1346 = vunpack.c.l.b16 %v799
        %v1347 = vunpack.c.h.b16 %v799
        %v1348 = vunpack.c.l.b16 %v800
        %v1349 = vunpack.c.h.b16 %v800
        %v1350 = vunpack.c.l.b16 %v801
        %v1351 = vunpack.c.h.b16 %v801
        %v1352 = vunpack.c.l.b16 %v802
        %v1353 = vunpack.c.h.b16 %v802
        %v1354 = vunpack.c.l.b16 %v803
        %v1355 = vunpack.c.h.b16 %v803
        %v1356 = vunpack.c.l.b16 %v804
        %v1357 = vunpack.c.h.b16 %v804
        %v1358 = vunpack.c.l.b16 %v805
        %v1359 = vunpack.c.h.b16 %v805
        %v1360 = vunpack.c.l.b16 %v806
        %v1361 = vunpack.c.h.b16 %v806
        %v1362 = vunpack.c.l.b16 %v807
        %v1363 = vunpack.c.h.b16 %v807
        %v1364 = vunpack.c.l.b16 %v808
        %v1365 = vunpack.c.h.b16 %v808
        %v1366 = vunpack.c.l.b16 %v809
        %v1367 = vunpack.c.h.b16 %v809
        %v1368 = vunpack.c.l.b16 %v810
        %v1369 = vunpack.c.h.b16 %v810
        %v1370 = vunpack.c.l.b16 %v811
        %v1371 = vunpack.c.h.b16 %v811
        %v1372 = vunpack.c.l.b16 %v812
        %v1373 = vunpack.c.h.b16 %v812
        %v1374 = vunpack.c.l.b16 %v813
        %v1375 = vunpack.c.h.b16 %v813
        %v1376 = vunpack.c.l.b16 %v814
        %v1377 = vunpack.c.h.b16 %v814
        %v1378 = vunpack.c.l.b16 %v815
        %v1379 = vunpack.c.h.b16 %v815
        %v1380 = vunpack.c.l.b16 %v816
        %v1381 = vunpack.c.h.b16 %v816
        %v1382 = vunpack.c.l.b16 %v817
        %v1383 = vunpack.c.h.b16 %v817
        %v1384 = vunpack.c.l.b16 %v818
        %v1385 = vunpack.c.h.b16 %v818
        %v1386 = vunpack.c.l.b16 %v819
        %v1387 = vunpack.c.h.b16 %v819
        %v1388 = vunpack.c.l.b16 %v820
        %v1389 = vunpack.c.h.b16 %v820
        %v1390 = vunpack.c.l.b16 %v821
        %v1391 = vunpack.c.h.b16 %v821
        %v1392 = vunpack.c.l.b16 %v822
        %v1393 = vunpack.c.h.b16 %v822
        %v1394 = vunpack.c.l.b16 %v823
        %v1395 = vunpack.c.h.b16 %v823
        %v1396 = vunpack.c.l.b16 %v824
        %v1397 = vunpack.c.h.b16 %v824
        %v1398 = vunpack.c.l.b16 %v825
        %v1399 = vunpack.c.h.b16 %v825
        %v1400 = vunpack.c.l.b16 %v826
        %v1401 = vunpack.c.h.b16 %v826
        %v1402 = vunpack.c.l.b16 %v827
        %v1403 = vunpack.c.h.b16 %v827
        %v1404 = vunpack.c.l.b16 %v828
        %v1405 = vunpack.c.h.b16 %v828
        %v1406 = vunpack.c.l.b16 %v829
        %v1407 = vunpack.c.h.b16 %v829
        %v1408 = vunpack.c.l.b16 %v830
        %v1409 = vunpack.c.h.b16 %v830
        %v1410 = vunpack.c.l.b16 %v831
        %v1411 = vunpack.c.h.b16 %v831
        %v1412 = vunpack.c.l.b16 %v832
        %v1413 = vunpack.c.h.b16 %v832
        %v1414 = vunpack.c.l.b16 %v833
        %v1415 = vunpack.c.h.b16 %v833
        %v1416 = vunpack.c.l.b16 %v834
        %v1417 = vunpack.c.h.b16 %v834
        %v1418 = vunpack.c.l.b16 %v835
        %v1419 = vunpack.c.h.b16 %v835
        %v1420 = vunpack.c.l.b16 %v836
        %v1421 = vunpack.c.h.b16 %v836
        %v1422 = vunpack.c.l.b16 %v837
        %v1423 = vunpack.c.h.b16 %v837
        %v1424 = vunpack.c.l.b16 %v838
        %v1425 = vunpack.c.h.b16 %v838
        %v1426 = vunpack.c.l.b16 %v839
        %v1427 = vunpack.c.h.b16 %v839
        %v1428 = vunpack.c.l.b16 %v840
        %v1429 = vunpack.c.h.b16 %v840
        %v1430 = vunpack.c.l.b16 %v841
        %v1431 = vunpack.c.h.b16 %v841
        %v1432 = vunpack.c.l.b16 %v842
        %v1433 = vunpack.c.h.b16 %v842
        %v1434 = vunpack.c.l.b16 %v843
        %v1435 = vunpack.c.h.b16 %v843
        %v1436 = vunpack.c.l.b16 %v844
        %v1437 = vunpack.c.h.b16 %v844
        %v1438 = vunpack.c.l.b16 %v845
        %v1439 = vunpack.c.h.b16 %v845
        %v1440 = vunpack.c.l.b16 %v846
        %v1441 = vunpack.c.h.b16 %v846
        %v1442 = vunpack.c.l.b16 %v847
        %v1443 = vunpack.c.h.b16 %v847
        %v1444 = vunpack.c.l.b16 %v848
        %v1445 = vunpack.c.h.b16 %v848
        %v1446 = vunpack.c.l.b16 %v849
        %v1447 = vunpack.c.h.b16 %v849
        %v1448 = vunpack.c.l.b16 %v850
        %v1449 = vunpack.c.h.b16 %v850
        %v1450 = vunpack.c.l.b16 %v851
        %v1451 = vunpack.c.h.b16 %v851
        %v1452 = vunpack.c.l.b16 %v852
        %v1453 = vunpack.c.h.b16 %v852
        %v1454 = vunpack.c.l.b16 %v853
        %v1455 = vunpack.c.h.b16 %v853
        %v1456 = vunpack.c.l.b16 %v854
        %v1457 = vunpack.c.h.b16 %v854
        %v1458 = vunpack.c.l.b16 %v855
        %v1459 = vunpack.c.h.b16 %v855
        %v1460 = vunpack.c.l.b16 %v856
        %v1461 = vunpack.c.h.b16 %v856
        %v1462 = vunpack.c.l.b16 %v857
        %v1463 = vunpack.c.h.b16 %v857
        %v1464 = vunpack.c.l.b16 %v858
        %v1465 = vunpack.c.h.b16 %v858
        %v1466 = vunpack.c.l.b16 %v859
        %v1467 = vunpack.c.h.b16 %v859
        %v1468 = vunpack.c.l.b16 %v860
        %v1469 = vunpack.c.h.b16 %v860
        %v1470 = vunpack.c.l.b16 %v861
        %v1471 = vunpack.c.h.b16 %v861
        %v1472 = vunpack.c.l.b16 %v862
        %v1473 = vunpack.c.h.b16 %v862
        %v1474 = vunpack.c.l.b16 %v863
        %v1475 = vunpack.c.h.b16 %v863
        %v1476 = vunpack.c.l.b16 %v864
        %v1477 = vunpack.c.h.b16 %v864
        %v1478 = vunpack.c.l.b16 %v865
        %v1479 = vunpack.c.h.b16 %v865
        %v1480 = vunpack.c.l.b16 %v866
        %v1481 = vunpack.c.h.b16 %v866
        %v1482 = vunpack.c.l.b16 %v867
        %v1483 = vunpack.c.h.b16 %v867
        %v1484 = vunpack.c.l.b16 %v868
        %v1485 = vunpack.c.h.b16 %v868
        %v1486 = vunpack.c.l.b16 %v869
        %v1487 = vunpack.c.h.b16 %v869
        %v1488 = vunpack.c.l.b16 %v870
        %v1489 = vunpack.c.h.b16 %v870
        %v1490 = vunpack.c.l.b16 %v871
        %v1491 = vunpack.c.h.b16 %v871
        %v1492 = vunpack.c.l.b16 %v872
        %v1493 = vunpack.c.h.b16 %v872
        %v1494 = vunpack.c.l.b16 %v873
        %v1495 = vunpack.c.h.b16 %v873
        %v1496 = vunpack.c.l.b16 %v874
        %v1497 = vunpack.c.h.b16 %v874
        %v1498 = vunpack.c.l.b16 %v875
        %v1499 = vunpack.c.h.b16 %v875
        %v1500 = vunpack.c.l.b16 %v876
        %v1501 = vunpack.c.h.b16 %v876
        %v1502 = vunpack.c.l.b16 %v877
        %v1503 = vunpack.c.h.b16 %v877
        %v1504 = vunpack.c.l.b16 %v878
        %v1505 = vunpack.c.h.b16 %v878
        %v1506 = vunpack.c.l.b16 %v879
        %v1507 = vunpack.c.h.b16 %v879
        %v1508 = vunpack.c.l.b16 %v880
        %v1509 = vunpack.c.h.b16 %v880
        %v1510 = vunpack.c.l.b16 %v881
        %v1511 = vunpack.c.h.b16 %v881
        %v1512 = vunpack.c.l.b16 %v882
        %v1513 = vunpack.c.h.b16 %v882
        %v1514 = vunpack.c.l.b16 %v883
        %v1515 = vunpack.c.h.b16 %v883
        %v1516 = vunpack.c.l.b16 %v884
        %v1517 = vunpack.c.h.b16 %v884
        %v1518 = vunpack.c.l.b16 %v885
        %v1519 = vunpack.c.h.b16 %v885
        %v1520 = vunpack.c.l.b16 %v886
        %v1521 = vunpack.c.h.b16 %v886
        %v1522 = vunpack.c.l.b16 %v887
        %v1523 = vunpack.c.h.b16 %v887
        %v1524 = vunpack.c.l.b16 %v888
        %v1525 = vunpack.c.h.b16 %v888
        %v1526 = vunpack.c.l.b16 %v889
        %v1527 = vunpack.c.h.b16 %v889
        %v1528 = vunpack.c.l.b16 %v890
        %v1529 = vunpack.c.h.b16 %v890
        %v1530 = vunpack.c.l.b16 %v891
        %v1531 = vunpack.c.h.b16 %v891
        %v1532 = vunpack.c.l.b16 %v892
        %v1533 = vunpack.c.h.b16 %v892
        %v1534 = vunpack.c.l.b16 %v893
        %v1535 = vunpack.c.h.b16 %v893
        %v1536 = vunpack.c.l.b16 %v894
        %v1537 = vunpack.c.h.b16 %v894
        %v1538 = vunpack.c.l.b16 %v895
        %v1539 = vunpack.c.h.b16 %v895
        %v1540 = vunpack.c.l.b16 %v896
        %v1541 = vunpack.c.h.b16 %v896
        %v1542 = vunpack.c.l.b16 %v897
        %v1543 = vunpack.c.h.b16 %v897
        %v1544 = vunpack.c.l.b16 %v898
        %v1545 = vunpack.c.h.b16 %v898
        %v1546 = vunpack.c.l.b16 %v899
        %v1547 = vunpack.c.h.b16 %v899
        %v1548 = vunpack.c.l.b16 %v900
        %v1549 = vunpack.c.h.b16 %v900
        %v1550 = vunpack.c.l.b16 %v901
        %v1551 = vunpack.c.h.b16 %v901
        %v1552 = vunpack.c.l.b16 %v902
        %v1553 = vunpack.c.h.b16 %v902
        %v1554 = vunpack.c.l.b16 %v903
        %v1555 = vunpack.c.h.b16 %v903
        %v1556 = vunpack.c.l.b16 %v904
        %v1557 = vunpack.c.h.b16 %v904
        %v1558 = vunpack.c.l.b16 %v905
        %v1559 = vunpack.c.h.b16 %v905
        %v1560 = vunpack.c.l.b16 %v906
        %v1561 = vunpack.c.h.b16 %v906
        %v1562 = vunpack.c.l.b16 %v907
        %v1563 = vunpack.c.h.b16 %v907
        %v1564 = vunpack.c.l.b16 %v908
        %v1565 = vunpack.c.h.b16 %v908
        %v1566 = vunpack.c.l.b16 %v909
        %v1567 = vunpack.c.h.b16 %v909
        %v1568 = vunpack.c.l.b16 %v910
        %v1569 = vunpack.c.h.b16 %v910
        %v1570 = vunpack.c.l.b16 %v911
        %v1571 = vunpack.c.h.b16 %v911
        %v1572 = vunpack.c.l.b16 %v912
        %v1573 = vunpack.c.h.b16 %v912
        %v1574 = vunpack.c.l.b16 %v913
        %v1575 = vunpack.c.h.b16 %v913
        %v1576 = vunpack.c.l.b16 %v914
        %v1577 = vunpack.c.h.b16 %v914
        %v1578 = vunpack.c.l.b16 %v915
        %v1579 = vunpack.c.h.b16 %v915
        %v1580 = vunpack.c.l.b16 %v916
        %v1581 = vunpack.c.h.b16 %v916
        %v1582 = vunpack.c.l.b16 %v917
        %v1583 = vunpack.c.h.b16 %v917
        %v1584 = vunpack.c.l.b16 %v918
        %v1585 = vunpack.c.h.b16 %v918
        %v1586 = vunpack.c.l.b16 %v919
        %v1587 = vunpack.c.h.b16 %v919
        %v1588 = vunpack.c.l.b16 %v920
        %v1589 = vunpack.c.h.b16 %v920
        %v1590 = vunpack.c.l.b16 %v921
        %v1591 = vunpack.c.h.b16 %v921
        %v1592 = vunpack.c.l.b16 %v922
        %v1593 = vunpack.c.h.b16 %v922
        %v1594 = vunpack.c.l.b16 %v923
        %v1595 = vunpack.c.h.b16 %v923
        %v1596 = vunpack.c.l.b16 %v924
        %v1597 = vunpack.c.h.b16 %v924
        %v1598 = vunpack.c.l.b16 %v925
        %v1599 = vunpack.c.h.b16 %v925
        %v1600 = vunpack.c.l.b16 %v926
        %v1601 = vunpack.c.h.b16 %v926
        %v1602 = vunpack.c.l.b16 %v927
        %v1603 = vunpack.c.h.b16 %v927
        %v1604 = vunpack.c.l.b16 %v928
        %v1605 = vunpack.c.h.b16 %v928
        %v1606 = vunpack.c.l.b16 %v929
        %v1607 = vunpack.c.h.b16 %v929
        %v1608 = vunpack.c.l.b16 %v930
        %v1609 = vunpack.c.h.b16 %v930
        %v1610 = vunpack.c.l.b16 %v931
        %v1611 = vunpack.c.h.b16 %v931
        %v1612 = vunpack.c.l.b16 %v932
        %v1613 = vunpack.c.h.b16 %v932
        %v1614 = vunpack.c.l.b16 %v933
        %v1615 = vunpack.c.h.b16 %v933
        %v1616 = vunpack.c.l.b16 %v934
        %v1617 = vunpack.c.h.b16 %v934
        %v1618 = vunpack.c.l.b16 %v935
        %v1619 = vunpack.c.h.b16 %v935
        %v1620 = vunpack.c.l.b16 %v936
        %v1621 = vunpack.c.h.b16 %v936
        %v1622 = vunpack.c.l.b16 %v937
        %v1623 = vunpack.c.h.b16 %v937
        %v1624 = vunpack.c.l.b16 %v938
        %v1625 = vunpack.c.h.b16 %v938
        %v1626 = vunpack.c.l.b16 %v939
        %v1627 = vunpack.c.h.b16 %v939
        %v1628 = vunpack.c.l.b16 %v940
        %v1629 = vunpack.c.h.b16 %v940
        %v1630 = vunpack.c.l.b16 %v941
        %v1631 = vunpack.c.h.b16 %v941
        %v1632 = vunpack.c.l.b16 %v942
        %v1633 = vunpack.c.h.b16 %v942
        %v1634 = vunpack.c.l.b16 %v943
        %v1635 = vunpack.c.h.b16 %v943
        %v1636 = vunpack.c.l.b16 %v944
        %v1637 = vunpack.c.h.b16 %v944
        %v1638 = vunpack.c.l.b16 %v945
        %v1639 = vunpack.c.h.b16 %v945
        %v1640 = vunpack.c.l.b16 %v946
        %v1641 = vunpack.c.h.b16 %v946
        %v1642 = vunpack.c.l.b16 %v947
        %v1643 = vunpack.c.h.b16 %v947
        %v1644 = vunpack.c.l.b16 %v948
        %v1645 = vunpack.c.h.b16 %v948
        %v1646 = vunpack.c.l.b16 %v949
        %v1647 = vunpack.c.h.b16 %v949
        %v1648 = vunpack.c.l.b16 %v950
        %v1649 = vunpack.c.h.b16 %v950
        %v1650 = vunpack.c.l.b16 %v951
        %v1651 = vunpack.c.h.b16 %v951
        %v1652 = vunpack.c.l.b16 %v952
        %v1653 = vunpack.c.h.b16 %v952
        %v1654 = vunpack.c.l.b16 %v953
        %v1655 = vunpack.c.h.b16 %v953
        %v1656 = vunpack.c.l.b16 %v954
        %v1657 = vunpack.c.h.b16 %v954
        %v1658 = vunpack.c.l.b16 %v955
        %v1659 = vunpack.c.h.b16 %v955
        %v1660 = vunpack.c.l.b16 %v956
        %v1661 = vunpack.c.h.b16 %v956
        %v1662 = vunpack.c.l.b16 %v957
        %v1663 = vunpack.c.h.b16 %v957
        %v1664 = vunpack.c.l.b16 %v958
        %v1665 = vunpack.c.h.b16 %v958
        %v1666 = vunpack.c.l.b16 %v959
        %v1667 = vunpack.c.h.b16 %v959
        %v1668 = vunpack.c.l.b16 %v960
        %v1669 = vunpack.c.h.b16 %v960
        %v1670 = vunpack.c.l.b16 %v961
        %v1671 = vunpack.c.h.b16 %v961
        %v1672 = vunpack.c.l.b16 %v962
        %v1673 = vunpack.c.h.b16 %v962
        %v1674 = vunpack.c.l.b16 %v963
        %v1675 = vunpack.c.h.b16 %v963
        %v1676 = vunpack.c.l.b16 %v964
        %v1677 = vunpack.c.h.b16 %v964
        %v1678 = vunpack.c.l.b16 %v965
        %v1679 = vunpack.c.h.b16 %v965
        %v1680 = vunpack.c.l.b16 %v966
        %v1681 = vunpack.c.h.b16 %v966
        %v1682 = vunpack.c.l.b16 %v967
        %v1683 = vunpack.c.h.b16 %v967
        %v1684 = vunpack.c.l.b16 %v968
        %v1685 = vunpack.c.h.b16 %v968
        %v1686 = vunpack.c.l.b16 %v969
        %v1687 = vunpack.c.h.b16 %v969
        %v1688 = vunpack.c.l.b16 %v970
        %v1689 = vunpack.c.h.b16 %v970
        %v1690 = vunpack.c.l.b16 %v971
        %v1691 = vunpack.c.h.b16 %v971
        %v1692 = vunpack.c.l.b16 %v972
        %v1693 = vunpack.c.h.b16 %v972
        %v1694 = vunpack.c.l.b16 %v973
        %v1695 = vunpack.c.h.b16 %v973
        %v1696 = vunpack.c.l.b16 %v974
        %v1697 = vunpack.c.h.b16 %v974
        %v1698 = vunpack.c.l.b16 %v975
        %v1699 = vunpack.c.h.b16 %v975
        %v1700 = vunpack.c.l.b16 %v976
        %v1701 = vunpack.c.h.b16 %v976
        %v1702 = vunpack.c.l.b16 %v977
        %v1703 = vunpack.c.h.b16 %v977
        %v1704 = vunpack.c.l.b16 %v978
        %v1705 = vunpack.c.h.b16 %v978
        %v1706 = vunpack.c.l.b16 %v979
        %v1707 = vunpack.c.h.b16 %v979
        %v1708 = vunpack.c.l.b16 %v980
        %v1709 = vunpack.c.h.b16 %v980
        %v1710 = vunpack.c.l.b16 %v981
        %v1711 = vunpack.c.h.b16 %v981
        %v1712 = vpack.c.b16 %v1268, %v1264
        %v1713 = vpack.c.b16 %v1269, %v1265
        %v1714 = vpack.c.b16 %v1270, %v1266
        %v1715 = vpack.c.b16 %v1271, %v1267
        %v1716 = vpack.c.b16 %v1276, %v1272
        %v1717 = vpack.c.b16 %v1277, %v1273
        %v1718 = vpack.c.b16 %v1278, %v1274
        %v1719 = vpack.c.b16 %v1279, %v1275
        %v1720 = vpack.c.b16 %v1284, %v1280
        %v1721 = vpack.c.b16 %v1285, %v1281
        %v1722 = vpack.c.b16 %v1286, %v1282
        %v1723 = vpack.c.b16 %v1287, %v1283
        %v1724 = vpack.c.b16 %v1292, %v1288
        %v1725 = vpack.c.b16 %v1293, %v1289
        %v1726 = vpack.c.b16 %v1294, %v1290
        %v1727 = vpack.c.b16 %v1295, %v1291
        %v1728 = vpack.c.b16 %v1300, %v1296
        %v1729 = vpack.c.b16 %v1301, %v1297
        %v1730 = vpack.c.b16 %v1302, %v1298
        %v1731 = vpack.c.b16 %v1303, %v1299
        %v1732 = vpack.c.b16 %v1308, %v1304
        %v1733 = vpack.c.b16 %v1309, %v1305
        %v1734 = vpack.c.b16 %v1310, %v1306
        %v1735 = vpack.c.b16 %v1311, %v1307
        %v1736 = vpack.c.b16 %v1316, %v1312
        %v1737 = vpack.c.b16 %v1317, %v1313
        %v1738 = vpack.c.b16 %v1318, %v1314
        %v1739 = vpack.c.b16 %v1319, %v1315
        %v1740 = vpack.c.b16 %v1324, %v1320
        %v1741 = vpack.c.b16 %v1325, %v1321
        %v1742 = vpack.c.b16 %v1326, %v1322
        %v1743 = vpack.c.b16 %v1327, %v1323
        %v1744 = vpack.c.b16 %v1332, %v1328
        %v1745 = vpack.c.b16 %v1333, %v1329
        %v1746 = vpack.c.b16 %v1334, %v1330
        %v1747 = vpack.c.b16 %v1335, %v1331
        %v1748 = vpack.c.b16 %v1340, %v1336
        %v1749 = vpack.c.b16 %v1341, %v1337
        %v1750 = vpack.c.b16 %v1342, %v1338
        %v1751 = vpack.c.b16 %v1343, %v1339
        %v1752 = vpack.c.b16 %v1348, %v1344
        %v1753 = vpack.c.b16 %v1349, %v1345
        %v1754 = vpack.c.b16 %v1350, %v1346
        %v1755 = vpack.c.b16 %v1351, %v1347
        %v1756 = vpack.c.b16 %v1356, %v1352
        %v1757 = vpack.c.b16 %v1357, %v1353
        %v1758 = vpack.c.b16 %v1358, %v1354
        %v1759 = vpack.c.b16 %v1359, %v1355
        %v1760 = vpack.c.b16 %v1364, %v1360
        %v1761 = vpack.c.b16 %v1365, %v1361
        %v1762 = vpack.c.b16 %v1366, %v1362
        %v1763 = vpack.c.b16 %v1367, %v1363
        %v1764 = vpack.c.b16 %v1372, %v1368
        %v1765 = vpack.c.b16 %v1373, %v1369
        %v1766 = vpack.c.b16 %v1374, %v1370
        %v1767 = vpack.c.b16 %v1375, %v1371
        %v1768 = vpack.c.b16 %v1380, %v1376
        %v1769 = vpack.c.b16 %v1381, %v1377
        %v1770 = vpack.c.b16 %v1382, %v1378
        %v1771 = vpack.c.b16 %v1383, %v1379
        %v1772 = vpack.c.b16 %v1388, %v1384
        %v1773 = vpack.c.b16 %v1389, %v1385
        %v1774 = vpack.c.b16 %v1390, %v1386
        %v1775 = vpack.c.b16 %v1391, %v1387
        %v1776 = vpack.c.b16 %v1396, %v1392
        %v1777 = vpack.c.b16 %v1397, %v1393
        %v1778 = vpack.c.b16 %v1398, %v1394
        %v1779 = vpack.c.b16 %v1399, %v1395
        %v1780 = vpack.c.b16 %v1404, %v1400
        %v1781 = vpack.c.b16 %v1405, %v1401
        %v1782 = vpack.c.b16 %v1406, %v1402
        %v1783 = vpack.c.b16 %v1407, %v1403
        %v1784 = vpack.c.b16 %v1412, %v1408
        %v1785 = vpack.c.b16 %v1413, %v1409
        %v1786 = vpack.c.b16 %v1414, %v1410
        %v1787 = vpack.c.b16 %v1415, %v1411
        %v1788 = vpack.c.b16 %v1420, %v1416
        %v1789 = vpack.c.b16 %v1421, %v1417
        %v1790 = vpack.c.b16 %v1422, %v1418
        %v1791 = vpack.c.b16 %v1423, %v1419
        %v1792 = vpack.c.b16 %v1428, %v1424
        %v1793 = vpack.c.b16 %v1429, %v1425
        %v1794 = vpack.c.b16 %v1430, %v1426
        %v1795 = vpack.c.b16 %v1431, %v1427
        %v1796 = vpack.c.b16 %v1436, %v1432
        %v1797 = vpack.c.b16 %v1437, %v1433
        %v1798 = vpack.c.b16 %v1438, %v1434
        %v1799 = vpack.c.b16 %v1439, %v1435
        %v1800 = vpack.c.b16 %v1444, %v1440
        %v1801 = vpack.c.b16 %v1445, %v1441
        %v1802 = vpack.c.b16 %v1446, %v1442
        %v1803 = vpack.c.b16 %v1447, %v1443
        %v1804 = vpack.c.b16 %v1452, %v1448
        %v1805 = vpack.c.b16 %v1453, %v1449
        %v1806 = vpack.c.b16 %v1454, %v1450
        %v1807 = vpack.c.b16 %v1455, %v1451
        %v1808 = vpack.c.b16 %v1460, %v1456
        %v1809 = vpack.c.b16 %v1461, %v1457
        %v1810 = vpack.c.b16 %v1462, %v1458
        %v1811 = vpack.c.b16 %v1463, %v1459
        %v1812 = vpack.c.b16 %v1468, %v1464
        %v1813 = vpack.c.b16 %v1469, %v1465
        %v1814 = vpack.c.b16 %v1470, %v1466
        %v1815 = vpack.c.b16 %v1471, %v1467
        %v1816 = vpack.c.b16 %v1476, %v1472
        %v1817 = vpack.c.b16 %v1477, %v1473
        %v1818 = vpack.c.b16 %v1478, %v1474
        %v1819 = vpack.c.b16 %v1479, %v1475
        %v1820 = vpack.c.b16 %v1484, %v1480
        %v1821 = vpack.c.b16 %v1485, %v1481
        %v1822 = vpack.c.b16 %v1486, %v1482
        %v1823 = vpack.c.b16 %v1487, %v1483
        %v1824 = vpack.c.b16 %v1492, %v1488
        %v1825 = vpack.c.b16 %v1493, %v1489
        %v1826 = vpack.c.b16 %v1494, %v1490
        %v1827 = vpack.c.b16 %v1495, %v1491
        %v1828 = vpack.c.b16 %v1500, %v1496
        %v1829 = vpack.c.b16 %v1501, %v1497
        %v1830 = vpack.c.b16 %v1502, %v1498
        %v1831 = vpack.c.b16 %v1503, %v1499
        %v1832 = vpack.c.b16 %v1508, %v1504
        %v1833 = vpack.c.b16 %v1509, %v1505
        %v1834 = vpack.c.b16 %v1510, %v1506
        %v1835 = vpack.c.b16 %v1511, %v1507
        %v1836 = vpack.c.b16 %v1516, %v1512
        %v1837 = vpack.c.b16 %v1517, %v1513
        %v1838 = vpack.c.b16 %v1518, %v1514
        %v1839 = vpack.c.b16 %v1519, %v1515
        %v1840 = vpack.c.b16 %v1524, %v1520
        %v1841 = vpack.c.b16 %v1525, %v1521
        %v1842 = vpack.c.b16 %v1526, %v1522
        %v1843 = vpack.c.b16 %v1527, %v1523
        %v1844 = vpack.c.b16 %v1532, %v1528
        %v1845 = vpack.c.b16 %v1533, %v1529
        %v1846 = vpack.c.b16 %v1534, %v1530
        %v1847 = vpack.c.b16 %v1535, %v1531
        %v1848 = vpack.c.b16 %v1540, %v1536
        %v1849 = vpack.c.b16 %v1541, %v1537
        %v1850 = vpack.c.b16 %v1542, %v1538
        %v1851 = vpack.c.b16 %v1543, %v1539
        %v1852 = vpack.c.b16 %v1548, %v1544
        %v1853 = vpack.c.b16 %v1549, %v1545
        %v1854 = vpack.c.b16 %v1550, %v1546
        %v1855 = vpack.c.b16 %v1551, %v1547
        %v1856 = vpack.c.b16 %v1556, %v1552
        %v1857 = vpack.c.b16 %v1557, %v1553
        %v1858 = vpack.c.b16 %v1558, %v1554
        %v1859 = vpack.c.b16 %v1559, %v1555
        %v1860 = vpack.c.b16 %v1564, %v1560
        %v1861 = vpack.c.b16 %v1565, %v1561
        %v1862 = vpack.c.b16 %v1566, %v1562
        %v1863 = vpack.c.b16 %v1567, %v1563
        %v1864 = vpack.c.b16 %v1572, %v1568
        %v1865 = vpack.c.b16 %v1573, %v1569
        %v1866 = vpack.c.b16 %v1574, %v1570
        %v1867 = vpack.c.b16 %v1575, %v1571
        %v1868 = vpack.c.b16 %v1580, %v1576
        %v1869 = vpack.c.b16 %v1581, %v1577
        %v1870 = vpack.c.b16 %v1582, %v1578
        %v1871 = vpack.c.b16 %v1583, %v1579
        %v1872 = vpack.c.b16 %v1588, %v1584
        %v1873 = vpack.c.b16 %v1589, %v1585
        %v1874 = vpack.c.b16 %v1590, %v1586
        %v1875 = vpack.c.b16 %v1591, %v1587
        %v1876 = vpack.c.b16 %v1596, %v1592
        %v1877 = vpack.c.b16 %v1597, %v1593
        %v1878 = vpack.c.b16 %v1598, %v1594
        %v1879 = vpack.c.b16 %v1599, %v1595
        %v1880 = vpack.c.b16 %v1604, %v1600
        %v1881 = vpack.c.b16 %v1605, %v1601
        %v1882 = vpack.c.b16 %v1606, %v1602
        %v1883 = vpack.c.b16 %v1607, %v1603
        %v1884 = vpack.c.b16 %v1612, %v1608
        %v1885 = vpack.c.b16 %v1613, %v1609
        %v1886 = vpack.c.b16 %v1614, %v1610
        %v1887 = vpack.c.b16 %v1615, %v1611
        %v1888 = vpack.c.b16 %v1620, %v1616
        %v1889 = vpack.c.b16 %v1621, %v1617
        %v1890 = vpack.c.b16 %v1622, %v1618
        %v1891 = vpack.c.b16 %v1623, %v1619
        %v1892 = vpack.c.b16 %v1628, %v1624
        %v1893 = vpack.c.b16 %v1629, %v1625
        %v1894 = vpack.c.b16 %v1630, %v1626
        %v1895 = vpack.c.b16 %v1631, %v1627
        %v1896 = vpack.c.b16 %v1636, %v1632
        %v1897 = vpack.c.b16 %v1637, %v1633
        %v1898 = vpack.c.b16 %v1638, %v1634
        %v1899 = vpack.c.b16 %v1639, %v1635
        %v1900 = vpack.c.b16 %v1644, %v1640
        %v1901 = vpack.c.b16 %v1645, %v1641
        %v1902 = vpack.c.b16 %v1646, %v1642
        %v1903 = vpack.c.b16 %v1647, %v1643
        %v1904 = vpack.c.b16 %v1652, %v1648
        %v1905 = vpack.c.b16 %v1653, %v1649
        %v1906 = vpack.c.b16 %v1654, %v1650
        %v1907 = vpack.c.b16 %v1655, %v1651
        %v1908 = vpack.c.b16 %v1660, %v1656
        %v1909 = vpack.c.b16 %v1661, %v1657
        %v1910 = vpack.c.b16 %v1662, %v1658
        %v1911 = vpack.c.b16 %v1663, %v1659
        %v1912 = vpack.c.b16 %v1668, %v1664
        %v1913 = vpack.c.b16 %v1669, %v1665
        %v1914 = vpack.c.b16 %v1670, %v1666
        %v1915 = vpack.c.b16 %v1671, %v1667
        %v1916 = vpack.c.b16 %v1676, %v1672
        %v1917 = vpack.c.b16 %v1677, %v1673
        %v1918 = vpack.c.b16 %v1678, %v1674
        %v1919 = vpack.c.b16 %v1679, %v1675
        %v1920 = vpack.c.b16 %v1684, %v1680
        %v1921 = vpack.c.b16 %v1685, %v1681
        %v1922 = vpack.c.b16 %v1686, %v1682
        %v1923 = vpack.c.b16 %v1687, %v1683
        %v1924 = vpack.c.b16 %v1692, %v1688
        %v1925 = vpack.c.b16 %v1693, %v1689
        %v1926 = vpack.c.b16 %v1694, %v1690
        %v1927 = vpack.c.b16 %v1695, %v1691
        %v1928 = vpack.c.b16 %v1700, %v1696
        %v1929 = vpack.c.b16 %v1701, %v1697
        %v1930 = vpack.c.b16 %v1702, %v1698
        %v1931 = vpack.c.b16 %v1703, %v1699
        %v1932 = vpack.c.b16 %v1708, %v1704
        %v1933 = vpack.c.b16 %v1709, %v1705
        %v1934 = vpack.c.b16 %v1710, %v1706
        %v1935 = vpack.c.b16 %v1711, %v1707
        %2160 = vmatprep.subr.bf16.mxu0 %v1713
        %2161 = vmatpush1.bf16.msra.mxu0 %v1712
        %2162 = vmatprep.subr.bf16.mxu0 %v1717
        %2163 = vmatpush1.bf16.msra.mxu0 %v1716
        %2164 = vmatprep.subr.bf16.mxu0 %v1721
        %2165 = vmatpush1.bf16.msra.mxu0 %v1720
        %2166 = vmatprep.subr.bf16.mxu0 %v1725
        %2167 = vmatpush1.bf16.msra.mxu0 %v1724
        %2168 = vmatprep.subr.bf16.mxu0 %v1729
        %2169 = vmatpush1.bf16.msra.mxu0 %v1728
        %2170 = vmatprep.subr.bf16.mxu0 %v1733
        %2171 = vmatpush1.bf16.msra.mxu0 %v1732
        %2172 = vmatprep.subr.bf16.mxu0 %v1737
        %2173 = vmatpush1.bf16.msra.mxu0 %v1736
        %2174 = vmatprep.subr.bf16.mxu0 %v1741
        %2175 = vmatpush1.bf16.msra.mxu0 %v1740
        %2176 = vmatprep.subr.bf16.mxu0 %v1745
        %2177 = vmatpush1.bf16.msra.mxu0 %v1744
        %2178 = vmatprep.subr.bf16.mxu0 %v1749
        %2179 = vmatpush1.bf16.msra.mxu0 %v1748
        %2180 = vmatprep.subr.bf16.mxu0 %v1753
        %2181 = vmatpush1.bf16.msra.mxu0 %v1752
        %2182 = vmatprep.subr.bf16.mxu0 %v1757
        %2183 = vmatpush1.bf16.msra.mxu0 %v1756
        %2184 = vmatprep.subr.bf16.mxu0 %v1761
        %2185 = vmatpush1.bf16.msra.mxu0 %v1760
        %2186 = vmatprep.subr.bf16.mxu0 %v1765
        %2187 = vmatpush1.bf16.msra.mxu0 %v1764
        %2188 = vmatprep.subr.bf16.mxu0 %v1769
        %2189 = vmatpush1.bf16.msra.mxu0 %v1768
        %2190 = vmatprep.subr.bf16.mxu0 %v1773
        %2191 = vmatpush1.bf16.msra.mxu0 %v1772
        %2192 = vmatprep.mubr.bf16.mxu0 %v1027
        %2193 = vmatmul.mubr.bf16.gmra.mrb[0].mxu0 %v1026
        %v2194 = vpop.f32.mrb[0].mxu0
        %v2195 = vadd.f32 %v987, %v2194
        %v2196 = vpop.f32.mrb[0].mxu0
        %v2197 = vadd.f32 %v991, %v2196
        %v2198 = vpop.f32.mrb[0].mxu0
        %v2199 = vadd.f32 %v987, %v2198
        %v2200 = vpop.f32.mrb[0].mxu0
        %v2201 = vadd.f32 %v991, %v2200
        %2202 = vdwg.mxu0
        %2203 = vmatprep.subr.bf16.mxu0 %v1777
        %2204 = vmatpush1.bf16.msra.mxu0 %v1776
        %2205 = vmatprep.subr.bf16.mxu0 %v1781
        %2206 = vmatpush1.bf16.msra.mxu0 %v1780
        %2207 = vmatprep.subr.bf16.mxu0 %v1785
        %2208 = vmatpush1.bf16.msra.mxu0 %v1784
        %2209 = vmatprep.subr.bf16.mxu0 %v1789
        %2210 = vmatpush1.bf16.msra.mxu0 %v1788
        %2211 = vmatprep.subr.bf16.mxu0 %v1793
        %2212 = vmatpush1.bf16.msra.mxu0 %v1792
        %2213 = vmatprep.subr.bf16.mxu0 %v1797
        %2214 = vmatpush1.bf16.msra.mxu0 %v1796
        %2215 = vmatprep.subr.bf16.mxu0 %v1801
        %2216 = vmatpush1.bf16.msra.mxu0 %v1800
        %2217 = vmatprep.subr.bf16.mxu0 %v1805
        %2218 = vmatpush1.bf16.msra.mxu0 %v1804
        %2219 = vmatprep.subr.bf16.mxu0 %v1809
        %2220 = vmatpush1.bf16.msra.mxu0 %v1808
        %2221 = vmatprep.subr.bf16.mxu0 %v1813
        %2222 = vmatpush1.bf16.msra.mxu0 %v1812
        %2223 = vmatprep.subr.bf16.mxu0 %v1817
        %2224 = vmatpush1.bf16.msra.mxu0 %v1816
        %2225 = vmatprep.subr.bf16.mxu0 %v1821
        %2226 = vmatpush1.bf16.msra.mxu0 %v1820
        %2227 = vmatprep.subr.bf16.mxu0 %v1825
        %2228 = vmatpush1.bf16.msra.mxu0 %v1824
        %2229 = vmatprep.subr.bf16.mxu0 %v1829
        %2230 = vmatpush1.bf16.msra.mxu0 %v1828
        %2231 = vmatprep.subr.bf16.mxu0 %v1833
        %2232 = vmatpush1.bf16.msra.mxu0 %v1832
        %2233 = vmatprep.subr.bf16.mxu0 %v1837
        %2234 = vmatpush1.bf16.msra.mxu0 %v1836
        %2235 = vmatprep.mubr.bf16.mxu0 %v1029
        %2236 = vmatmul.mubr.bf16.gmra.mrb[0].mxu0 %v1028
        %v2237 = vpop.f32.mrb[0].mxu0
        %v2238 = vadd.f32 %v2195, %v2237
        %v2239 = vpop.f32.mrb[0].mxu0
        %v2240 = vadd.f32 %v2197, %v2239
        %v2241 = vpop.f32.mrb[0].mxu0
        %v2242 = vadd.f32 %v2199, %v2241
        %v2243 = vpop.f32.mrb[0].mxu0
        %v2244 = vadd.f32 %v2201, %v2243
        %2245 = vdwg.mxu0
        %2246 = vmatprep.subr.bf16.mxu0 %v1841
        %2247 = vmatpush1.bf16.msra.mxu0 %v1840
        %2248 = vmatprep.subr.bf16.mxu0 %v1845
        %2249 = vmatpush1.bf16.msra.mxu0 %v1844
        %2250 = vmatprep.subr.bf16.mxu0 %v1849
        %2251 = vmatpush1.bf16.msra.mxu0 %v1848
        %2252 = vmatprep.subr.bf16.mxu0 %v1853
        %2253 = vmatpush1.bf16.msra.mxu0 %v1852
        %2254 = vmatprep.subr.bf16.mxu0 %v1857
        %2255 = vmatpush1.bf16.msra.mxu0 %v1856
        %2256 = vmatprep.subr.bf16.mxu0 %v1861
        %2257 = vmatpush1.bf16.msra.mxu0 %v1860
        %2258 = vmatprep.subr.bf16.mxu0 %v1865
        %2259 = vmatpush1.bf16.msra.mxu0 %v1864
        %2260 = vmatprep.subr.bf16.mxu0 %v1869
        %2261 = vmatpush1.bf16.msra.mxu0 %v1868
        %2262 = vmatprep.subr.bf16.mxu0 %v1873
        %2263 = vmatpush1.bf16.msra.mxu0 %v1872
        %2264 = vmatprep.subr.bf16.mxu0 %v1877
        %2265 = vmatpush1.bf16.msra.mxu0 %v1876
        %2266 = vmatprep.subr.bf16.mxu0 %v1881
        %2267 = vmatpush1.bf16.msra.mxu0 %v1880
        %2268 = vmatprep.subr.bf16.mxu0 %v1885
        %2269 = vmatpush1.bf16.msra.mxu0 %v1884
        %2270 = vmatprep.subr.bf16.mxu0 %v1889
        %2271 = vmatpush1.bf16.msra.mxu0 %v1888
        %2272 = vmatprep.subr.bf16.mxu0 %v1893
        %2273 = vmatpush1.bf16.msra.mxu0 %v1892
        %2274 = vmatprep.subr.bf16.mxu0 %v1897
        %2275 = vmatpush1.bf16.msra.mxu0 %v1896
        %2276 = vmatprep.subr.bf16.mxu0 %v1901
        %2277 = vmatpush1.bf16.msra.mxu0 %v1900
        %2278 = vmatprep.mubr.bf16.mxu0 %v1031
        %2279 = vmatmul.mubr.bf16.gmra.mrb[0].mxu0 %v1030
        %v2280 = vpop.f32.mrb[0].mxu0
        %v2281 = vadd.f32 %v2238, %v2280
        %v2282 = vpop.f32.mrb[0].mxu0
        %v2283 = vadd.f32 %v2240, %v2282
        %v2284 = vpop.f32.mrb[0].mxu0
        %v2285 = vadd.f32 %v2242, %v2284
        %v2286 = vpop.f32.mrb[0].mxu0
        %v2287 = vadd.f32 %v2244, %v2286
        %2288 = vdwg.mxu0
        %2289 = vmatprep.subr.bf16.mxu0 %v1905
        %2290 = vmatpush1.bf16.msra.mxu0 %v1904
        %2291 = vmatprep.subr.bf16.mxu0 %v1909
        %2292 = vmatpush1.bf16.msra.mxu0 %v1908
        %2293 = vmatprep.subr.bf16.mxu0 %v1913
        %2294 = vmatpush1.bf16.msra.mxu0 %v1912
        %2295 = vmatprep.subr.bf16.mxu0 %v1917
        %2296 = vmatpush1.bf16.msra.mxu0 %v1916
        %2297 = vmatprep.subr.bf16.mxu0 %v1921
        %2298 = vmatpush1.bf16.msra.mxu0 %v1920
        %2299 = vmatprep.subr.bf16.mxu0 %v1925
        %2300 = vmatpush1.bf16.msra.mxu0 %v1924
        %2301 = vmatprep.subr.bf16.mxu0 %v1929
        %2302 = vmatpush1.bf16.msra.mxu0 %v1928
        %2303 = vmatprep.subr.bf16.mxu0 %v1933
        %2304 = vmatpush1.bf16.msra.mxu0 %v1932
        %2305 = vmatprep.subr.bf16.mxu0 0
        %2306 = vmatpush1.bf16.msra.mxu0 0
        %2307 = vmatprep.subr.bf16.mxu0 0
        %2308 = vmatpush1.bf16.msra.mxu0 0
        %2309 = vmatprep.subr.bf16.mxu0 0
        %2310 = vmatpush1.bf16.msra.mxu0 0
        %2311 = vmatprep.subr.bf16.mxu0 0
        %2312 = vmatpush1.bf16.msra.mxu0 0
        %2313 = vmatprep.subr.bf16.mxu0 0
        %2314 = vmatpush1.bf16.msra.mxu0 0
        %2315 = vmatprep.subr.bf16.mxu0 0
        %2316 = vmatpush1.bf16.msra.mxu0 0
        %2317 = vmatprep.subr.bf16.mxu0 0
        %2318 = vmatpush1.bf16.msra.mxu0 0
        %2319 = vmatprep.subr.bf16.mxu0 0
        %2320 = vmatpush1.bf16.msra.mxu0 0
        %2321 = vmatprep.mubr.bf16.mxu0 0
        %2322 = vmatmul.mubr.bf16.gmra.mrb[0].mxu0 %v1032
        %v2323 = vpop.f32.mrb[0].mxu0
        %v2324 = vadd.f32 %v2281, %v2323
        %v2325 = vpop.f32.mrb[0].mxu0
        %v2326 = vadd.f32 %v2283, %v2325
        %v2327 = vpop.f32.mrb[0].mxu0
        %v2328 = vadd.f32 %v2285, %v2327
        %v2329 = vpop.f32.mrb[0].mxu0
        %v2330 = vadd.f32 %v2287, %v2329
        %2331 = vdwg.mxu0
        %2332 = vmatprep.subr.bf16.mxu0 %v1715
        %2333 = vmatpush1.bf16.msra.mxu0 %v1714
        %2334 = vmatprep.subr.bf16.mxu0 %v1719
        %2335 = vmatpush1.bf16.msra.mxu0 %v1718
        %2336 = vmatprep.subr.bf16.mxu0 %v1723
        %2337 = vmatpush1.bf16.msra.mxu0 %v1722
        %2338 = vmatprep.subr.bf16.mxu0 %v1727
        %2339 = vmatpush1.bf16.msra.mxu0 %v1726
        %2340 = vmatprep.subr.bf16.mxu0 %v1731
        %2341 = vmatpush1.bf16.msra.mxu0 %v1730
        %2342 = vmatprep.subr.bf16.mxu0 %v1735
        %2343 = vmatpush1.bf16.msra.mxu0 %v1734
        %2344 = vmatprep.subr.bf16.mxu0 %v1739
        %2345 = vmatpush1.bf16.msra.mxu0 %v1738
        %2346 = vmatprep.subr.bf16.mxu0 %v1743
        %2347 = vmatpush1.bf16.msra.mxu0 %v1742
        %2348 = vmatprep.subr.bf16.mxu0 %v1747
        %2349 = vmatpush1.bf16.msra.mxu0 %v1746
        %2350 = vmatprep.subr.bf16.mxu0 %v1751
        %2351 = vmatpush1.bf16.msra.mxu0 %v1750
        %2352 = vmatprep.subr.bf16.mxu0 %v1755
        %2353 = vmatpush1.bf16.msra.mxu0 %v1754
        %2354 = vmatprep.subr.bf16.mxu0 %v1759
        %2355 = vmatpush1.bf16.msra.mxu0 %v1758
        %2356 = vmatprep.subr.bf16.mxu0 %v1763
        %2357 = vmatpush1.bf16.msra.mxu0 %v1762
        %2358 = vmatprep.subr.bf16.mxu0 %v1767
        %2359 = vmatpush1.bf16.msra.mxu0 %v1766
        %2360 = vmatprep.subr.bf16.mxu0 %v1771
        %2361 = vmatpush1.bf16.msra.mxu0 %v1770
        %2362 = vmatprep.subr.bf16.mxu0 %v1775
        %2363 = vmatpush1.bf16.msra.mxu0 %v1774
        %2364 = vmatprep.mubr.bf16.mxu0 %v1027
        %2365 = vmatmul.mubr.bf16.gmra.mrb[0].mxu0 %v1026
        %v2366 = vpop.f32.mrb[0].mxu0
        %v2367 = vadd.f32 %v995, %v2366
        %v2368 = vpop.f32.mrb[0].mxu0
        %v2369 = vadd.f32 %v999, %v2368
        %v2370 = vpop.f32.mrb[0].mxu0
        %v2371 = vadd.f32 %v995, %v2370
        %v2372 = vpop.f32.mrb[0].mxu0
        %v2373 = vadd.f32 %v999, %v2372
        %2374 = vdwg.mxu0
        %2375 = vmatprep.subr.bf16.mxu0 %v1779
        %2376 = vmatpush1.bf16.msra.mxu0 %v1778
        %2377 = vmatprep.subr.bf16.mxu0 %v1783
        %2378 = vmatpush1.bf16.msra.mxu0 %v1782
        %2379 = vmatprep.subr.bf16.mxu0 %v1787
        %2380 = vmatpush1.bf16.msra.mxu0 %v1786
        %2381 = vmatprep.subr.bf16.mxu0 %v1791
        %2382 = vmatpush1.bf16.msra.mxu0 %v1790
        %2383 = vmatprep.subr.bf16.mxu0 %v1795
        %2384 = vmatpush1.bf16.msra.mxu0 %v1794
        %2385 = vmatprep.subr.bf16.mxu0 %v1799
        %2386 = vmatpush1.bf16.msra.mxu0 %v1798
        %2387 = vmatprep.subr.bf16.mxu0 %v1803
        %2388 = vmatpush1.bf16.msra.mxu0 %v1802
        %2389 = vmatprep.subr.bf16.mxu0 %v1807
        %2390 = vmatpush1.bf16.msra.mxu0 %v1806
        %2391 = vmatprep.subr.bf16.mxu0 %v1811
        %2392 = vmatpush1.bf16.msra.mxu0 %v1810
        %2393 = vmatprep.subr.bf16.mxu0 %v1815
        %2394 = vmatpush1.bf16.msra.mxu0 %v1814
        %2395 = vmatprep.subr.bf16.mxu0 %v1819
        %2396 = vmatpush1.bf16.msra.mxu0 %v1818
        %2397 = vmatprep.subr.bf16.mxu0 %v1823
        %2398 = vmatpush1.bf16.msra.mxu0 %v1822
        %2399 = vmatprep.subr.bf16.mxu0 %v1827
        %2400 = vmatpush1.bf16.msra.mxu0 %v1826
        %2401 = vmatprep.subr.bf16.mxu0 %v1831
        %2402 = vmatpush1.bf16.msra.mxu0 %v1830
        %2403 = vmatprep.subr.bf16.mxu0 %v1835
        %2404 = vmatpush1.bf16.msra.mxu0 %v1834
        %2405 = vmatprep.subr.bf16.mxu0 %v1839
        %2406 = vmatpush1.bf16.msra.mxu0 %v1838
        %2407 = vmatprep.mubr.bf16.mxu0 %v1029
        %2408 = vmatmul.mubr.bf16.gmra.mrb[0].mxu0 %v1028
        %v2409 = vpop.f32.mrb[0].mxu0
        %v2410 = vadd.f32 %v2367, %v2409
        %v2411 = vpop.f32.mrb[0].mxu0
        %v2412 = vadd.f32 %v2369, %v2411
        %v2413 = vpop.f32.mrb[0].mxu0
        %v2414 = vadd.f32 %v2371, %v2413
        %v2415 = vpop.f32.mrb[0].mxu0
        %v2416 = vadd.f32 %v2373, %v2415
        %2417 = vdwg.mxu0
        %2418 = vmatprep.subr.bf16.mxu0 %v1843
        %2419 = vmatpush1.bf16.msra.mxu0 %v1842
        %2420 = vmatprep.subr.bf16.mxu0 %v1847
        %2421 = vmatpush1.bf16.msra.mxu0 %v1846
        %2422 = vmatprep.subr.bf16.mxu0 %v1851
        %2423 = vmatpush1.bf16.msra.mxu0 %v1850
        %2424 = vmatprep.subr.bf16.mxu0 %v1855
        %2425 = vmatpush1.bf16.msra.mxu0 %v1854
        %2426 = vmatprep.subr.bf16.mxu0 %v1859
        %2427 = vmatpush1.bf16.msra.mxu0 %v1858
        %2428 = vmatprep.subr.bf16.mxu0 %v1863
        %2429 = vmatpush1.bf16.msra.mxu0 %v1862
        %2430 = vmatprep.subr.bf16.mxu0 %v1867
        %2431 = vmatpush1.bf16.msra.mxu0 %v1866
        %2432 = vmatprep.subr.bf16.mxu0 %v1871
        %2433 = vmatpush1.bf16.msra.mxu0 %v1870
        %2434 = vmatprep.subr.bf16.mxu0 %v1875
        %2435 = vmatpush1.bf16.msra.mxu0 %v1874
        %2436 = vmatprep.subr.bf16.mxu0 %v1879
        %2437 = vmatpush1.bf16.msra.mxu0 %v1878
        %2438 = vmatprep.subr.bf16.mxu0 %v1883
        %2439 = vmatpush1.bf16.msra.mxu0 %v1882
        %2440 = vmatprep.subr.bf16.mxu0 %v1887
        %2441 = vmatpush1.bf16.msra.mxu0 %v1886
        %2442 = vmatprep.subr.bf16.mxu0 %v1891
        %2443 = vmatpush1.bf16.msra.mxu0 %v1890
        %2444 = vmatprep.subr.bf16.mxu0 %v1895
        %2445 = vmatpush1.bf16.msra.mxu0 %v1894
        %2446 = vmatprep.subr.bf16.mxu0 %v1899
        %2447 = vmatpush1.bf16.msra.mxu0 %v1898
        %2448 = vmatprep.subr.bf16.mxu0 %v1903
        %2449 = vmatpush1.bf16.msra.mxu0 %v1902
        %2450 = vmatprep.mubr.bf16.mxu0 %v1031
        %2451 = vmatmul.mubr.bf16.gmra.mrb[0].mxu0 %v1030
        %v2452 = vpop.f32.mrb[0].mxu0
        %v2453 = vadd.f32 %v2410, %v2452
        %v2454 = vpop.f32.mrb[0].mxu0
        %v2455 = vadd.f32 %v2412, %v2454
        %v2456 = vpop.f32.mrb[0].mxu0
        %v2457 = vadd.f32 %v2414, %v2456
        %v2458 = vpop.f32.mrb[0].mxu0
        %v2459 = vadd.f32 %v2416, %v2458
        %2460 = vdwg.mxu0
        %2461 = vmatprep.subr.bf16.mxu0 %v1907
        %2462 = vmatpush1.bf16.msra.mxu0 %v1906
        %2463 = vmatprep.subr.bf16.mxu0 %v1911
        %2464 = vmatpush1.bf16.msra.mxu0 %v1910
        %2465 = vmatprep.subr.bf16.mxu0 %v1915
        %2466 = vmatpush1.bf16.msra.mxu0 %v1914
        %2467 = vmatprep.subr.bf16.mxu0 %v1919
        %2468 = vmatpush1.bf16.msra.mxu0 %v1918
        %2469 = vmatprep.subr.bf16.mxu0 %v1923
        %2470 = vmatpush1.bf16.msra.mxu0 %v1922
        %2471 = vmatprep.subr.bf16.mxu0 %v1927
        %2472 = vmatpush1.bf16.msra.mxu0 %v1926
        %2473 = vmatprep.subr.bf16.mxu0 %v1931
        %2474 = vmatpush1.bf16.msra.mxu0 %v1930
        %2475 = vmatprep.subr.bf16.mxu0 %v1935
        %2476 = vmatpush1.bf16.msra.mxu0 %v1934
        %2477 = vmatprep.subr.bf16.mxu0 0
        %2478 = vmatpush1.bf16.msra.mxu0 0
        %2479 = vmatprep.subr.bf16.mxu0 0
        %2480 = vmatpush1.bf16.msra.mxu0 0
        %2481 = vmatprep.subr.bf16.mxu0 0
        %2482 = vmatpush1.bf16.msra.mxu0 0
        %2483 = vmatprep.subr.bf16.mxu0 0
        %2484 = vmatpush1.bf16.msra.mxu0 0
        %2485 = vmatprep.subr.bf16.mxu0 0
        %2486 = vmatpush1.bf16.msra.mxu0 0
        %2487 = vmatprep.subr.bf16.mxu0 0
        %2488 = vmatpush1.bf16.msra.mxu0 0
        %2489 = vmatprep.subr.bf16.mxu0 0
        %2490 = vmatpush1.bf16.msra.mxu0 0
        %2491 = vmatprep.subr.bf16.mxu0 0
        %2492 = vmatpush1.bf16.msra.mxu0 0
        %2493 = vmatprep.mubr.bf16.mxu0 0
        %2494 = vmatmul.mubr.bf16.gmra.mrb[0].mxu0 %v1032
        %v2495 = vpop.f32.mrb[0].mxu0
        %v2496 = vadd.f32 %v2453, %v2495
        %v2497 = vpop.f32.mrb[0].mxu0
        %v2498 = vadd.f32 %v2455, %v2497
        %v2499 = vpop.f32.mrb[0].mxu0
        %v2500 = vadd.f32 %v2457, %v2499
        %v2501 = vpop.f32.mrb[0].mxu0
        %v2502 = vadd.f32 %v2459, %v2501
        %2503 = vdwg.mxu0
        %v2504 = vmax.f32 %v2324, 0.0
        %v2505 = vmax.f32 %v2326, 0.0
        %v2506 = vmax.f32 %v2496, 0.0
        %v2507 = vmax.f32 %v2498, 0.0
        %v2508 = vmax.f32 %v2328, 0.0
        %v2509 = vmax.f32 %v2330, 0.0
        %v2510 = vmax.f32 %v2500, 0.0
        %v2511 = vmax.f32 %v2502, 0.0
        %v2512 = vpack.c.bf16 %v2508, %v2504
        %v2513 = vpack.c.bf16 %v2509, %v2505
        %v2514 = vpack.c.bf16 %v2510, %v2506
        %v2515 = vpack.c.bf16 %v2511, %v2507
        %v2516 = vld [vmem:[#allocation6] sm:$0xff]
        %v2517 = vld [vmem:[#allocation6 + $0x8] sm:$0xff]
        %v2518 = vld [vmem:[#allocation6 + $0x10] sm:$0xff]
        %v2519 = vld [vmem:[#allocation6 + $0x18] sm:$0xff]
        %v2520 = vld [vmem:[#allocation6 + $0x20] sm:$0xff]
        %v2521 = vld [vmem:[#allocation6 + $0x28] sm:$0xff]
        %v2522 = vld [vmem:[#allocation6 + $0x30] sm:$0xff]
        %v2523 = vld [vmem:[#allocation6 + $0x38] sm:$0xff]
        %v2524 = vld [vmem:[#allocation6 + $0x40] sm:$0xff]
        %v2525 = vld [vmem:[#allocation6 + $0x48] sm:$0xff]
        %v2526 = vld [vmem:[#allocation6 + $0x50] sm:$0xff]
        %v2527 = vld [vmem:[#allocation6 + $0x58] sm:$0xff]
        %v2528 = vld [vmem:[#allocation6 + $0x60] sm:$0xff]
        %v2529 = vld [vmem:[#allocation6 + $0x68] sm:$0xff]
        %v2530 = vld [vmem:[#allocation6 + $0x70] sm:$0xff]
        %v2531 = vld [vmem:[#allocation6 + $0x78] sm:$0xff]
        %v2532 = vld [vmem:[#allocation6 + $0x80] sm:$0xff]
        %v2533 = vld [vmem:[#allocation6 + $0x88] sm:$0xff]
        %v2534 = vld [vmem:[#allocation6 + $0x90] sm:$0xff]
        %v2535 = vld [vmem:[#allocation6 + $0x98] sm:$0xff]
        %v2536 = vld [vmem:[#allocation6 + $0xa0] sm:$0xff]
        %v2537 = vld [vmem:[#allocation6 + $0xa8] sm:$0xff]
        %v2538 = vld [vmem:[#allocation6 + $0xb0] sm:$0xff]
        %v2539 = vld [vmem:[#allocation6 + $0xb8] sm:$0xff]
        %v2540 = vld [vmem:[#allocation6 + $0xc0] sm:$0xff]
        %v2541 = vld [vmem:[#allocation6 + $0xc8] sm:$0xff]
        %v2542 = vld [vmem:[#allocation6 + $0xd0] sm:$0xff]
        %v2543 = vld [vmem:[#allocation6 + $0xd8] sm:$0xff]
        %v2544 = vld [vmem:[#allocation6 + $0xe0] sm:$0xff]
        %v2545 = vld [vmem:[#allocation6 + $0xe8] sm:$0xff]
        %v2546 = vld [vmem:[#allocation6 + $0xf0] sm:$0xff]
        %v2547 = vld [vmem:[#allocation6 + $0xf8] sm:$0xff]
        %v2548 = vld [vmem:[#allocation6 + $0x100] sm:$0xff]
        %v2549 = vld [vmem:[#allocation6 + $0x108] sm:$0xff]
        %v2550 = vld [vmem:[#allocation6 + $0x110] sm:$0xff]
        %v2551 = vld [vmem:[#allocation6 + $0x118] sm:$0xff]
        %v2552 = vld [vmem:[#allocation6 + $0x120] sm:$0xff]
        %v2553 = vld [vmem:[#allocation6 + $0x128] sm:$0xff]
        %v2554 = vld [vmem:[#allocation6 + $0x130] sm:$0xff]
        %v2555 = vld [vmem:[#allocation6 + $0x138] sm:$0xff]
        %v2556 = vld [vmem:[#allocation6 + $0x140] sm:$0xff]
        %v2557 = vld [vmem:[#allocation6 + $0x148] sm:$0xff]
        %v2558 = vld [vmem:[#allocation6 + $0x150] sm:$0xff]
        %v2559 = vld [vmem:[#allocation6 + $0x158] sm:$0xff]
        %v2560 = vld [vmem:[#allocation6 + $0x160] sm:$0xff]
        %v2561 = vld [vmem:[#allocation6 + $0x168] sm:$0xff]
        %v2562 = vld [vmem:[#allocation6 + $0x170] sm:$0xff]
        %v2563 = vld [vmem:[#allocation6 + $0x178] sm:$0xff]
        %v2564 = vld [vmem:[#allocation6 + $0x180] sm:$0xff]
        %v2565 = vld [vmem:[#allocation6 + $0x188] sm:$0xff]
        %v2566 = vld [vmem:[#allocation6 + $0x190] sm:$0xff]
        %v2567 = vld [vmem:[#allocation6 + $0x198] sm:$0xff]
        %v2568 = vld [vmem:[#allocation6 + $0x1a0] sm:$0xff]
        %v2569 = vld [vmem:[#allocation6 + $0x1a8] sm:$0xff]
        %v2570 = vld [vmem:[#allocation6 + $0x1b0] sm:$0xff]
        %v2571 = vld [vmem:[#allocation6 + $0x1b8] sm:$0xff]
        %v2572 = vld [vmem:[#allocation6 + $0x1c0] sm:$0xff]
        %v2573 = vld [vmem:[#allocation6 + $0x1c8] sm:$0xff]
        %v2574 = vld [vmem:[#allocation6 + $0x1d0] sm:$0xff]
        %v2575 = vld [vmem:[#allocation6 + $0x1d8] sm:$0xff]
        %v2576 = vld [vmem:[#allocation6 + $0x1e0] sm:$0xff]
        %v2577 = vld [vmem:[#allocation6 + $0x1e8] sm:$0xff]
        %v2578 = vld [vmem:[#allocation6 + $0x1f0] sm:$0xff]
        %v2579 = vld [vmem:[#allocation6 + $0x1f8] sm:$0xff]
        %v2580 = vld [vmem:[#allocation7] sm:$0x3]
        %v2582 = vlaneseq
        %v2583 = vshrl.u32 %v2582, 7
        %v2584 = vsub.s32 0, %v2583
        %v2585 = vrot.slane %v2580, %v2584
        %v2586 = vlaneseq
        %v2587 = vshrl.u32 %v2586, 7
        %v2588 = vsub.s32 1, %v2587
        %v2589 = vrot.slane %v2580, %v2588
        %v2656 = vunpack.c.l.b16 %v2516
        %v2657 = vunpack.c.h.b16 %v2516
        %v2658 = vunpack.c.l.b16 %v2517
        %v2659 = vunpack.c.h.b16 %v2517
        %v2660 = vunpack.c.l.b16 %v2518
        %v2661 = vunpack.c.h.b16 %v2518
        %v2662 = vunpack.c.l.b16 %v2519
        %v2663 = vunpack.c.h.b16 %v2519
        %v2664 = vunpack.c.l.b16 %v2520
        %v2665 = vunpack.c.h.b16 %v2520
        %v2666 = vunpack.c.l.b16 %v2521
        %v2667 = vunpack.c.h.b16 %v2521
        %v2668 = vunpack.c.l.b16 %v2522
        %v2669 = vunpack.c.h.b16 %v2522
        %v2670 = vunpack.c.l.b16 %v2523
        %v2671 = vunpack.c.h.b16 %v2523
        %v2672 = vunpack.c.l.b16 %v2524
        %v2673 = vunpack.c.h.b16 %v2524
        %v2674 = vunpack.c.l.b16 %v2525
        %v2675 = vunpack.c.h.b16 %v2525
        %v2676 = vunpack.c.l.b16 %v2526
        %v2677 = vunpack.c.h.b16 %v2526
        %v2678 = vunpack.c.l.b16 %v2527
        %v2679 = vunpack.c.h.b16 %v2527
        %v2680 = vunpack.c.l.b16 %v2528
        %v2681 = vunpack.c.h.b16 %v2528
        %v2682 = vunpack.c.l.b16 %v2529
        %v2683 = vunpack.c.h.b16 %v2529
        %v2684 = vunpack.c.l.b16 %v2530
        %v2685 = vunpack.c.h.b16 %v2530
        %v2686 = vunpack.c.l.b16 %v2531
        %v2687 = vunpack.c.h.b16 %v2531
        %v2688 = vunpack.c.l.b16 %v2532
        %v2689 = vunpack.c.h.b16 %v2532
        %v2690 = vunpack.c.l.b16 %v2533
        %v2691 = vunpack.c.h.b16 %v2533
        %v2692 = vunpack.c.l.b16 %v2534
        %v2693 = vunpack.c.h.b16 %v2534
        %v2694 = vunpack.c.l.b16 %v2535
        %v2695 = vunpack.c.h.b16 %v2535
        %v2696 = vunpack.c.l.b16 %v2536
        %v2697 = vunpack.c.h.b16 %v2536
        %v2698 = vunpack.c.l.b16 %v2537
        %v2699 = vunpack.c.h.b16 %v2537
        %v2700 = vunpack.c.l.b16 %v2538
        %v2701 = vunpack.c.h.b16 %v2538
        %v2702 = vunpack.c.l.b16 %v2539
        %v2703 = vunpack.c.h.b16 %v2539
        %v2704 = vunpack.c.l.b16 %v2540
        %v2705 = vunpack.c.h.b16 %v2540
        %v2706 = vunpack.c.l.b16 %v2541
        %v2707 = vunpack.c.h.b16 %v2541
        %v2708 = vunpack.c.l.b16 %v2542
        %v2709 = vunpack.c.h.b16 %v2542
        %v2710 = vunpack.c.l.b16 %v2543
        %v2711 = vunpack.c.h.b16 %v2543
        %v2712 = vunpack.c.l.b16 %v2544
        %v2713 = vunpack.c.h.b16 %v2544
        %v2714 = vunpack.c.l.b16 %v2545
        %v2715 = vunpack.c.h.b16 %v2545
        %v2716 = vunpack.c.l.b16 %v2546
        %v2717 = vunpack.c.h.b16 %v2546
        %v2718 = vunpack.c.l.b16 %v2547
        %v2719 = vunpack.c.h.b16 %v2547
        %v2720 = vunpack.c.l.b16 %v2548
        %v2721 = vunpack.c.h.b16 %v2548
        %v2722 = vunpack.c.l.b16 %v2549
        %v2723 = vunpack.c.h.b16 %v2549
        %v2724 = vunpack.c.l.b16 %v2550
        %v2725 = vunpack.c.h.b16 %v2550
        %v2726 = vunpack.c.l.b16 %v2551
        %v2727 = vunpack.c.h.b16 %v2551
        %v2728 = vunpack.c.l.b16 %v2552
        %v2729 = vunpack.c.h.b16 %v2552
        %v2730 = vunpack.c.l.b16 %v2553
        %v2731 = vunpack.c.h.b16 %v2553
        %v2732 = vunpack.c.l.b16 %v2554
        %v2733 = vunpack.c.h.b16 %v2554
        %v2734 = vunpack.c.l.b16 %v2555
        %v2735 = vunpack.c.h.b16 %v2555
        %v2736 = vunpack.c.l.b16 %v2556
        %v2737 = vunpack.c.h.b16 %v2556
        %v2738 = vunpack.c.l.b16 %v2557
        %v2739 = vunpack.c.h.b16 %v2557
        %v2740 = vunpack.c.l.b16 %v2558
        %v2741 = vunpack.c.h.b16 %v2558
        %v2742 = vunpack.c.l.b16 %v2559
        %v2743 = vunpack.c.h.b16 %v2559
        %v2744 = vunpack.c.l.b16 %v2560
        %v2745 = vunpack.c.h.b16 %v2560
        %v2746 = vunpack.c.l.b16 %v2561
        %v2747 = vunpack.c.h.b16 %v2561
        %v2748 = vunpack.c.l.b16 %v2562
        %v2749 = vunpack.c.h.b16 %v2562
        %v2750 = vunpack.c.l.b16 %v2563
        %v2751 = vunpack.c.h.b16 %v2563
        %v2752 = vunpack.c.l.b16 %v2564
        %v2753 = vunpack.c.h.b16 %v2564
        %v2754 = vunpack.c.l.b16 %v2565
        %v2755 = vunpack.c.h.b16 %v2565
        %v2756 = vunpack.c.l.b16 %v2566
        %v2757 = vunpack.c.h.b16 %v2566
        %v2758 = vunpack.c.l.b16 %v2567
        %v2759 = vunpack.c.h.b16 %v2567
        %v2760 = vunpack.c.l.b16 %v2568
        %v2761 = vunpack.c.h.b16 %v2568
        %v2762 = vunpack.c.l.b16 %v2569
        %v2763 = vunpack.c.h.b16 %v2569
        %v2764 = vunpack.c.l.b16 %v2570
        %v2765 = vunpack.c.h.b16 %v2570
        %v2766 = vunpack.c.l.b16 %v2571
        %v2767 = vunpack.c.h.b16 %v2571
        %v2768 = vunpack.c.l.b16 %v2572
        %v2769 = vunpack.c.h.b16 %v2572
        %v2770 = vunpack.c.l.b16 %v2573
        %v2771 = vunpack.c.h.b16 %v2573
        %v2772 = vunpack.c.l.b16 %v2574
        %v2773 = vunpack.c.h.b16 %v2574
        %v2774 = vunpack.c.l.b16 %v2575
        %v2775 = vunpack.c.h.b16 %v2575
        %v2776 = vunpack.c.l.b16 %v2576
        %v2777 = vunpack.c.h.b16 %v2576
        %v2778 = vunpack.c.l.b16 %v2577
        %v2779 = vunpack.c.h.b16 %v2577
        %v2780 = vunpack.c.l.b16 %v2578
        %v2781 = vunpack.c.h.b16 %v2578
        %v2782 = vunpack.c.l.b16 %v2579
        %v2783 = vunpack.c.h.b16 %v2579
        %v2784 = vpack.c.b16 %v2658, %v2656
        %v2785 = vpack.c.b16 %v2659, %v2657
        %v2786 = vpack.c.b16 %v2662, %v2660
        %v2787 = vpack.c.b16 %v2663, %v2661
        %v2788 = vpack.c.b16 %v2666, %v2664
        %v2789 = vpack.c.b16 %v2667, %v2665
        %v2790 = vpack.c.b16 %v2670, %v2668
        %v2791 = vpack.c.b16 %v2671, %v2669
        %v2792 = vpack.c.b16 %v2674, %v2672
        %v2793 = vpack.c.b16 %v2675, %v2673
        %v2794 = vpack.c.b16 %v2678, %v2676
        %v2795 = vpack.c.b16 %v2679, %v2677
        %v2796 = vpack.c.b16 %v2682, %v2680
        %v2797 = vpack.c.b16 %v2683, %v2681
        %v2798 = vpack.c.b16 %v2686, %v2684
        %v2799 = vpack.c.b16 %v2687, %v2685
        %v2800 = vpack.c.b16 %v2690, %v2688
        %v2801 = vpack.c.b16 %v2691, %v2689
        %v2802 = vpack.c.b16 %v2694, %v2692
        %v2803 = vpack.c.b16 %v2695, %v2693
        %v2804 = vpack.c.b16 %v2698, %v2696
        %v2805 = vpack.c.b16 %v2699, %v2697
        %v2806 = vpack.c.b16 %v2702, %v2700
        %v2807 = vpack.c.b16 %v2703, %v2701
        %v2808 = vpack.c.b16 %v2706, %v2704
        %v2809 = vpack.c.b16 %v2707, %v2705
        %v2810 = vpack.c.b16 %v2710, %v2708
        %v2811 = vpack.c.b16 %v2711, %v2709
        %v2812 = vpack.c.b16 %v2714, %v2712
        %v2813 = vpack.c.b16 %v2715, %v2713
        %v2814 = vpack.c.b16 %v2718, %v2716
        %v2815 = vpack.c.b16 %v2719, %v2717
        %v2816 = vpack.c.b16 %v2722, %v2720
        %v2817 = vpack.c.b16 %v2723, %v2721
        %v2818 = vpack.c.b16 %v2726, %v2724
        %v2819 = vpack.c.b16 %v2727, %v2725
        %v2820 = vpack.c.b16 %v2730, %v2728
        %v2821 = vpack.c.b16 %v2731, %v2729
        %v2822 = vpack.c.b16 %v2734, %v2732
        %v2823 = vpack.c.b16 %v2735, %v2733
        %v2824 = vpack.c.b16 %v2738, %v2736
        %v2825 = vpack.c.b16 %v2739, %v2737
        %v2826 = vpack.c.b16 %v2742, %v2740
        %v2827 = vpack.c.b16 %v2743, %v2741
        %v2828 = vpack.c.b16 %v2746, %v2744
        %v2829 = vpack.c.b16 %v2747, %v2745
        %v2830 = vpack.c.b16 %v2750, %v2748
        %v2831 = vpack.c.b16 %v2751, %v2749
        %v2832 = vpack.c.b16 %v2754, %v2752
        %v2833 = vpack.c.b16 %v2755, %v2753
        %v2834 = vpack.c.b16 %v2758, %v2756
        %v2835 = vpack.c.b16 %v2759, %v2757
        %v2836 = vpack.c.b16 %v2762, %v2760
        %v2837 = vpack.c.b16 %v2763, %v2761
        %v2838 = vpack.c.b16 %v2766, %v2764
        %v2839 = vpack.c.b16 %v2767, %v2765
        %v2840 = vpack.c.b16 %v2770, %v2768
        %v2841 = vpack.c.b16 %v2771, %v2769
        %v2842 = vpack.c.b16 %v2774, %v2772
        %v2843 = vpack.c.b16 %v2775, %v2773
        %v2844 = vpack.c.b16 %v2778, %v2776
        %v2845 = vpack.c.b16 %v2779, %v2777
        %v2846 = vpack.c.b16 %v2782, %v2780
        %v2847 = vpack.c.b16 %v2783, %v2781
        %2912 = vmatprep.subr.bf16.mxu0 %v2785
        %2913 = vmatpush1.bf16.msra.mxu0 %v2784
        %2914 = vmatprep.subr.bf16.mxu0 %v2787
        %2915 = vmatpush1.bf16.msra.mxu0 %v2786
        %2916 = vmatprep.subr.bf16.mxu0 %v2789
        %2917 = vmatpush1.bf16.msra.mxu0 %v2788
        %2918 = vmatprep.subr.bf16.mxu0 %v2791
        %2919 = vmatpush1.bf16.msra.mxu0 %v2790
        %2920 = vmatprep.subr.bf16.mxu0 %v2793
        %2921 = vmatpush1.bf16.msra.mxu0 %v2792
        %2922 = vmatprep.subr.bf16.mxu0 %v2795
        %2923 = vmatpush1.bf16.msra.mxu0 %v2794
        %2924 = vmatprep.subr.bf16.mxu0 %v2797
        %2925 = vmatpush1.bf16.msra.mxu0 %v2796
        %2926 = vmatprep.subr.bf16.mxu0 %v2799
        %2927 = vmatpush1.bf16.msra.mxu0 %v2798
        %2928 = vmatprep.subr.bf16.mxu0 %v2801
        %2929 = vmatpush1.bf16.msra.mxu0 %v2800
        %2930 = vmatprep.subr.bf16.mxu0 %v2803
        %2931 = vmatpush1.bf16.msra.mxu0 %v2802
        %2932 = vmatprep.subr.bf16.mxu0 %v2805
        %2933 = vmatpush1.bf16.msra.mxu0 %v2804
        %2934 = vmatprep.subr.bf16.mxu0 %v2807
        %2935 = vmatpush1.bf16.msra.mxu0 %v2806
        %2936 = vmatprep.subr.bf16.mxu0 %v2809
        %2937 = vmatpush1.bf16.msra.mxu0 %v2808
        %2938 = vmatprep.subr.bf16.mxu0 %v2811
        %2939 = vmatpush1.bf16.msra.mxu0 %v2810
        %2940 = vmatprep.subr.bf16.mxu0 %v2813
        %2941 = vmatpush1.bf16.msra.mxu0 %v2812
        %2942 = vmatprep.subr.bf16.mxu0 %v2815
        %2943 = vmatpush1.bf16.msra.mxu0 %v2814
        %2944 = vmatprep.mubr.bf16.mxu0 %v2513
        %2945 = vmatmul.mubr.bf16.gmra.mrb[0].mxu0 %v2512
        %v2946 = vpop.f32.mrb[0].mxu0
        %v2947 = vadd.f32 %v2585, %v2946
        %v2948 = vpop.f32.mrb[0].mxu0
        %v2949 = vadd.f32 %v2589, %v2948
        %v2950 = vpop.f32.mrb[0].mxu0
        %v2951 = vadd.f32 %v2585, %v2950
        %v2952 = vpop.f32.mrb[0].mxu0
        %v2953 = vadd.f32 %v2589, %v2952
        %2954 = vdwg.mxu0
        %2955 = vmatprep.subr.bf16.mxu0 %v2817
        %2956 = vmatpush1.bf16.msra.mxu0 %v2816
        %2957 = vmatprep.subr.bf16.mxu0 %v2819
        %2958 = vmatpush1.bf16.msra.mxu0 %v2818
        %2959 = vmatprep.subr.bf16.mxu0 %v2821
        %2960 = vmatpush1.bf16.msra.mxu0 %v2820
        %2961 = vmatprep.subr.bf16.mxu0 %v2823
        %2962 = vmatpush1.bf16.msra.mxu0 %v2822
        %2963 = vmatprep.subr.bf16.mxu0 %v2825
        %2964 = vmatpush1.bf16.msra.mxu0 %v2824
        %2965 = vmatprep.subr.bf16.mxu0 %v2827
        %2966 = vmatpush1.bf16.msra.mxu0 %v2826
        %2967 = vmatprep.subr.bf16.mxu0 %v2829
        %2968 = vmatpush1.bf16.msra.mxu0 %v2828
        %2969 = vmatprep.subr.bf16.mxu0 %v2831
        %2970 = vmatpush1.bf16.msra.mxu0 %v2830
        %2971 = vmatprep.subr.bf16.mxu0 %v2833
        %2972 = vmatpush1.bf16.msra.mxu0 %v2832
        %2973 = vmatprep.subr.bf16.mxu0 %v2835
        %2974 = vmatpush1.bf16.msra.mxu0 %v2834
        %2975 = vmatprep.subr.bf16.mxu0 %v2837
        %2976 = vmatpush1.bf16.msra.mxu0 %v2836
        %2977 = vmatprep.subr.bf16.mxu0 %v2839
        %2978 = vmatpush1.bf16.msra.mxu0 %v2838
        %2979 = vmatprep.subr.bf16.mxu0 %v2841
        %2980 = vmatpush1.bf16.msra.mxu0 %v2840
        %2981 = vmatprep.subr.bf16.mxu0 %v2843
        %2982 = vmatpush1.bf16.msra.mxu0 %v2842
        %2983 = vmatprep.subr.bf16.mxu0 %v2845
        %2984 = vmatpush1.bf16.msra.mxu0 %v2844
        %2985 = vmatprep.subr.bf16.mxu0 %v2847
        %2986 = vmatpush1.bf16.msra.mxu0 %v2846
        %2987 = vmatprep.mubr.bf16.mxu0 %v2515
        %2988 = vmatmul.mubr.bf16.gmra.mrb[0].mxu0 %v2514
        %v2989 = vpop.f32.mrb[0].mxu0
        %v2990 = vadd.f32 %v2947, %v2989
        %v2991 = vpop.f32.mrb[0].mxu0
        %v2992 = vadd.f32 %v2949, %v2991
        %v2993 = vpop.f32.mrb[0].mxu0
        %v2994 = vadd.f32 %v2951, %v2993
        %v2995 = vpop.f32.mrb[0].mxu0
        %v2996 = vadd.f32 %v2953, %v2995
        %2997 = vdwg.mxu0
        %v2998 = vmax.f32 %v2990, 0.0
        %v2999 = vmax.f32 %v2992, 0.0
        %v3000 = vmax.f32 %v2994, 0.0
        %v3001 = vmax.f32 %v2996, 0.0
        %v3002 = vpack.c.bf16 %v3000, %v2998
        %v3003 = vpack.c.bf16 %v3001, %v2999
        %v3004 = vld [vmem:[%s5] sm:$0xf]
        %v3005 = vld [vmem:[%s5 + $0x4] sm:$0xf]
        %v3006 = vld [vmem:[%s5 + $0x8] sm:$0xf]
        %v3007 = vld [vmem:[%s5 + $0xc] sm:$0xf]
        %v3008 = vld [vmem:[%s5 + $0x10] sm:$0xf]
        %v3009 = vld [vmem:[%s5 + $0x14] sm:$0xf]
        %v3010 = vld [vmem:[%s5 + $0x18] sm:$0xf]
        %v3011 = vld [vmem:[%s5 + $0x1c] sm:$0xf]
        %v3012 = vld [vmem:[%s5 + $0x20] sm:$0xf]
        %v3013 = vld [vmem:[%s5 + $0x24] sm:$0xf]
        %v3014 = vld [vmem:[%s5 + $0x28] sm:$0xf]
        %v3015 = vld [vmem:[%s5 + $0x2c] sm:$0xf]
        %v3016 = vld [vmem:[%s5 + $0x30] sm:$0xf]
        %v3017 = vld [vmem:[%s5 + $0x34] sm:$0xf]
        %v3018 = vld [vmem:[%s5 + $0x38] sm:$0xf]
        %v3019 = vld [vmem:[%s5 + $0x3c] sm:$0xf]
        %v3020 = vld [vmem:[%s5 + $0x40] sm:$0xf]
        %v3021 = vld [vmem:[%s5 + $0x44] sm:$0xf]
        %v3022 = vld [vmem:[%s5 + $0x48] sm:$0xf]
        %v3023 = vld [vmem:[%s5 + $0x4c] sm:$0xf]
        %v3024 = vld [vmem:[%s5 + $0x50] sm:$0xf]
        %v3025 = vld [vmem:[%s5 + $0x54] sm:$0xf]
        %v3026 = vld [vmem:[%s5 + $0x58] sm:$0xf]
        %v3027 = vld [vmem:[%s5 + $0x5c] sm:$0xf]
        %v3028 = vld [vmem:[%s5 + $0x60] sm:$0xf]
        %v3029 = vld [vmem:[%s5 + $0x64] sm:$0xf]
        %v3030 = vld [vmem:[%s5 + $0x68] sm:$0xf]
        %v3031 = vld [vmem:[%s5 + $0x6c] sm:$0xf]
        %v3032 = vld [vmem:[%s5 + $0x70] sm:$0xf]
        %v3033 = vld [vmem:[%s5 + $0x74] sm:$0xf]
        %v3034 = vld [vmem:[%s5 + $0x78] sm:$0xf]
        %v3035 = vld [vmem:[%s5 + $0x7c] sm:$0xf]
        %v3036 = vld [vmem:[#allocation9] sm:$0x1]
        %v3038 = vlaneseq
        %v3039 = vshrl.u32 %v3038, 7
        %v3040 = vsub.s32 0, %v3039
        %v3041 = vrot.slane %v3036, %v3040
        %v3075 = vunpack.c.l.b16 %v3004
        %v3076 = vunpack.c.l.b16 %v3005
        %v3077 = vunpack.c.l.b16 %v3006
        %v3078 = vunpack.c.l.b16 %v3007
        %v3079 = vunpack.c.l.b16 %v3008
        %v3080 = vunpack.c.l.b16 %v3009
        %v3081 = vunpack.c.l.b16 %v3010
        %v3082 = vunpack.c.l.b16 %v3011
        %v3083 = vunpack.c.l.b16 %v3012
        %v3084 = vunpack.c.l.b16 %v3013
        %v3085 = vunpack.c.l.b16 %v3014
        %v3086 = vunpack.c.l.b16 %v3015
        %v3087 = vunpack.c.l.b16 %v3016
        %v3088 = vunpack.c.l.b16 %v3017
        %v3089 = vunpack.c.l.b16 %v3018
        %v3090 = vunpack.c.l.b16 %v3019
        %v3091 = vunpack.c.l.b16 %v3020
        %v3092 = vunpack.c.l.b16 %v3021
        %v3093 = vunpack.c.l.b16 %v3022
        %v3094 = vunpack.c.l.b16 %v3023
        %v3095 = vunpack.c.l.b16 %v3024
        %v3096 = vunpack.c.l.b16 %v3025
        %v3097 = vunpack.c.l.b16 %v3026
        %v3098 = vunpack.c.l.b16 %v3027
        %v3099 = vunpack.c.l.b16 %v3028
        %v3100 = vunpack.c.l.b16 %v3029
        %v3101 = vunpack.c.l.b16 %v3030
        %v3102 = vunpack.c.l.b16 %v3031
        %v3103 = vunpack.c.l.b16 %v3032
        %v3104 = vunpack.c.l.b16 %v3033
        %v3105 = vunpack.c.l.b16 %v3034
        %v3106 = vunpack.c.l.b16 %v3035
        %v3107 = vpack.c.b16 %v3076, %v3075
        %v3108 = vpack.c.b16 %v3078, %v3077
        %v3109 = vpack.c.b16 %v3080, %v3079
        %v3110 = vpack.c.b16 %v3082, %v3081
        %v3111 = vpack.c.b16 %v3084, %v3083
        %v3112 = vpack.c.b16 %v3086, %v3085
        %v3113 = vpack.c.b16 %v3088, %v3087
        %v3114 = vpack.c.b16 %v3090, %v3089
        %v3115 = vpack.c.b16 %v3092, %v3091
        %v3116 = vpack.c.b16 %v3094, %v3093
        %v3117 = vpack.c.b16 %v3096, %v3095
        %v3118 = vpack.c.b16 %v3098, %v3097
        %v3119 = vpack.c.b16 %v3100, %v3099
        %v3120 = vpack.c.b16 %v3102, %v3101
        %v3121 = vpack.c.b16 %v3104, %v3103
        %v3122 = vpack.c.b16 %v3106, %v3105
        %3139 = vmatprep.subr.bf16.mxu0 0
        %3140 = vmatpush1.bf16.msra.mxu0 %v3107
        %3141 = vmatprep.subr.bf16.mxu0 0
        %3142 = vmatpush1.bf16.msra.mxu0 %v3108
        %3143 = vmatprep.subr.bf16.mxu0 0
        %3144 = vmatpush1.bf16.msra.mxu0 %v3109
        %3145 = vmatprep.subr.bf16.mxu0 0
        %3146 = vmatpush1.bf16.msra.mxu0 %v3110
        %3147 = vmatprep.subr.bf16.mxu0 0
        %3148 = vmatpush1.bf16.msra.mxu0 %v3111
        %3149 = vmatprep.subr.bf16.mxu0 0
        %3150 = vmatpush1.bf16.msra.mxu0 %v3112
        %3151 = vmatprep.subr.bf16.mxu0 0
        %3152 = vmatpush1.bf16.msra.mxu0 %v3113
        %3153 = vmatprep.subr.bf16.mxu0 0
        %3154 = vmatpush1.bf16.msra.mxu0 %v3114
        %3155 = vmatprep.subr.bf16.mxu0 0
        %3156 = vmatpush1.bf16.msra.mxu0 %v3115
        %3157 = vmatprep.subr.bf16.mxu0 0
        %3158 = vmatpush1.bf16.msra.mxu0 %v3116
        %3159 = vmatprep.subr.bf16.mxu0 0
        %3160 = vmatpush1.bf16.msra.mxu0 %v3117
        %3161 = vmatprep.subr.bf16.mxu0 0
        %3162 = vmatpush1.bf16.msra.mxu0 %v3118
        %3163 = vmatprep.subr.bf16.mxu0 0
        %3164 = vmatpush1.bf16.msra.mxu0 %v3119
        %3165 = vmatprep.subr.bf16.mxu0 0
        %3166 = vmatpush1.bf16.msra.mxu0 %v3120
        %3167 = vmatprep.subr.bf16.mxu0 0
        %3168 = vmatpush1.bf16.msra.mxu0 %v3121
        %3169 = vmatprep.subr.bf16.mxu0 0
        %3170 = vmatpush1.bf16.msra.mxu0 %v3122
        %3171 = vmatprep.mubr.bf16.mxu0 %v3003
        %3172 = vmatmul.mubr.bf16.gmra.mrb[0].mxu0 %v3002
        %v3173 = vpop.f32.mrb[0].mxu0
        %v3174 = vadd.f32 %v3041, %v3173
        %v3175 = vpop.f32.mrb[0].mxu0
        %v3176 = vpop.f32.mrb[0].mxu0
        %v3177 = vadd.f32 %v3041, %v3176
        %v3178 = vpop.f32.mrb[0].mxu0
        %3179 = vdwg.mxu0
        %v3180 = vmax.f32 %v3174, 0.0
        %v3181 = vmax.f32 %v3177, 0.0
        %v3182 = vpack.c.bf16 %v3181, %v3180
        %v3183 = vld [vmem:[%s7] sm:$0xf]
        %v3184 = vld [vmem:[%s7 + $0x4] sm:$0xf]
        %v3185 = vld [vmem:[%s7 + $0x8] sm:$0xf]
        %v3186 = vld [vmem:[%s7 + $0xc] sm:$0xf]
        %v3187 = vld [vmem:[%s7 + $0x10] sm:$0xf]
        %v3188 = vld [vmem:[%s7 + $0x14] sm:$0xf]
        %v3189 = vld [vmem:[%s7 + $0x18] sm:$0xf]
        %v3190 = vld [vmem:[%s7 + $0x1c] sm:$0xf]
        %v3191 = vld [vmem:[%s7 + $0x20] sm:$0xf]
        %v3192 = vld [vmem:[%s7 + $0x24] sm:$0xf]
        %v3193 = vld [vmem:[%s7 + $0x28] sm:$0xf]
        %v3194 = vld [vmem:[%s7 + $0x2c] sm:$0xf]
        %v3195 = vld [vmem:[%s7 + $0x30] sm:$0xf]
        %v3196 = vld [vmem:[%s7 + $0x34] sm:$0xf]
        %v3197 = vld [vmem:[%s7 + $0x38] sm:$0xf]
        %v3198 = vld [vmem:[%s7 + $0x3c] sm:$0xf]
        %v3199 = vld [vmem:[#allocation10] sm:$0x1]
        %v3201 = vlaneseq
        %v3202 = vshrl.u32 %v3201, 7
        %v3203 = vsub.s32 0, %v3202
        %v3204 = vrot.slane %v3199, %v3203
        %v3222 = vunpack.c.l.b16 %v3183
        %v3223 = vunpack.c.l.b16 %v3184
        %v3224 = vunpack.c.l.b16 %v3185
        %v3225 = vunpack.c.l.b16 %v3186
        %v3226 = vunpack.c.l.b16 %v3187
        %v3227 = vunpack.c.l.b16 %v3188
        %v3228 = vunpack.c.l.b16 %v3189
        %v3229 = vunpack.c.l.b16 %v3190
        %v3230 = vunpack.c.l.b16 %v3191
        %v3231 = vunpack.c.l.b16 %v3192
        %v3232 = vunpack.c.l.b16 %v3193
        %v3233 = vunpack.c.l.b16 %v3194
        %v3234 = vunpack.c.l.b16 %v3195
        %v3235 = vunpack.c.l.b16 %v3196
        %v3236 = vunpack.c.l.b16 %v3197
        %v3237 = vunpack.c.l.b16 %v3198
        %v3238 = vpack.c.b16 %v3223, %v3222
        %v3239 = vpack.c.b16 %v3225, %v3224
        %v3240 = vpack.c.b16 %v3227, %v3226
        %v3241 = vpack.c.b16 %v3229, %v3228
        %v3242 = vpack.c.b16 %v3231, %v3230
        %v3243 = vpack.c.b16 %v3233, %v3232
        %v3244 = vpack.c.b16 %v3235, %v3234
        %v3245 = vpack.c.b16 %v3237, %v3236
        %3254 = vmatprep.subr.bf16.mxu0 0
        %3255 = vmatpush1.bf16.msra.mxu0 %v3238
        %3256 = vmatprep.subr.bf16.mxu0 0
        %3257 = vmatpush1.bf16.msra.mxu0 %v3239
        %3258 = vmatprep.subr.bf16.mxu0 0
        %3259 = vmatpush1.bf16.msra.mxu0 %v3240
        %3260 = vmatprep.subr.bf16.mxu0 0
        %3261 = vmatpush1.bf16.msra.mxu0 %v3241
        %3262 = vmatprep.subr.bf16.mxu0 0
        %3263 = vmatpush1.bf16.msra.mxu0 %v3242
        %3264 = vmatprep.subr.bf16.mxu0 0
        %3265 = vmatpush1.bf16.msra.mxu0 %v3243
        %3266 = vmatprep.subr.bf16.mxu0 0
        %3267 = vmatpush1.bf16.msra.mxu0 %v3244
        %3268 = vmatprep.subr.bf16.mxu0 0
        %3269 = vmatpush1.bf16.msra.mxu0 %v3245
        %3270 = vmatprep.subr.bf16.mxu0 0
        %3271 = vmatpush1.bf16.msra.mxu0 0
        %3272 = vmatprep.subr.bf16.mxu0 0
        %3273 = vmatpush1.bf16.msra.mxu0 0
        %3274 = vmatprep.subr.bf16.mxu0 0
        %3275 = vmatpush1.bf16.msra.mxu0 0
        %3276 = vmatprep.subr.bf16.mxu0 0
        %3277 = vmatpush1.bf16.msra.mxu0 0
        %3278 = vmatprep.subr.bf16.mxu0 0
        %3279 = vmatpush1.bf16.msra.mxu0 0
        %3280 = vmatprep.subr.bf16.mxu0 0
        %3281 = vmatpush1.bf16.msra.mxu0 0
        %3282 = vmatprep.subr.bf16.mxu0 0
        %3283 = vmatpush1.bf16.msra.mxu0 0
        %3284 = vmatprep.subr.bf16.mxu0 0
        %3285 = vmatpush1.bf16.msra.mxu0 0
        %3286 = vmatprep.mubr.bf16.mxu0 0
        %3287 = vmatmul.mubr.bf16.gmra.mrb[0].mxu0 %v3182
        %v3288 = vpop.f32.mrb[0].mxu0
        %v3289 = vadd.f32 %v3204, %v3288
        %v3290 = vpop.f32.mrb[0].mxu0
        %v3291 = vpop.f32.mrb[0].mxu0
        %v3292 = vadd.f32 %v3204, %v3291
        %v3293 = vpop.f32.mrb[0].mxu0
        %3294 = vdwg.mxu0
        %v3295 = vmax.f32 %v3289, 0.0
        %v3296 = vmax.f32 %v3292, 0.0
        %v3297 = vpack.c.bf16 %v3296, %v3295
        %v3298 = vld [vmem:[#allocation12] sm:$0xf]
        %v3299 = vld [vmem:[#allocation12 + $0x4] sm:$0xf]
        %v3300 = vld [vmem:[#allocation12 + $0x8] sm:$0xf]
        %v3301 = vld [vmem:[#allocation12 + $0xc] sm:$0xf]
        %v3302 = vld [vmem:[#allocation12 + $0x10] sm:$0xf]
        %v3303 = vld [vmem:[#allocation12 + $0x14] sm:$0xf]
        %v3304 = vld [vmem:[#allocation12 + $0x18] sm:$0xf]
        %v3305 = vld [vmem:[#allocation12 + $0x1c] sm:$0xf]
        %v3306 = vld [vmem:[%s10] sm:$0x1]
        %v3308 = vlaneseq
        %v3309 = vshrl.u32 %v3308, 7
        %v3310 = vsub.s32 0, %v3309
        %v3311 = vrot.slane %v3306, %v3310
        %v3321 = vunpack.c.l.b16 %v3298
        %v3322 = vunpack.c.l.b16 %v3299
        %v3323 = vunpack.c.l.b16 %v3300
        %v3324 = vunpack.c.l.b16 %v3301
        %v3325 = vunpack.c.l.b16 %v3302
        %v3326 = vunpack.c.l.b16 %v3303
        %v3327 = vunpack.c.l.b16 %v3304
        %v3328 = vunpack.c.l.b16 %v3305
        %v3329 = vpack.c.b16 %v3322, %v3321
        %v3330 = vpack.c.b16 %v3324, %v3323
        %v3331 = vpack.c.b16 %v3326, %v3325
        %v3332 = vpack.c.b16 %v3328, %v3327
        %vm3337 = vcmask 523264
        %v3339 = vsel %vm3337, %v3297, 0
        %3341 = vmatprep.subr.bf16.mxu0 0
        %3342 = vmatpush1.bf16.msra.mxu0 %v3329
        %3343 = vmatprep.subr.bf16.mxu0 0
        %3344 = vmatpush1.bf16.msra.mxu0 %v3330
        %3345 = vmatprep.subr.bf16.mxu0 0
        %3346 = vmatpush1.bf16.msra.mxu0 %v3331
        %3347 = vmatprep.subr.bf16.mxu0 0
        %3348 = vmatpush1.bf16.msra.mxu0 %v3332
        %3349 = vmatprep.subr.bf16.mxu0 0
        %3350 = vmatpush1.bf16.msra.mxu0 0
        %3351 = vmatprep.subr.bf16.mxu0 0
        %3352 = vmatpush1.bf16.msra.mxu0 0
        %3353 = vmatprep.subr.bf16.mxu0 0
        %3354 = vmatpush1.bf16.msra.mxu0 0
        %3355 = vmatprep.subr.bf16.mxu0 0
        %3356 = vmatpush1.bf16.msra.mxu0 0
        %3357 = vmatprep.subr.bf16.mxu0 0
        %3358 = vmatpush1.bf16.msra.mxu0 0
        %3359 = vmatprep.subr.bf16.mxu0 0
        %3360 = vmatpush1.bf16.msra.mxu0 0
        %3361 = vmatprep.subr.bf16.mxu0 0
        %3362 = vmatpush1.bf16.msra.mxu0 0
        %3363 = vmatprep.subr.bf16.mxu0 0
        %3364 = vmatpush1.bf16.msra.mxu0 0
        %3365 = vmatprep.subr.bf16.mxu0 0
        %3366 = vmatpush1.bf16.msra.mxu0 0
        %3367 = vmatprep.subr.bf16.mxu0 0
        %3368 = vmatpush1.bf16.msra.mxu0 0
        %3369 = vmatprep.subr.bf16.mxu0 0
        %3370 = vmatpush1.bf16.msra.mxu0 0
        %3371 = vmatprep.subr.bf16.mxu0 0
        %3372 = vmatpush1.bf16.msra.mxu0 0
        %3373 = vmatprep.mubr.bf16.mxu0 0
        %3374 = vmatmul.mubr.bf16.gmra.mrb[0].mxu0 %v3339
        %v3375 = vpop.f32.mrb[0].mxu0
        %v3376 = vadd.f32 %v3311, %v3375
        %v3377 = vpop.f32.mrb[0].mxu0
        %v3378 = vpop.f32.mrb[0].mxu0
        %v3379 = vadd.f32 %v3311, %v3378
        %v3380 = vpop.f32.mrb[0].mxu0
        %3381 = vdwg.mxu0
        %v3382 = vmax.f32 %v3376, 0.0
        %v3383 = vmax.f32 %v3379, 0.0
        %v3384 = vpack.c.bf16 %v3383, %v3382
        %v3385 = vld [vmem:[#allocation13] sm:$0xf]
        %v3386 = vld [vmem:[#allocation13 + $0x4] sm:$0xf]
        %v3387 = vld [vmem:[#allocation13 + $0x8] sm:$0xf]
        %v3388 = vld [vmem:[#allocation13 + $0xc] sm:$0xf]
        %v3389 = vld [vmem:[#allocation13 + $0x10] sm:$0xf]
        %v3390 = vld [vmem:[#allocation13 + $0x14] sm:$0xf]
        %v3391 = vld [vmem:[#allocation13 + $0x18] sm:$0xf]
        %v3392 = vld [vmem:[#allocation13 + $0x1c] sm:$0xf]
        %v3393 = vld [vmem:[%s12] sm:$0x1]
        %v3395 = vlaneseq
        %v3396 = vshrl.u32 %v3395, 7
        %v3397 = vsub.s32 0, %v3396
        %v3398 = vrot.slane %v3393, %v3397
        %v3408 = vunpack.c.l.b16 %v3385
        %v3409 = vunpack.c.l.b16 %v3386
        %v3410 = vunpack.c.l.b16 %v3387
        %v3411 = vunpack.c.l.b16 %v3388
        %v3412 = vunpack.c.l.b16 %v3389
        %v3413 = vunpack.c.l.b16 %v3390
        %v3414 = vunpack.c.l.b16 %v3391
        %v3415 = vunpack.c.l.b16 %v3392
        %v3416 = vpack.c.b16 %v3409, %v3408
        %v3417 = vpack.c.b16 %v3411, %v3410
        %v3418 = vpack.c.b16 %v3413, %v3412
        %v3419 = vpack.c.b16 %v3415, %v3414
        %v3425 = vsel %vm3337, %v3384, 0
        %3427 = vmatprep.subr.bf16.mxu0 0
        %3428 = vmatpush1.bf16.msra.mxu0 %v3416
        %3429 = vmatprep.subr.bf16.mxu0 0
        %3430 = vmatpush1.bf16.msra.mxu0 %v3417
        %3431 = vmatprep.subr.bf16.mxu0 0
        %3432 = vmatpush1.bf16.msra.mxu0 %v3418
        %3433 = vmatprep.subr.bf16.mxu0 0
        %3434 = vmatpush1.bf16.msra.mxu0 %v3419
        %3435 = vmatprep.subr.bf16.mxu0 0
        %3436 = vmatpush1.bf16.msra.mxu0 0
        %3437 = vmatprep.subr.bf16.mxu0 0
        %3438 = vmatpush1.bf16.msra.mxu0 0
        %3439 = vmatprep.subr.bf16.mxu0 0
        %3440 = vmatpush1.bf16.msra.mxu0 0
        %3441 = vmatprep.subr.bf16.mxu0 0
        %3442 = vmatpush1.bf16.msra.mxu0 0
        %3443 = vmatprep.subr.bf16.mxu0 0
        %3444 = vmatpush1.bf16.msra.mxu0 0
        %3445 = vmatprep.subr.bf16.mxu0 0
        %3446 = vmatpush1.bf16.msra.mxu0 0
        %3447 = vmatprep.subr.bf16.mxu0 0
        %3448 = vmatpush1.bf16.msra.mxu0 0
        %3449 = vmatprep.subr.bf16.mxu0 0
        %3450 = vmatpush1.bf16.msra.mxu0 0
        %3451 = vmatprep.subr.bf16.mxu0 0
        %3452 = vmatpush1.bf16.msra.mxu0 0
        %3453 = vmatprep.subr.bf16.mxu0 0
        %3454 = vmatpush1.bf16.msra.mxu0 0
        %3455 = vmatprep.subr.bf16.mxu0 0
        %3456 = vmatpush1.bf16.msra.mxu0 0
        %3457 = vmatprep.subr.bf16.mxu0 0
        %3458 = vmatpush1.bf16.msra.mxu0 0
        %3459 = vmatprep.mubr.bf16.mxu0 0
        %3460 = vmatmul.mubr.bf16.gmra.mrb[0].mxu0 %v3425
        %v3461 = vpop.f32.mrb[0].mxu0
        %v3462 = vadd.f32 %v3398, %v3461
        %v3463 = vpop.f32.mrb[0].mxu0
        %v3464 = vpop.f32.mrb[0].mxu0
        %v3465 = vadd.f32 %v3398, %v3464
        %v3466 = vpop.f32.mrb[0].mxu0
        %3467 = vdwg.mxu0
        %v3468 = vmax.f32 %v3462, 0.0
        %v3469 = vmax.f32 %v3465, 0.0
        %v3470 = vpack.c.bf16 %v3469, %v3468
        %v3471 = vld [vmem:[%s13] sm:$0xff]
        %v3472 = vld [vmem:[%s13 + $0x8] sm:$0xff]
        %v3473 = vld [vmem:[%s13 + $0x10] sm:$0xff]
        %v3474 = vld [vmem:[%s13 + $0x18] sm:$0xff]
        %v3475 = vld [vmem:[%s13 + $0x20] sm:$0xff]
        %v3476 = vld [vmem:[%s13 + $0x28] sm:$0xff]
        %v3477 = vld [vmem:[%s13 + $0x30] sm:$0xff]
        %v3478 = vld [vmem:[%s13 + $0x38] sm:$0xff]
        %v3479 = vld [vmem:[%s13 + $0x40] sm:$0xff]
        %v3480 = vld [vmem:[%s13 + $0x48] sm:$0xff]
        %v3481 = vld [vmem:[%s13 + $0x50] sm:$0xff]
        %v3482 = vld [vmem:[%s13 + $0x58] sm:$0xff]
        %v3483 = vld [vmem:[%s13 + $0x60] sm:$0xff]
        %v3484 = vld [vmem:[%s13 + $0x68] sm:$0xff]
        %v3485 = vld [vmem:[%s13 + $0x70] sm:$0xff]
        %v3486 = vld [vmem:[%s13 + $0x78] sm:$0xff]
        %v3487 = vld [vmem:[%s14] sm:$0x3]
        %v3489 = vlaneseq
        %v3490 = vshrl.u32 %v3489, 7
        %v3491 = vsub.s32 0, %v3490
        %v3492 = vrot.slane %v3487, %v3491
        %v3493 = vlaneseq
        %v3494 = vshrl.u32 %v3493, 7
        %v3495 = vsub.s32 1, %v3494
        %v3496 = vrot.slane %v3487, %v3495
        %v3515 = vunpack.c.l.b16 %v3471
        %v3516 = vunpack.c.h.b16 %v3471
        %v3517 = vunpack.c.l.b16 %v3472
        %v3518 = vunpack.c.h.b16 %v3472
        %v3519 = vunpack.c.l.b16 %v3473
        %v3520 = vunpack.c.h.b16 %v3473
        %v3521 = vunpack.c.l.b16 %v3474
        %v3522 = vunpack.c.h.b16 %v3474
        %v3523 = vunpack.c.l.b16 %v3475
        %v3524 = vunpack.c.h.b16 %v3475
        %v3525 = vunpack.c.l.b16 %v3476
        %v3526 = vunpack.c.h.b16 %v3476
        %v3527 = vunpack.c.l.b16 %v3477
        %v3528 = vunpack.c.h.b16 %v3477
        %v3529 = vunpack.c.l.b16 %v3478
        %v3530 = vunpack.c.h.b16 %v3478
        %v3531 = vunpack.c.l.b16 %v3479
        %v3532 = vunpack.c.h.b16 %v3479
        %v3533 = vunpack.c.l.b16 %v3480
        %v3534 = vunpack.c.h.b16 %v3480
        %v3535 = vunpack.c.l.b16 %v3481
        %v3536 = vunpack.c.h.b16 %v3481
        %v3537 = vunpack.c.l.b16 %v3482
        %v3538 = vunpack.c.h.b16 %v3482
        %v3539 = vunpack.c.l.b16 %v3483
        %v3540 = vunpack.c.h.b16 %v3483
        %v3541 = vunpack.c.l.b16 %v3484
        %v3542 = vunpack.c.h.b16 %v3484
        %v3543 = vunpack.c.l.b16 %v3485
        %v3544 = vunpack.c.h.b16 %v3485
        %v3545 = vunpack.c.l.b16 %v3486
        %v3546 = vunpack.c.h.b16 %v3486
        %v3547 = vpack.c.b16 %v3517, %v3515
        %v3548 = vpack.c.b16 %v3518, %v3516
        %v3549 = vpack.c.b16 %v3521, %v3519
        %v3550 = vpack.c.b16 %v3522, %v3520
        %v3551 = vpack.c.b16 %v3525, %v3523
        %v3552 = vpack.c.b16 %v3526, %v3524
        %v3553 = vpack.c.b16 %v3529, %v3527
        %v3554 = vpack.c.b16 %v3530, %v3528
        %v3555 = vpack.c.b16 %v3533, %v3531
        %v3556 = vpack.c.b16 %v3534, %v3532
        %v3557 = vpack.c.b16 %v3537, %v3535
        %v3558 = vpack.c.b16 %v3538, %v3536
        %v3559 = vpack.c.b16 %v3541, %v3539
        %v3560 = vpack.c.b16 %v3542, %v3540
        %v3561 = vpack.c.b16 %v3545, %v3543
        %v3562 = vpack.c.b16 %v3546, %v3544
        %3579 = vmatprep.subr.bf16.mxu0 %v3548
        %3580 = vmatpush1.bf16.msra.mxu0 %v3547
        %3581 = vmatprep.subr.bf16.mxu0 %v3550
        %3582 = vmatpush1.bf16.msra.mxu0 %v3549
        %3583 = vmatprep.subr.bf16.mxu0 %v3552
        %3584 = vmatpush1.bf16.msra.mxu0 %v3551
        %3585 = vmatprep.subr.bf16.mxu0 %v3554
        %3586 = vmatpush1.bf16.msra.mxu0 %v3553
        %3587 = vmatprep.subr.bf16.mxu0 %v3556
        %3588 = vmatpush1.bf16.msra.mxu0 %v3555
        %3589 = vmatprep.subr.bf16.mxu0 %v3558
        %3590 = vmatpush1.bf16.msra.mxu0 %v3557
        %3591 = vmatprep.subr.bf16.mxu0 %v3560
        %3592 = vmatpush1.bf16.msra.mxu0 %v3559
        %3593 = vmatprep.subr.bf16.mxu0 %v3562
        %3594 = vmatpush1.bf16.msra.mxu0 %v3561
        %3595 = vmatprep.subr.bf16.mxu0 0
        %3596 = vmatpush1.bf16.msra.mxu0 0
        %3597 = vmatprep.subr.bf16.mxu0 0
        %3598 = vmatpush1.bf16.msra.mxu0 0
        %3599 = vmatprep.subr.bf16.mxu0 0
        %3600 = vmatpush1.bf16.msra.mxu0 0
        %3601 = vmatprep.subr.bf16.mxu0 0
        %3602 = vmatpush1.bf16.msra.mxu0 0
        %3603 = vmatprep.subr.bf16.mxu0 0
        %3604 = vmatpush1.bf16.msra.mxu0 0
        %3605 = vmatprep.subr.bf16.mxu0 0
        %3606 = vmatpush1.bf16.msra.mxu0 0
        %3607 = vmatprep.subr.bf16.mxu0 0
        %3608 = vmatpush1.bf16.msra.mxu0 0
        %3609 = vmatprep.subr.bf16.mxu0 0
        %3610 = vmatpush1.bf16.msra.mxu0 0
        %3611 = vmatprep.mubr.bf16.mxu0 0
        %3612 = vmatmul.mubr.bf16.gmra.mrb[0].mxu0 %v3470
        %v3613 = vpop.f32.mrb[0].mxu0
        %v3614 = vadd.f32 %v3492, %v3613
        %v3615 = vpop.f32.mrb[0].mxu0
        %v3616 = vadd.f32 %v3496, %v3615
        %v3617 = vpop.f32.mrb[0].mxu0
        %v3618 = vadd.f32 %v3492, %v3617
        %v3619 = vpop.f32.mrb[0].mxu0
        %v3620 = vadd.f32 %v3496, %v3619
        %3621 = vdwg.mxu0
        %v3622 = vmax.f32 %v3614, 0.0
        %v3623 = vmax.f32 %v3616, 0.0
        %v3624 = vmax.f32 %v3618, 0.0
        %v3625 = vmax.f32 %v3620, 0.0
        %v3626 = vpack.c.bf16 %v3624, %v3622
        %v3627 = vpack.c.bf16 %v3625, %v3623
        %v3628 = vld [vmem:[#allocation15] sm:$0xff]
        %v3629 = vld [vmem:[#allocation15 + $0x8] sm:$0xff]
        %v3630 = vld [vmem:[#allocation15 + $0x10] sm:$0xff]
        %v3631 = vld [vmem:[#allocation15 + $0x18] sm:$0xff]
        %v3632 = vld [vmem:[#allocation15 + $0x20] sm:$0xff]
        %v3633 = vld [vmem:[#allocation15 + $0x28] sm:$0xff]
        %v3634 = vld [vmem:[#allocation15 + $0x30] sm:$0xff]
        %v3635 = vld [vmem:[#allocation15 + $0x38] sm:$0xff]
        %v3636 = vld [vmem:[#allocation15 + $0x40] sm:$0xff]
        %v3637 = vld [vmem:[#allocation15 + $0x48] sm:$0xff]
        %v3638 = vld [vmem:[#allocation15 + $0x50] sm:$0xff]
        %v3639 = vld [vmem:[#allocation15 + $0x58] sm:$0xff]
        %v3640 = vld [vmem:[#allocation15 + $0x60] sm:$0xff]
        %v3641 = vld [vmem:[#allocation15 + $0x68] sm:$0xff]
        %v3642 = vld [vmem:[#allocation15 + $0x70] sm:$0xff]
        %v3643 = vld [vmem:[#allocation15 + $0x78] sm:$0xff]
        %v3644 = vld [vmem:[#allocation15 + $0x80] sm:$0xff]
        %v3645 = vld [vmem:[#allocation15 + $0x88] sm:$0xff]
        %v3646 = vld [vmem:[#allocation15 + $0x90] sm:$0xff]
        %v3647 = vld [vmem:[#allocation15 + $0x98] sm:$0xff]
        %v3648 = vld [vmem:[#allocation15 + $0xa0] sm:$0xff]
        %v3649 = vld [vmem:[#allocation15 + $0xa8] sm:$0xff]
        %v3650 = vld [vmem:[#allocation15 + $0xb0] sm:$0xff]
        %v3651 = vld [vmem:[#allocation15 + $0xb8] sm:$0xff]
        %v3652 = vld [vmem:[#allocation15 + $0xc0] sm:$0xff]
        %v3653 = vld [vmem:[#allocation15 + $0xc8] sm:$0xff]
        %v3654 = vld [vmem:[#allocation15 + $0xd0] sm:$0xff]
        %v3655 = vld [vmem:[#allocation15 + $0xd8] sm:$0xff]
        %v3656 = vld [vmem:[#allocation15 + $0xe0] sm:$0xff]
        %v3657 = vld [vmem:[#allocation15 + $0xe8] sm:$0xff]
        %v3658 = vld [vmem:[#allocation15 + $0xf0] sm:$0xff]
        %v3659 = vld [vmem:[#allocation15 + $0xf8] sm:$0xff]
        %v3660 = vld [vmem:[#allocation15 + $0x100] sm:$0xff]
        %v3661 = vld [vmem:[#allocation15 + $0x108] sm:$0xff]
        %v3662 = vld [vmem:[#allocation15 + $0x110] sm:$0xff]
        %v3663 = vld [vmem:[#allocation15 + $0x118] sm:$0xff]
        %v3664 = vld [vmem:[#allocation15 + $0x120] sm:$0xff]
        %v3665 = vld [vmem:[#allocation15 + $0x128] sm:$0xff]
        %v3666 = vld [vmem:[#allocation15 + $0x130] sm:$0xff]
        %v3667 = vld [vmem:[#allocation15 + $0x138] sm:$0xff]
        %v3668 = vld [vmem:[#allocation15 + $0x140] sm:$0xff]
        %v3669 = vld [vmem:[#allocation15 + $0x148] sm:$0xff]
        %v3670 = vld [vmem:[#allocation15 + $0x150] sm:$0xff]
        %v3671 = vld [vmem:[#allocation15 + $0x158] sm:$0xff]
        %v3672 = vld [vmem:[#allocation15 + $0x160] sm:$0xff]
        %v3673 = vld [vmem:[#allocation15 + $0x168] sm:$0xff]
        %v3674 = vld [vmem:[#allocation15 + $0x170] sm:$0xff]
        %v3675 = vld [vmem:[#allocation15 + $0x178] sm:$0xff]
        %v3676 = vld [vmem:[#allocation15 + $0x180] sm:$0xff]
        %v3677 = vld [vmem:[#allocation15 + $0x188] sm:$0xff]
        %v3678 = vld [vmem:[#allocation15 + $0x190] sm:$0xff]
        %v3679 = vld [vmem:[#allocation15 + $0x198] sm:$0xff]
        %v3680 = vld [vmem:[#allocation15 + $0x1a0] sm:$0xff]
        %v3681 = vld [vmem:[#allocation15 + $0x1a8] sm:$0xff]
        %v3682 = vld [vmem:[#allocation15 + $0x1b0] sm:$0xff]
        %v3683 = vld [vmem:[#allocation15 + $0x1b8] sm:$0xff]
        %v3684 = vld [vmem:[#allocation15 + $0x1c0] sm:$0xff]
        %v3685 = vld [vmem:[#allocation15 + $0x1c8] sm:$0xff]
        %v3686 = vld [vmem:[#allocation15 + $0x1d0] sm:$0xff]
        %v3687 = vld [vmem:[#allocation15 + $0x1d8] sm:$0xff]
        %v3688 = vld [vmem:[#allocation15 + $0x1e0] sm:$0xff]
        %v3689 = vld [vmem:[#allocation15 + $0x1e8] sm:$0xff]
        %v3690 = vld [vmem:[#allocation15 + $0x1f0] sm:$0xff]
        %v3691 = vld [vmem:[#allocation15 + $0x1f8] sm:$0xff]
        %v3692 = vld [vmem:[%s16] sm:$0xf]
        %v3694 = vlaneseq
        %v3695 = vshrl.u32 %v3694, 7
        %v3696 = vsub.s32 0, %v3695
        %v3697 = vrot.slane %v3692, %v3696
        %v3698 = vlaneseq
        %v3699 = vshrl.u32 %v3698, 7
        %v3700 = vsub.s32 1, %v3699
        %v3701 = vrot.slane %v3692, %v3700
        %v3702 = vlaneseq
        %v3703 = vshrl.u32 %v3702, 7
        %v3704 = vsub.s32 2, %v3703
        %v3705 = vrot.slane %v3692, %v3704
        %v3706 = vlaneseq
        %v3707 = vshrl.u32 %v3706, 7
        %v3708 = vsub.s32 3, %v3707
        %v3709 = vrot.slane %v3692, %v3708
        %v3778 = vunpack.c.l.b16 %v3628
        %v3779 = vunpack.c.h.b16 %v3628
        %v3780 = vunpack.c.l.b16 %v3629
        %v3781 = vunpack.c.h.b16 %v3629
        %v3782 = vunpack.c.l.b16 %v3630
        %v3783 = vunpack.c.h.b16 %v3630
        %v3784 = vunpack.c.l.b16 %v3631
        %v3785 = vunpack.c.h.b16 %v3631
        %v3786 = vunpack.c.l.b16 %v3632
        %v3787 = vunpack.c.h.b16 %v3632
        %v3788 = vunpack.c.l.b16 %v3633
        %v3789 = vunpack.c.h.b16 %v3633
        %v3790 = vunpack.c.l.b16 %v3634
        %v3791 = vunpack.c.h.b16 %v3634
        %v3792 = vunpack.c.l.b16 %v3635
        %v3793 = vunpack.c.h.b16 %v3635
        %v3794 = vunpack.c.l.b16 %v3636
        %v3795 = vunpack.c.h.b16 %v3636
        %v3796 = vunpack.c.l.b16 %v3637
        %v3797 = vunpack.c.h.b16 %v3637
        %v3798 = vunpack.c.l.b16 %v3638
        %v3799 = vunpack.c.h.b16 %v3638
        %v3800 = vunpack.c.l.b16 %v3639
        %v3801 = vunpack.c.h.b16 %v3639
        %v3802 = vunpack.c.l.b16 %v3640
        %v3803 = vunpack.c.h.b16 %v3640
        %v3804 = vunpack.c.l.b16 %v3641
        %v3805 = vunpack.c.h.b16 %v3641
        %v3806 = vunpack.c.l.b16 %v3642
        %v3807 = vunpack.c.h.b16 %v3642
        %v3808 = vunpack.c.l.b16 %v3643
        %v3809 = vunpack.c.h.b16 %v3643
        %v3810 = vunpack.c.l.b16 %v3644
        %v3811 = vunpack.c.h.b16 %v3644
        %v3812 = vunpack.c.l.b16 %v3645
        %v3813 = vunpack.c.h.b16 %v3645
        %v3814 = vunpack.c.l.b16 %v3646
        %v3815 = vunpack.c.h.b16 %v3646
        %v3816 = vunpack.c.l.b16 %v3647
        %v3817 = vunpack.c.h.b16 %v3647
        %v3818 = vunpack.c.l.b16 %v3648
        %v3819 = vunpack.c.h.b16 %v3648
        %v3820 = vunpack.c.l.b16 %v3649
        %v3821 = vunpack.c.h.b16 %v3649
        %v3822 = vunpack.c.l.b16 %v3650
        %v3823 = vunpack.c.h.b16 %v3650
        %v3824 = vunpack.c.l.b16 %v3651
        %v3825 = vunpack.c.h.b16 %v3651
        %v3826 = vunpack.c.l.b16 %v3652
        %v3827 = vunpack.c.h.b16 %v3652
        %v3828 = vunpack.c.l.b16 %v3653
        %v3829 = vunpack.c.h.b16 %v3653
        %v3830 = vunpack.c.l.b16 %v3654
        %v3831 = vunpack.c.h.b16 %v3654
        %v3832 = vunpack.c.l.b16 %v3655
        %v3833 = vunpack.c.h.b16 %v3655
        %v3834 = vunpack.c.l.b16 %v3656
        %v3835 = vunpack.c.h.b16 %v3656
        %v3836 = vunpack.c.l.b16 %v3657
        %v3837 = vunpack.c.h.b16 %v3657
        %v3838 = vunpack.c.l.b16 %v3658
        %v3839 = vunpack.c.h.b16 %v3658
        %v3840 = vunpack.c.l.b16 %v3659
        %v3841 = vunpack.c.h.b16 %v3659
        %v3842 = vunpack.c.l.b16 %v3660
        %v3843 = vunpack.c.h.b16 %v3660
        %v3844 = vunpack.c.l.b16 %v3661
        %v3845 = vunpack.c.h.b16 %v3661
        %v3846 = vunpack.c.l.b16 %v3662
        %v3847 = vunpack.c.h.b16 %v3662
        %v3848 = vunpack.c.l.b16 %v3663
        %v3849 = vunpack.c.h.b16 %v3663
        %v3850 = vunpack.c.l.b16 %v3664
        %v3851 = vunpack.c.h.b16 %v3664
        %v3852 = vunpack.c.l.b16 %v3665
        %v3853 = vunpack.c.h.b16 %v3665
        %v3854 = vunpack.c.l.b16 %v3666
        %v3855 = vunpack.c.h.b16 %v3666
        %v3856 = vunpack.c.l.b16 %v3667
        %v3857 = vunpack.c.h.b16 %v3667
        %v3858 = vunpack.c.l.b16 %v3668
        %v3859 = vunpack.c.h.b16 %v3668
        %v3860 = vunpack.c.l.b16 %v3669
        %v3861 = vunpack.c.h.b16 %v3669
        %v3862 = vunpack.c.l.b16 %v3670
        %v3863 = vunpack.c.h.b16 %v3670
        %v3864 = vunpack.c.l.b16 %v3671
        %v3865 = vunpack.c.h.b16 %v3671
        %v3866 = vunpack.c.l.b16 %v3672
        %v3867 = vunpack.c.h.b16 %v3672
        %v3868 = vunpack.c.l.b16 %v3673
        %v3869 = vunpack.c.h.b16 %v3673
        %v3870 = vunpack.c.l.b16 %v3674
        %v3871 = vunpack.c.h.b16 %v3674
        %v3872 = vunpack.c.l.b16 %v3675
        %v3873 = vunpack.c.h.b16 %v3675
        %v3874 = vunpack.c.l.b16 %v3676
        %v3875 = vunpack.c.h.b16 %v3676
        %v3876 = vunpack.c.l.b16 %v3677
        %v3877 = vunpack.c.h.b16 %v3677
        %v3878 = vunpack.c.l.b16 %v3678
        %v3879 = vunpack.c.h.b16 %v3678
        %v3880 = vunpack.c.l.b16 %v3679
        %v3881 = vunpack.c.h.b16 %v3679
        %v3882 = vunpack.c.l.b16 %v3680
        %v3883 = vunpack.c.h.b16 %v3680
        %v3884 = vunpack.c.l.b16 %v3681
        %v3885 = vunpack.c.h.b16 %v3681
        %v3886 = vunpack.c.l.b16 %v3682
        %v3887 = vunpack.c.h.b16 %v3682
        %v3888 = vunpack.c.l.b16 %v3683
        %v3889 = vunpack.c.h.b16 %v3683
        %v3890 = vunpack.c.l.b16 %v3684
        %v3891 = vunpack.c.h.b16 %v3684
        %v3892 = vunpack.c.l.b16 %v3685
        %v3893 = vunpack.c.h.b16 %v3685
        %v3894 = vunpack.c.l.b16 %v3686
        %v3895 = vunpack.c.h.b16 %v3686
        %v3896 = vunpack.c.l.b16 %v3687
        %v3897 = vunpack.c.h.b16 %v3687
        %v3898 = vunpack.c.l.b16 %v3688
        %v3899 = vunpack.c.h.b16 %v3688
        %v3900 = vunpack.c.l.b16 %v3689
        %v3901 = vunpack.c.h.b16 %v3689
        %v3902 = vunpack.c.l.b16 %v3690
        %v3903 = vunpack.c.h.b16 %v3690
        %v3904 = vunpack.c.l.b16 %v3691
        %v3905 = vunpack.c.h.b16 %v3691
        %v3906 = vpack.c.b16 %v3782, %v3778
        %v3907 = vpack.c.b16 %v3783, %v3779
        %v3908 = vpack.c.b16 %v3784, %v3780
        %v3909 = vpack.c.b16 %v3785, %v3781
        %v3910 = vpack.c.b16 %v3790, %v3786
        %v3911 = vpack.c.b16 %v3791, %v3787
        %v3912 = vpack.c.b16 %v3792, %v3788
        %v3913 = vpack.c.b16 %v3793, %v3789
        %v3914 = vpack.c.b16 %v3798, %v3794
        %v3915 = vpack.c.b16 %v3799, %v3795
        %v3916 = vpack.c.b16 %v3800, %v3796
        %v3917 = vpack.c.b16 %v3801, %v3797
        %v3918 = vpack.c.b16 %v3806, %v3802
        %v3919 = vpack.c.b16 %v3807, %v3803
        %v3920 = vpack.c.b16 %v3808, %v3804
        %v3921 = vpack.c.b16 %v3809, %v3805
        %v3922 = vpack.c.b16 %v3814, %v3810
        %v3923 = vpack.c.b16 %v3815, %v3811
        %v3924 = vpack.c.b16 %v3816, %v3812
        %v3925 = vpack.c.b16 %v3817, %v3813
        %v3926 = vpack.c.b16 %v3822, %v3818
        %v3927 = vpack.c.b16 %v3823, %v3819
        %v3928 = vpack.c.b16 %v3824, %v3820
        %v3929 = vpack.c.b16 %v3825, %v3821
        %v3930 = vpack.c.b16 %v3830, %v3826
        %v3931 = vpack.c.b16 %v3831, %v3827
        %v3932 = vpack.c.b16 %v3832, %v3828
        %v3933 = vpack.c.b16 %v3833, %v3829
        %v3934 = vpack.c.b16 %v3838, %v3834
        %v3935 = vpack.c.b16 %v3839, %v3835
        %v3936 = vpack.c.b16 %v3840, %v3836
        %v3937 = vpack.c.b16 %v3841, %v3837
        %v3938 = vpack.c.b16 %v3846, %v3842
        %v3939 = vpack.c.b16 %v3847, %v3843
        %v3940 = vpack.c.b16 %v3848, %v3844
        %v3941 = vpack.c.b16 %v3849, %v3845
        %v3942 = vpack.c.b16 %v3854, %v3850
        %v3943 = vpack.c.b16 %v3855, %v3851
        %v3944 = vpack.c.b16 %v3856, %v3852
        %v3945 = vpack.c.b16 %v3857, %v3853
        %v3946 = vpack.c.b16 %v3862, %v3858
        %v3947 = vpack.c.b16 %v3863, %v3859
        %v3948 = vpack.c.b16 %v3864, %v3860
        %v3949 = vpack.c.b16 %v3865, %v3861
        %v3950 = vpack.c.b16 %v3870, %v3866
        %v3951 = vpack.c.b16 %v3871, %v3867
        %v3952 = vpack.c.b16 %v3872, %v3868
        %v3953 = vpack.c.b16 %v3873, %v3869
        %v3954 = vpack.c.b16 %v3878, %v3874
        %v3955 = vpack.c.b16 %v3879, %v3875
        %v3956 = vpack.c.b16 %v3880, %v3876
        %v3957 = vpack.c.b16 %v3881, %v3877
        %v3958 = vpack.c.b16 %v3886, %v3882
        %v3959 = vpack.c.b16 %v3887, %v3883
        %v3960 = vpack.c.b16 %v3888, %v3884
        %v3961 = vpack.c.b16 %v3889, %v3885
        %v3962 = vpack.c.b16 %v3894, %v3890
        %v3963 = vpack.c.b16 %v3895, %v3891
        %v3964 = vpack.c.b16 %v3896, %v3892
        %v3965 = vpack.c.b16 %v3897, %v3893
        %v3966 = vpack.c.b16 %v3902, %v3898
        %v3967 = vpack.c.b16 %v3903, %v3899
        %v3968 = vpack.c.b16 %v3904, %v3900
        %v3969 = vpack.c.b16 %v3905, %v3901
        %4034 = vmatprep.subr.bf16.mxu0 %v3907
        %4035 = vmatpush1.bf16.msra.mxu0 %v3906
        %4036 = vmatprep.subr.bf16.mxu0 %v3911
        %4037 = vmatpush1.bf16.msra.mxu0 %v3910
        %4038 = vmatprep.subr.bf16.mxu0 %v3915
        %4039 = vmatpush1.bf16.msra.mxu0 %v3914
        %4040 = vmatprep.subr.bf16.mxu0 %v3919
        %4041 = vmatpush1.bf16.msra.mxu0 %v3918
        %4042 = vmatprep.subr.bf16.mxu0 %v3923
        %4043 = vmatpush1.bf16.msra.mxu0 %v3922
        %4044 = vmatprep.subr.bf16.mxu0 %v3927
        %4045 = vmatpush1.bf16.msra.mxu0 %v3926
        %4046 = vmatprep.subr.bf16.mxu0 %v3931
        %4047 = vmatpush1.bf16.msra.mxu0 %v3930
        %4048 = vmatprep.subr.bf16.mxu0 %v3935
        %4049 = vmatpush1.bf16.msra.mxu0 %v3934
        %4050 = vmatprep.subr.bf16.mxu0 %v3939
        %4051 = vmatpush1.bf16.msra.mxu0 %v3938
        %4052 = vmatprep.subr.bf16.mxu0 %v3943
        %4053 = vmatpush1.bf16.msra.mxu0 %v3942
        %4054 = vmatprep.subr.bf16.mxu0 %v3947
        %4055 = vmatpush1.bf16.msra.mxu0 %v3946
        %4056 = vmatprep.subr.bf16.mxu0 %v3951
        %4057 = vmatpush1.bf16.msra.mxu0 %v3950
        %4058 = vmatprep.subr.bf16.mxu0 %v3955
        %4059 = vmatpush1.bf16.msra.mxu0 %v3954
        %4060 = vmatprep.subr.bf16.mxu0 %v3959
        %4061 = vmatpush1.bf16.msra.mxu0 %v3958
        %4062 = vmatprep.subr.bf16.mxu0 %v3963
        %4063 = vmatpush1.bf16.msra.mxu0 %v3962
        %4064 = vmatprep.subr.bf16.mxu0 %v3967
        %4065 = vmatpush1.bf16.msra.mxu0 %v3966
        %4066 = vmatprep.mubr.bf16.mxu0 %v3627
        %4067 = vmatmul.mubr.bf16.gmra.mrb[0].mxu0 %v3626
        %v4068 = vpop.f32.mrb[0].mxu0
        %v4069 = vadd.f32 %v3697, %v4068
        %v4070 = vpop.f32.mrb[0].mxu0
        %v4071 = vadd.f32 %v3701, %v4070
        %v4072 = vpop.f32.mrb[0].mxu0
        %v4073 = vadd.f32 %v3697, %v4072
        %v4074 = vpop.f32.mrb[0].mxu0
        %v4075 = vadd.f32 %v3701, %v4074
        %4076 = vdwg.mxu0
        %4077 = vmatprep.subr.bf16.mxu0 %v3909
        %4078 = vmatpush1.bf16.msra.mxu0 %v3908
        %4079 = vmatprep.subr.bf16.mxu0 %v3913
        %4080 = vmatpush1.bf16.msra.mxu0 %v3912
        %4081 = vmatprep.subr.bf16.mxu0 %v3917
        %4082 = vmatpush1.bf16.msra.mxu0 %v3916
        %4083 = vmatprep.subr.bf16.mxu0 %v3921
        %4084 = vmatpush1.bf16.msra.mxu0 %v3920
        %4085 = vmatprep.subr.bf16.mxu0 %v3925
        %4086 = vmatpush1.bf16.msra.mxu0 %v3924
        %4087 = vmatprep.subr.bf16.mxu0 %v3929
        %4088 = vmatpush1.bf16.msra.mxu0 %v3928
        %4089 = vmatprep.subr.bf16.mxu0 %v3933
        %4090 = vmatpush1.bf16.msra.mxu0 %v3932
        %4091 = vmatprep.subr.bf16.mxu0 %v3937
        %4092 = vmatpush1.bf16.msra.mxu0 %v3936
        %4093 = vmatprep.subr.bf16.mxu0 %v3941
        %4094 = vmatpush1.bf16.msra.mxu0 %v3940
        %4095 = vmatprep.subr.bf16.mxu0 %v3945
        %4096 = vmatpush1.bf16.msra.mxu0 %v3944
        %4097 = vmatprep.subr.bf16.mxu0 %v3949
        %4098 = vmatpush1.bf16.msra.mxu0 %v3948
        %4099 = vmatprep.subr.bf16.mxu0 %v3953
        %4100 = vmatpush1.bf16.msra.mxu0 %v3952
        %4101 = vmatprep.subr.bf16.mxu0 %v3957
        %4102 = vmatpush1.bf16.msra.mxu0 %v3956
        %4103 = vmatprep.subr.bf16.mxu0 %v3961
        %4104 = vmatpush1.bf16.msra.mxu0 %v3960
        %4105 = vmatprep.subr.bf16.mxu0 %v3965
        %4106 = vmatpush1.bf16.msra.mxu0 %v3964
        %4107 = vmatprep.subr.bf16.mxu0 %v3969
        %4108 = vmatpush1.bf16.msra.mxu0 %v3968
        %4109 = vmatprep.mubr.bf16.mxu0 %v3627
        %4110 = vmatmul.mubr.bf16.gmra.mrb[0].mxu0 %v3626
        %v4111 = vpop.f32.mrb[0].mxu0
        %v4112 = vadd.f32 %v3705, %v4111
        %v4113 = vpop.f32.mrb[0].mxu0
        %v4114 = vadd.f32 %v3709, %v4113
        %v4115 = vpop.f32.mrb[0].mxu0
        %v4116 = vadd.f32 %v3705, %v4115
        %v4117 = vpop.f32.mrb[0].mxu0
        %v4118 = vadd.f32 %v3709, %v4117
        %4119 = vdwg.mxu0
        %v4120 = vmax.f32 %v4069, 0.0
        %v4121 = vmax.f32 %v4071, 0.0
        %v4122 = vmax.f32 %v4112, 0.0
        %v4123 = vmax.f32 %v4114, 0.0
        %v4124 = vmax.f32 %v4073, 0.0
        %v4125 = vmax.f32 %v4075, 0.0
        %v4126 = vmax.f32 %v4116, 0.0
        %v4127 = vmax.f32 %v4118, 0.0
        %v4128 = vpack.c.bf16 %v4124, %v4120
        %v4129 = vpack.c.bf16 %v4125, %v4121
        %v4130 = vpack.c.bf16 %v4126, %v4122
        %v4131 = vpack.c.bf16 %v4127, %v4123
        %v4132 = vld [vmem:[#allocation16] sm:$0xff]
        %v4133 = vld [vmem:[#allocation16 + $0x8] sm:$0xff]
        %v4134 = vld [vmem:[#allocation16 + $0x10] sm:$0xff]
        %v4135 = vld [vmem:[#allocation16 + $0x18] sm:$0xf]
        %v4136 = vld [vmem:[#allocation16 + $0x1c] sm:$0xff]
        %v4137 = vld [vmem:[#allocation16 + $0x24] sm:$0xff]
        %v4138 = vld [vmem:[#allocation16 + $0x2c] sm:$0xff]
        %v4139 = vld [vmem:[#allocation16 + $0x34] sm:$0xf]
        %v4140 = vld [vmem:[#allocation16 + $0x38] sm:$0xff]
        %v4141 = vld [vmem:[#allocation16 + $0x40] sm:$0xff]
        %v4142 = vld [vmem:[#allocation16 + $0x48] sm:$0xff]
        %v4143 = vld [vmem:[#allocation16 + $0x50] sm:$0xf]
        %v4144 = vld [vmem:[#allocation16 + $0x54] sm:$0xff]
        %v4145 = vld [vmem:[#allocation16 + $0x5c] sm:$0xff]
        %v4146 = vld [vmem:[#allocation16 + $0x64] sm:$0xff]
        %v4147 = vld [vmem:[#allocation16 + $0x6c] sm:$0xf]
        %v4148 = vld [vmem:[#allocation16 + $0x70] sm:$0xff]
        %v4149 = vld [vmem:[#allocation16 + $0x78] sm:$0xff]
        %v4150 = vld [vmem:[#allocation16 + $0x80] sm:$0xff]
        %v4151 = vld [vmem:[#allocation16 + $0x88] sm:$0xf]
        %v4152 = vld [vmem:[#allocation16 + $0x8c] sm:$0xff]
        %v4153 = vld [vmem:[#allocation16 + $0x94] sm:$0xff]
        %v4154 = vld [vmem:[#allocation16 + $0x9c] sm:$0xff]
        %v4155 = vld [vmem:[#allocation16 + $0xa4] sm:$0xf]
        %v4156 = vld [vmem:[#allocation16 + $0xa8] sm:$0xff]
        %v4157 = vld [vmem:[#allocation16 + $0xb0] sm:$0xff]
        %v4158 = vld [vmem:[#allocation16 + $0xb8] sm:$0xff]
        %v4159 = vld [vmem:[#allocation16 + $0xc0] sm:$0xf]
        %v4160 = vld [vmem:[#allocation16 + $0xc4] sm:$0xff]
        %v4161 = vld [vmem:[#allocation16 + $0xcc] sm:$0xff]
        %v4162 = vld [vmem:[#allocation16 + $0xd4] sm:$0xff]
        %v4163 = vld [vmem:[#allocation16 + $0xdc] sm:$0xf]
        %v4164 = vld [vmem:[#allocation16 + $0xe0] sm:$0xff]
        %v4165 = vld [vmem:[#allocation16 + $0xe8] sm:$0xff]
        %v4166 = vld [vmem:[#allocation16 + $0xf0] sm:$0xff]
        %v4167 = vld [vmem:[#allocation16 + $0xf8] sm:$0xf]
        %v4168 = vld [vmem:[#allocation16 + $0xfc] sm:$0xff]
        %v4169 = vld [vmem:[#allocation16 + $0x104] sm:$0xff]
        %v4170 = vld [vmem:[#allocation16 + $0x10c] sm:$0xff]
        %v4171 = vld [vmem:[#allocation16 + $0x114] sm:$0xf]
        %v4172 = vld [vmem:[#allocation16 + $0x118] sm:$0xff]
        %v4173 = vld [vmem:[#allocation16 + $0x120] sm:$0xff]
        %v4174 = vld [vmem:[#allocation16 + $0x128] sm:$0xff]
        %v4175 = vld [vmem:[#allocation16 + $0x130] sm:$0xf]
        %v4176 = vld [vmem:[#allocation16 + $0x134] sm:$0xff]
        %v4177 = vld [vmem:[#allocation16 + $0x13c] sm:$0xff]
        %v4178 = vld [vmem:[#allocation16 + $0x144] sm:$0xff]
        %v4179 = vld [vmem:[#allocation16 + $0x14c] sm:$0xf]
        %v4180 = vld [vmem:[#allocation16 + $0x150] sm:$0xff]
        %v4181 = vld [vmem:[#allocation16 + $0x158] sm:$0xff]
        %v4182 = vld [vmem:[#allocation16 + $0x160] sm:$0xff]
        %v4183 = vld [vmem:[#allocation16 + $0x168] sm:$0xf]
        %v4184 = vld [vmem:[#allocation16 + $0x16c] sm:$0xff]
        %v4185 = vld [vmem:[#allocation16 + $0x174] sm:$0xff]
        %v4186 = vld [vmem:[#allocation16 + $0x17c] sm:$0xff]
        %v4187 = vld [vmem:[#allocation16 + $0x184] sm:$0xf]
        %v4188 = vld [vmem:[#allocation16 + $0x188] sm:$0xff]
        %v4189 = vld [vmem:[#allocation16 + $0x190] sm:$0xff]
        %v4190 = vld [vmem:[#allocation16 + $0x198] sm:$0xff]
        %v4191 = vld [vmem:[#allocation16 + $0x1a0] sm:$0xf]
        %v4192 = vld [vmem:[#allocation16 + $0x1a4] sm:$0xff]
        %v4193 = vld [vmem:[#allocation16 + $0x1ac] sm:$0xff]
        %v4194 = vld [vmem:[#allocation16 + $0x1b4] sm:$0xff]
        %v4195 = vld [vmem:[#allocation16 + $0x1bc] sm:$0xf]
        %v4196 = vld [vmem:[#allocation16 + $0x1c0] sm:$0xff]
        %v4197 = vld [vmem:[#allocation16 + $0x1c8] sm:$0xff]
        %v4198 = vld [vmem:[#allocation16 + $0x1d0] sm:$0xff]
        %v4199 = vld [vmem:[#allocation16 + $0x1d8] sm:$0xf]
        %v4200 = vld [vmem:[#allocation16 + $0x1dc] sm:$0xff]
        %v4201 = vld [vmem:[#allocation16 + $0x1e4] sm:$0xff]
        %v4202 = vld [vmem:[#allocation16 + $0x1ec] sm:$0xff]
        %v4203 = vld [vmem:[#allocation16 + $0x1f4] sm:$0xf]
        %v4204 = vld [vmem:[#allocation16 + $0x1f8] sm:$0xff]
        %v4205 = vld [vmem:[#allocation16 + $0x200] sm:$0xff]
        %v4206 = vld [vmem:[#allocation16 + $0x208] sm:$0xff]
        %v4207 = vld [vmem:[#allocation16 + $0x210] sm:$0xf]
        %v4208 = vld [vmem:[#allocation16 + $0x214] sm:$0xff]
        %v4209 = vld [vmem:[#allocation16 + $0x21c] sm:$0xff]
        %v4210 = vld [vmem:[#allocation16 + $0x224] sm:$0xff]
        %v4211 = vld [vmem:[#allocation16 + $0x22c] sm:$0xf]
        %v4212 = vld [vmem:[#allocation16 + $0x230] sm:$0xff]
        %v4213 = vld [vmem:[#allocation16 + $0x238] sm:$0xff]
        %v4214 = vld [vmem:[#allocation16 + $0x240] sm:$0xff]
        %v4215 = vld [vmem:[#allocation16 + $0x248] sm:$0xf]
        %v4216 = vld [vmem:[#allocation16 + $0x24c] sm:$0xff]
        %v4217 = vld [vmem:[#allocation16 + $0x254] sm:$0xff]
        %v4218 = vld [vmem:[#allocation16 + $0x25c] sm:$0xff]
        %v4219 = vld [vmem:[#allocation16 + $0x264] sm:$0xf]
        %v4220 = vld [vmem:[#allocation16 + $0x268] sm:$0xff]
        %v4221 = vld [vmem:[#allocation16 + $0x270] sm:$0xff]
        %v4222 = vld [vmem:[#allocation16 + $0x278] sm:$0xff]
        %v4223 = vld [vmem:[#allocation16 + $0x280] sm:$0xf]
        %v4224 = vld [vmem:[#allocation16 + $0x284] sm:$0xff]
        %v4225 = vld [vmem:[#allocation16 + $0x28c] sm:$0xff]
        %v4226 = vld [vmem:[#allocation16 + $0x294] sm:$0xff]
        %v4227 = vld [vmem:[#allocation16 + $0x29c] sm:$0xf]
        %v4228 = vld [vmem:[#allocation16 + $0x2a0] sm:$0xff]
        %v4229 = vld [vmem:[#allocation16 + $0x2a8] sm:$0xff]
        %v4230 = vld [vmem:[#allocation16 + $0x2b0] sm:$0xff]
        %v4231 = vld [vmem:[#allocation16 + $0x2b8] sm:$0xf]
        %v4232 = vld [vmem:[#allocation16 + $0x2bc] sm:$0xff]
        %v4233 = vld [vmem:[#allocation16 + $0x2c4] sm:$0xff]
        %v4234 = vld [vmem:[#allocation16 + $0x2cc] sm:$0xff]
        %v4235 = vld [vmem:[#allocation16 + $0x2d4] sm:$0xf]
        %v4236 = vld [vmem:[#allocation16 + $0x2d8] sm:$0xff]
        %v4237 = vld [vmem:[#allocation16 + $0x2e0] sm:$0xff]
        %v4238 = vld [vmem:[#allocation16 + $0x2e8] sm:$0xff]
        %v4239 = vld [vmem:[#allocation16 + $0x2f0] sm:$0xf]
        %v4240 = vld [vmem:[#allocation16 + $0x2f4] sm:$0xff]
        %v4241 = vld [vmem:[#allocation16 + $0x2fc] sm:$0xff]
        %v4242 = vld [vmem:[#allocation16 + $0x304] sm:$0xff]
        %v4243 = vld [vmem:[#allocation16 + $0x30c] sm:$0xf]
        %v4244 = vld [vmem:[#allocation16 + $0x310] sm:$0xff]
        %v4245 = vld [vmem:[#allocation16 + $0x318] sm:$0xff]
        %v4246 = vld [vmem:[#allocation16 + $0x320] sm:$0xff]
        %v4247 = vld [vmem:[#allocation16 + $0x328] sm:$0xf]
        %v4248 = vld [vmem:[#allocation16 + $0x32c] sm:$0xff]
        %v4249 = vld [vmem:[#allocation16 + $0x334] sm:$0xff]
        %v4250 = vld [vmem:[#allocation16 + $0x33c] sm:$0xff]
        %v4251 = vld [vmem:[#allocation16 + $0x344] sm:$0xf]
        %v4252 = vld [vmem:[#allocation16 + $0x348] sm:$0xff]
        %v4253 = vld [vmem:[#allocation16 + $0x350] sm:$0xff]
        %v4254 = vld [vmem:[#allocation16 + $0x358] sm:$0xff]
        %v4255 = vld [vmem:[#allocation16 + $0x360] sm:$0xf]
        %v4256 = vld [vmem:[#allocation16 + $0x364] sm:$0xff]
        %v4257 = vld [vmem:[#allocation16 + $0x36c] sm:$0xff]
        %v4258 = vld [vmem:[#allocation16 + $0x374] sm:$0xff]
        %v4259 = vld [vmem:[#allocation16 + $0x37c] sm:$0xf]
        %v4260 = vld [vmem:[#allocation16 + $0x380] sm:$0xff]
        %v4261 = vld [vmem:[#allocation16 + $0x388] sm:$0xff]
        %v4262 = vld [vmem:[#allocation16 + $0x390] sm:$0xff]
        %v4263 = vld [vmem:[#allocation16 + $0x398] sm:$0xf]
        %v4264 = vld [vmem:[#allocation16 + $0x39c] sm:$0xff]
        %v4265 = vld [vmem:[#allocation16 + $0x3a4] sm:$0xff]
        %v4266 = vld [vmem:[#allocation16 + $0x3ac] sm:$0xff]
        %v4267 = vld [vmem:[#allocation16 + $0x3b4] sm:$0xf]
        %v4268 = vld [vmem:[#allocation16 + $0x3b8] sm:$0xff]
        %v4269 = vld [vmem:[#allocation16 + $0x3c0] sm:$0xff]
        %v4270 = vld [vmem:[#allocation16 + $0x3c8] sm:$0xff]
        %v4271 = vld [vmem:[#allocation16 + $0x3d0] sm:$0xf]
        %v4272 = vld [vmem:[#allocation16 + $0x3d4] sm:$0xff]
        %v4273 = vld [vmem:[#allocation16 + $0x3dc] sm:$0xff]
        %v4274 = vld [vmem:[#allocation16 + $0x3e4] sm:$0xff]
        %v4275 = vld [vmem:[#allocation16 + $0x3ec] sm:$0xf]
        %v4276 = vld [vmem:[#allocation16 + $0x3f0] sm:$0xff]
        %v4277 = vld [vmem:[#allocation16 + $0x3f8] sm:$0xff]
        %v4278 = vld [vmem:[#allocation16 + $0x400] sm:$0xff]
        %v4279 = vld [vmem:[#allocation16 + $0x408] sm:$0xf]
        %v4280 = vld [vmem:[#allocation16 + $0x40c] sm:$0xff]
        %v4281 = vld [vmem:[#allocation16 + $0x414] sm:$0xff]
        %v4282 = vld [vmem:[#allocation16 + $0x41c] sm:$0xff]
        %v4283 = vld [vmem:[#allocation16 + $0x424] sm:$0xf]
        %v4284 = vld [vmem:[#allocation16 + $0x428] sm:$0xff]
        %v4285 = vld [vmem:[#allocation16 + $0x430] sm:$0xff]
        %v4286 = vld [vmem:[#allocation16 + $0x438] sm:$0xff]
        %v4287 = vld [vmem:[#allocation16 + $0x440] sm:$0xf]
        %v4288 = vld [vmem:[#allocation16 + $0x444] sm:$0xff]
        %v4289 = vld [vmem:[#allocation16 + $0x44c] sm:$0xff]
        %v4290 = vld [vmem:[#allocation16 + $0x454] sm:$0xff]
        %v4291 = vld [vmem:[#allocation16 + $0x45c] sm:$0xf]
        %v4292 = vld [vmem:[#allocation16 + $0x460] sm:$0xff]
        %v4293 = vld [vmem:[#allocation16 + $0x468] sm:$0xff]
        %v4294 = vld [vmem:[#allocation16 + $0x470] sm:$0xff]
        %v4295 = vld [vmem:[#allocation16 + $0x478] sm:$0xf]
        %v4296 = vld [vmem:[#allocation16 + $0x47c] sm:$0xff]
        %v4297 = vld [vmem:[#allocation16 + $0x484] sm:$0xff]
        %v4298 = vld [vmem:[#allocation16 + $0x48c] sm:$0xff]
        %v4299 = vld [vmem:[#allocation16 + $0x494] sm:$0xf]
        %v4300 = vld [vmem:[#allocation16 + $0x498] sm:$0xff]
        %v4301 = vld [vmem:[#allocation16 + $0x4a0] sm:$0xff]
        %v4302 = vld [vmem:[#allocation16 + $0x4a8] sm:$0xff]
        %v4303 = vld [vmem:[#allocation16 + $0x4b0] sm:$0xf]
        %v4304 = vld [vmem:[#allocation16 + $0x4b4] sm:$0xff]
        %v4305 = vld [vmem:[#allocation16 + $0x4bc] sm:$0xff]
        %v4306 = vld [vmem:[#allocation16 + $0x4c4] sm:$0xff]
        %v4307 = vld [vmem:[#allocation16 + $0x4cc] sm:$0xf]
        %v4308 = vld [vmem:[#allocation16 + $0x4d0] sm:$0xff]
        %v4309 = vld [vmem:[#allocation16 + $0x4d8] sm:$0xff]
        %v4310 = vld [vmem:[#allocation16 + $0x4e0] sm:$0xff]
        %v4311 = vld [vmem:[#allocation16 + $0x4e8] sm:$0xf]
        %v4312 = vld [vmem:[#allocation16 + $0x4ec] sm:$0xff]
        %v4313 = vld [vmem:[#allocation16 + $0x4f4] sm:$0xff]
        %v4314 = vld [vmem:[#allocation16 + $0x4fc] sm:$0xff]
        %v4315 = vld [vmem:[#allocation16 + $0x504] sm:$0xf]
        %v4316 = vld [vmem:[#allocation16 + $0x508] sm:$0xff]
        %v4317 = vld [vmem:[#allocation16 + $0x510] sm:$0xff]
        %v4318 = vld [vmem:[#allocation16 + $0x518] sm:$0xff]
        %v4319 = vld [vmem:[#allocation16 + $0x520] sm:$0xf]
        %v4320 = vld [vmem:[#allocation16 + $0x524] sm:$0xff]
        %v4321 = vld [vmem:[#allocation16 + $0x52c] sm:$0xff]
        %v4322 = vld [vmem:[#allocation16 + $0x534] sm:$0xff]
        %v4323 = vld [vmem:[#allocation16 + $0x53c] sm:$0xf]
        %v4324 = vld [vmem:[#allocation16 + $0x540] sm:$0xff]
        %v4325 = vld [vmem:[#allocation16 + $0x548] sm:$0xff]
        %v4326 = vld [vmem:[#allocation16 + $0x550] sm:$0xff]
        %v4327 = vld [vmem:[#allocation16 + $0x558] sm:$0xf]
        %v4328 = vld [vmem:[#allocation16 + $0x55c] sm:$0xff]
        %v4329 = vld [vmem:[#allocation16 + $0x564] sm:$0xff]
        %v4330 = vld [vmem:[#allocation16 + $0x56c] sm:$0xff]
        %v4331 = vld [vmem:[#allocation16 + $0x574] sm:$0xf]
        %v4332 = vld [vmem:[#allocation16 + $0x578] sm:$0xff]
        %v4333 = vld [vmem:[#allocation16 + $0x580] sm:$0xff]
        %v4334 = vld [vmem:[#allocation16 + $0x588] sm:$0xff]
        %v4335 = vld [vmem:[#allocation16 + $0x590] sm:$0xf]
        %v4336 = vld [vmem:[#allocation16 + $0x594] sm:$0xff]
        %v4337 = vld [vmem:[#allocation16 + $0x59c] sm:$0xff]
        %v4338 = vld [vmem:[#allocation16 + $0x5a4] sm:$0xff]
        %v4339 = vld [vmem:[#allocation16 + $0x5ac] sm:$0xf]
        %v4340 = vld [vmem:[#allocation16 + $0x5b0] sm:$0xff]
        %v4341 = vld [vmem:[#allocation16 + $0x5b8] sm:$0xff]
        %v4342 = vld [vmem:[#allocation16 + $0x5c0] sm:$0xff]
        %v4343 = vld [vmem:[#allocation16 + $0x5c8] sm:$0xf]
        %v4344 = vld [vmem:[#allocation16 + $0x5cc] sm:$0xff]
        %v4345 = vld [vmem:[#allocation16 + $0x5d4] sm:$0xff]
        %v4346 = vld [vmem:[#allocation16 + $0x5dc] sm:$0xff]
        %v4347 = vld [vmem:[#allocation16 + $0x5e4] sm:$0xf]
        %v4348 = vld [vmem:[#allocation16 + $0x5e8] sm:$0xff]
        %v4349 = vld [vmem:[#allocation16 + $0x5f0] sm:$0xff]
        %v4350 = vld [vmem:[#allocation16 + $0x5f8] sm:$0xff]
        %v4351 = vld [vmem:[#allocation16 + $0x600] sm:$0xf]
        %v4352 = vld [vmem:[#allocation16 + $0x604] sm:$0xff]
        %v4353 = vld [vmem:[#allocation16 + $0x60c] sm:$0xff]
        %v4354 = vld [vmem:[#allocation16 + $0x614] sm:$0xff]
        %v4355 = vld [vmem:[#allocation16 + $0x61c] sm:$0xf]
        %v4356 = vld [vmem:[#allocation16 + $0x620] sm:$0xff]
        %v4357 = vld [vmem:[#allocation16 + $0x628] sm:$0xff]
        %v4358 = vld [vmem:[#allocation16 + $0x630] sm:$0xff]
        %v4359 = vld [vmem:[#allocation16 + $0x638] sm:$0xf]
        %v4360 = vld [vmem:[#allocation16 + $0x63c] sm:$0xff]
        %v4361 = vld [vmem:[#allocation16 + $0x644] sm:$0xff]
        %v4362 = vld [vmem:[#allocation16 + $0x64c] sm:$0xff]
        %v4363 = vld [vmem:[#allocation16 + $0x654] sm:$0xf]
        %v4364 = vld [vmem:[#allocation16 + $0x658] sm:$0xff]
        %v4365 = vld [vmem:[#allocation16 + $0x660] sm:$0xff]
        %v4366 = vld [vmem:[#allocation16 + $0x668] sm:$0xff]
        %v4367 = vld [vmem:[#allocation16 + $0x670] sm:$0xf]
        %v4368 = vld [vmem:[#allocation16 + $0x674] sm:$0xff]
        %v4369 = vld [vmem:[#allocation16 + $0x67c] sm:$0xff]
        %v4370 = vld [vmem:[#allocation16 + $0x684] sm:$0xff]
        %v4371 = vld [vmem:[#allocation16 + $0x68c] sm:$0xf]
        %v4372 = vld [vmem:[#allocation16 + $0x690] sm:$0xff]
        %v4373 = vld [vmem:[#allocation16 + $0x698] sm:$0xff]
        %v4374 = vld [vmem:[#allocation16 + $0x6a0] sm:$0xff]
        %v4375 = vld [vmem:[#allocation16 + $0x6a8] sm:$0xf]
        %v4376 = vld [vmem:[#allocation16 + $0x6ac] sm:$0xff]
        %v4377 = vld [vmem:[#allocation16 + $0x6b4] sm:$0xff]
        %v4378 = vld [vmem:[#allocation16 + $0x6bc] sm:$0xff]
        %v4379 = vld [vmem:[#allocation16 + $0x6c4] sm:$0xf]
        %v4380 = vld [vmem:[#allocation16 + $0x6c8] sm:$0xff]
        %v4381 = vld [vmem:[#allocation16 + $0x6d0] sm:$0xff]
        %v4382 = vld [vmem:[#allocation16 + $0x6d8] sm:$0xff]
        %v4383 = vld [vmem:[#allocation16 + $0x6e0] sm:$0xf]
        %v4384 = vld [vmem:[#allocation16 + $0x6e4] sm:$0xff]
        %v4385 = vld [vmem:[#allocation16 + $0x6ec] sm:$0xff]
        %v4386 = vld [vmem:[#allocation16 + $0x6f4] sm:$0xff]
        %v4387 = vld [vmem:[#allocation16 + $0x6fc] sm:$0xf]
        %v4388 = vld [vmem:[%s18] sm:$0xff]
        %v4390 = vlaneseq
        %v4391 = vshrl.u32 %v4390, 7
        %v4392 = vsub.s32 0, %v4391
        %v4393 = vrot.slane %v4388, %v4392
        %v4394 = vlaneseq
        %v4395 = vshrl.u32 %v4394, 7
        %v4396 = vsub.s32 1, %v4395
        %v4397 = vrot.slane %v4388, %v4396
        %v4398 = vlaneseq
        %v4399 = vshrl.u32 %v4398, 7
        %v4400 = vsub.s32 2, %v4399
        %v4401 = vrot.slane %v4388, %v4400
        %v4402 = vlaneseq
        %v4403 = vshrl.u32 %v4402, 7
        %v4404 = vsub.s32 3, %v4403
        %v4405 = vrot.slane %v4388, %v4404
        %v4406 = vlaneseq
        %v4407 = vshrl.u32 %v4406, 7
        %v4408 = vsub.s32 4, %v4407
        %v4409 = vrot.slane %v4388, %v4408
        %v4410 = vlaneseq
        %v4411 = vshrl.u32 %v4410, 7
        %v4412 = vsub.s32 5, %v4411
        %v4413 = vrot.slane %v4388, %v4412
        %v4414 = vlaneseq
        %v4415 = vshrl.u32 %v4414, 7
        %v4416 = vsub.s32 6, %v4415
        %v4417 = vrot.slane %v4388, %v4416
        %v4681 = vunpack.c.l.b16 %v4132
        %v4682 = vunpack.c.h.b16 %v4132
        %v4683 = vunpack.c.l.b16 %v4133
        %v4684 = vunpack.c.h.b16 %v4133
        %v4685 = vunpack.c.l.b16 %v4134
        %v4686 = vunpack.c.h.b16 %v4134
        %v4687 = vunpack.c.l.b16 %v4135
        %v4688 = vunpack.c.l.b16 %v4136
        %v4689 = vunpack.c.h.b16 %v4136
        %v4690 = vunpack.c.l.b16 %v4137
        %v4691 = vunpack.c.h.b16 %v4137
        %v4692 = vunpack.c.l.b16 %v4138
        %v4693 = vunpack.c.h.b16 %v4138
        %v4694 = vunpack.c.l.b16 %v4139
        %v4695 = vunpack.c.l.b16 %v4140
        %v4696 = vunpack.c.h.b16 %v4140
        %v4697 = vunpack.c.l.b16 %v4141
        %v4698 = vunpack.c.h.b16 %v4141
        %v4699 = vunpack.c.l.b16 %v4142
        %v4700 = vunpack.c.h.b16 %v4142
        %v4701 = vunpack.c.l.b16 %v4143
        %v4702 = vunpack.c.l.b16 %v4144
        %v4703 = vunpack.c.h.b16 %v4144
        %v4704 = vunpack.c.l.b16 %v4145
        %v4705 = vunpack.c.h.b16 %v4145
        %v4706 = vunpack.c.l.b16 %v4146
        %v4707 = vunpack.c.h.b16 %v4146
        %v4708 = vunpack.c.l.b16 %v4147
        %v4709 = vunpack.c.l.b16 %v4148
        %v4710 = vunpack.c.h.b16 %v4148
        %v4711 = vunpack.c.l.b16 %v4149
        %v4712 = vunpack.c.h.b16 %v4149
        %v4713 = vunpack.c.l.b16 %v4150
        %v4714 = vunpack.c.h.b16 %v4150
        %v4715 = vunpack.c.l.b16 %v4151
        %v4716 = vunpack.c.l.b16 %v4152
        %v4717 = vunpack.c.h.b16 %v4152
        %v4718 = vunpack.c.l.b16 %v4153
        %v4719 = vunpack.c.h.b16 %v4153
        %v4720 = vunpack.c.l.b16 %v4154
        %v4721 = vunpack.c.h.b16 %v4154
        %v4722 = vunpack.c.l.b16 %v4155
        %v4723 = vunpack.c.l.b16 %v4156
        %v4724 = vunpack.c.h.b16 %v4156
        %v4725 = vunpack.c.l.b16 %v4157
        %v4726 = vunpack.c.h.b16 %v4157
        %v4727 = vunpack.c.l.b16 %v4158
        %v4728 = vunpack.c.h.b16 %v4158
        %v4729 = vunpack.c.l.b16 %v4159
        %v4730 = vunpack.c.l.b16 %v4160
        %v4731 = vunpack.c.h.b16 %v4160
        %v4732 = vunpack.c.l.b16 %v4161
        %v4733 = vunpack.c.h.b16 %v4161
        %v4734 = vunpack.c.l.b16 %v4162
        %v4735 = vunpack.c.h.b16 %v4162
        %v4736 = vunpack.c.l.b16 %v4163
        %v4737 = vunpack.c.l.b16 %v4164
        %v4738 = vunpack.c.h.b16 %v4164
        %v4739 = vunpack.c.l.b16 %v4165
        %v4740 = vunpack.c.h.b16 %v4165
        %v4741 = vunpack.c.l.b16 %v4166
        %v4742 = vunpack.c.h.b16 %v4166
        %v4743 = vunpack.c.l.b16 %v4167
        %v4744 = vunpack.c.l.b16 %v4168
        %v4745 = vunpack.c.h.b16 %v4168
        %v4746 = vunpack.c.l.b16 %v4169
        %v4747 = vunpack.c.h.b16 %v4169
        %v4748 = vunpack.c.l.b16 %v4170
        %v4749 = vunpack.c.h.b16 %v4170
        %v4750 = vunpack.c.l.b16 %v4171
        %v4751 = vunpack.c.l.b16 %v4172
        %v4752 = vunpack.c.h.b16 %v4172
        %v4753 = vunpack.c.l.b16 %v4173
        %v4754 = vunpack.c.h.b16 %v4173
        %v4755 = vunpack.c.l.b16 %v4174
        %v4756 = vunpack.c.h.b16 %v4174
        %v4757 = vunpack.c.l.b16 %v4175
        %v4758 = vunpack.c.l.b16 %v4176
        %v4759 = vunpack.c.h.b16 %v4176
        %v4760 = vunpack.c.l.b16 %v4177
        %v4761 = vunpack.c.h.b16 %v4177
        %v4762 = vunpack.c.l.b16 %v4178
        %v4763 = vunpack.c.h.b16 %v4178
        %v4764 = vunpack.c.l.b16 %v4179
        %v4765 = vunpack.c.l.b16 %v4180
        %v4766 = vunpack.c.h.b16 %v4180
        %v4767 = vunpack.c.l.b16 %v4181
        %v4768 = vunpack.c.h.b16 %v4181
        %v4769 = vunpack.c.l.b16 %v4182
        %v4770 = vunpack.c.h.b16 %v4182
        %v4771 = vunpack.c.l.b16 %v4183
        %v4772 = vunpack.c.l.b16 %v4184
        %v4773 = vunpack.c.h.b16 %v4184
        %v4774 = vunpack.c.l.b16 %v4185
        %v4775 = vunpack.c.h.b16 %v4185
        %v4776 = vunpack.c.l.b16 %v4186
        %v4777 = vunpack.c.h.b16 %v4186
        %v4778 = vunpack.c.l.b16 %v4187
        %v4779 = vunpack.c.l.b16 %v4188
        %v4780 = vunpack.c.h.b16 %v4188
        %v4781 = vunpack.c.l.b16 %v4189
        %v4782 = vunpack.c.h.b16 %v4189
        %v4783 = vunpack.c.l.b16 %v4190
        %v4784 = vunpack.c.h.b16 %v4190
        %v4785 = vunpack.c.l.b16 %v4191
        %v4786 = vunpack.c.l.b16 %v4192
        %v4787 = vunpack.c.h.b16 %v4192
        %v4788 = vunpack.c.l.b16 %v4193
        %v4789 = vunpack.c.h.b16 %v4193
        %v4790 = vunpack.c.l.b16 %v4194
        %v4791 = vunpack.c.h.b16 %v4194
        %v4792 = vunpack.c.l.b16 %v4195
        %v4793 = vunpack.c.l.b16 %v4196
        %v4794 = vunpack.c.h.b16 %v4196
        %v4795 = vunpack.c.l.b16 %v4197
        %v4796 = vunpack.c.h.b16 %v4197
        %v4797 = vunpack.c.l.b16 %v4198
        %v4798 = vunpack.c.h.b16 %v4198
        %v4799 = vunpack.c.l.b16 %v4199
        %v4800 = vunpack.c.l.b16 %v4200
        %v4801 = vunpack.c.h.b16 %v4200
        %v4802 = vunpack.c.l.b16 %v4201
        %v4803 = vunpack.c.h.b16 %v4201
        %v4804 = vunpack.c.l.b16 %v4202
        %v4805 = vunpack.c.h.b16 %v4202
        %v4806 = vunpack.c.l.b16 %v4203
        %v4807 = vunpack.c.l.b16 %v4204
        %v4808 = vunpack.c.h.b16 %v4204
        %v4809 = vunpack.c.l.b16 %v4205
        %v4810 = vunpack.c.h.b16 %v4205
        %v4811 = vunpack.c.l.b16 %v4206
        %v4812 = vunpack.c.h.b16 %v4206
        %v4813 = vunpack.c.l.b16 %v4207
        %v4814 = vunpack.c.l.b16 %v4208
        %v4815 = vunpack.c.h.b16 %v4208
        %v4816 = vunpack.c.l.b16 %v4209
        %v4817 = vunpack.c.h.b16 %v4209
        %v4818 = vunpack.c.l.b16 %v4210
        %v4819 = vunpack.c.h.b16 %v4210
        %v4820 = vunpack.c.l.b16 %v4211
        %v4821 = vunpack.c.l.b16 %v4212
        %v4822 = vunpack.c.h.b16 %v4212
        %v4823 = vunpack.c.l.b16 %v4213
        %v4824 = vunpack.c.h.b16 %v4213
        %v4825 = vunpack.c.l.b16 %v4214
        %v4826 = vunpack.c.h.b16 %v4214
        %v4827 = vunpack.c.l.b16 %v4215
        %v4828 = vunpack.c.l.b16 %v4216
        %v4829 = vunpack.c.h.b16 %v4216
        %v4830 = vunpack.c.l.b16 %v4217
        %v4831 = vunpack.c.h.b16 %v4217
        %v4832 = vunpack.c.l.b16 %v4218
        %v4833 = vunpack.c.h.b16 %v4218
        %v4834 = vunpack.c.l.b16 %v4219
        %v4835 = vunpack.c.l.b16 %v4220
        %v4836 = vunpack.c.h.b16 %v4220
        %v4837 = vunpack.c.l.b16 %v4221
        %v4838 = vunpack.c.h.b16 %v4221
        %v4839 = vunpack.c.l.b16 %v4222
        %v4840 = vunpack.c.h.b16 %v4222
        %v4841 = vunpack.c.l.b16 %v4223
        %v4842 = vunpack.c.l.b16 %v4224
        %v4843 = vunpack.c.h.b16 %v4224
        %v4844 = vunpack.c.l.b16 %v4225
        %v4845 = vunpack.c.h.b16 %v4225
        %v4846 = vunpack.c.l.b16 %v4226
        %v4847 = vunpack.c.h.b16 %v4226
        %v4848 = vunpack.c.l.b16 %v4227
        %v4849 = vunpack.c.l.b16 %v4228
        %v4850 = vunpack.c.h.b16 %v4228
        %v4851 = vunpack.c.l.b16 %v4229
        %v4852 = vunpack.c.h.b16 %v4229
        %v4853 = vunpack.c.l.b16 %v4230
        %v4854 = vunpack.c.h.b16 %v4230
        %v4855 = vunpack.c.l.b16 %v4231
        %v4856 = vunpack.c.l.b16 %v4232
        %v4857 = vunpack.c.h.b16 %v4232
        %v4858 = vunpack.c.l.b16 %v4233
        %v4859 = vunpack.c.h.b16 %v4233
        %v4860 = vunpack.c.l.b16 %v4234
        %v4861 = vunpack.c.h.b16 %v4234
        %v4862 = vunpack.c.l.b16 %v4235
        %v4863 = vunpack.c.l.b16 %v4236
        %v4864 = vunpack.c.h.b16 %v4236
        %v4865 = vunpack.c.l.b16 %v4237
        %v4866 = vunpack.c.h.b16 %v4237
        %v4867 = vunpack.c.l.b16 %v4238
        %v4868 = vunpack.c.h.b16 %v4238
        %v4869 = vunpack.c.l.b16 %v4239
        %v4870 = vunpack.c.l.b16 %v4240
        %v4871 = vunpack.c.h.b16 %v4240
        %v4872 = vunpack.c.l.b16 %v4241
        %v4873 = vunpack.c.h.b16 %v4241
        %v4874 = vunpack.c.l.b16 %v4242
        %v4875 = vunpack.c.h.b16 %v4242
        %v4876 = vunpack.c.l.b16 %v4243
        %v4877 = vunpack.c.l.b16 %v4244
        %v4878 = vunpack.c.h.b16 %v4244
        %v4879 = vunpack.c.l.b16 %v4245
        %v4880 = vunpack.c.h.b16 %v4245
        %v4881 = vunpack.c.l.b16 %v4246
        %v4882 = vunpack.c.h.b16 %v4246
        %v4883 = vunpack.c.l.b16 %v4247
        %v4884 = vunpack.c.l.b16 %v4248
        %v4885 = vunpack.c.h.b16 %v4248
        %v4886 = vunpack.c.l.b16 %v4249
        %v4887 = vunpack.c.h.b16 %v4249
        %v4888 = vunpack.c.l.b16 %v4250
        %v4889 = vunpack.c.h.b16 %v4250
        %v4890 = vunpack.c.l.b16 %v4251
        %v4891 = vunpack.c.l.b16 %v4252
        %v4892 = vunpack.c.h.b16 %v4252
        %v4893 = vunpack.c.l.b16 %v4253
        %v4894 = vunpack.c.h.b16 %v4253
        %v4895 = vunpack.c.l.b16 %v4254
        %v4896 = vunpack.c.h.b16 %v4254
        %v4897 = vunpack.c.l.b16 %v4255
        %v4898 = vunpack.c.l.b16 %v4256
        %v4899 = vunpack.c.h.b16 %v4256
        %v4900 = vunpack.c.l.b16 %v4257
        %v4901 = vunpack.c.h.b16 %v4257
        %v4902 = vunpack.c.l.b16 %v4258
        %v4903 = vunpack.c.h.b16 %v4258
        %v4904 = vunpack.c.l.b16 %v4259
        %v4905 = vunpack.c.l.b16 %v4260
        %v4906 = vunpack.c.h.b16 %v4260
        %v4907 = vunpack.c.l.b16 %v4261
        %v4908 = vunpack.c.h.b16 %v4261
        %v4909 = vunpack.c.l.b16 %v4262
        %v4910 = vunpack.c.h.b16 %v4262
        %v4911 = vunpack.c.l.b16 %v4263
        %v4912 = vunpack.c.l.b16 %v4264
        %v4913 = vunpack.c.h.b16 %v4264
        %v4914 = vunpack.c.l.b16 %v4265
        %v4915 = vunpack.c.h.b16 %v4265
        %v4916 = vunpack.c.l.b16 %v4266
        %v4917 = vunpack.c.h.b16 %v4266
        %v4918 = vunpack.c.l.b16 %v4267
        %v4919 = vunpack.c.l.b16 %v4268
        %v4920 = vunpack.c.h.b16 %v4268
        %v4921 = vunpack.c.l.b16 %v4269
        %v4922 = vunpack.c.h.b16 %v4269
        %v4923 = vunpack.c.l.b16 %v4270
        %v4924 = vunpack.c.h.b16 %v4270
        %v4925 = vunpack.c.l.b16 %v4271
        %v4926 = vunpack.c.l.b16 %v4272
        %v4927 = vunpack.c.h.b16 %v4272
        %v4928 = vunpack.c.l.b16 %v4273
        %v4929 = vunpack.c.h.b16 %v4273
        %v4930 = vunpack.c.l.b16 %v4274
        %v4931 = vunpack.c.h.b16 %v4274
        %v4932 = vunpack.c.l.b16 %v4275
        %v4933 = vunpack.c.l.b16 %v4276
        %v4934 = vunpack.c.h.b16 %v4276
        %v4935 = vunpack.c.l.b16 %v4277
        %v4936 = vunpack.c.h.b16 %v4277
        %v4937 = vunpack.c.l.b16 %v4278
        %v4938 = vunpack.c.h.b16 %v4278
        %v4939 = vunpack.c.l.b16 %v4279
        %v4940 = vunpack.c.l.b16 %v4280
        %v4941 = vunpack.c.h.b16 %v4280
        %v4942 = vunpack.c.l.b16 %v4281
        %v4943 = vunpack.c.h.b16 %v4281
        %v4944 = vunpack.c.l.b16 %v4282
        %v4945 = vunpack.c.h.b16 %v4282
        %v4946 = vunpack.c.l.b16 %v4283
        %v4947 = vunpack.c.l.b16 %v4284
        %v4948 = vunpack.c.h.b16 %v4284
        %v4949 = vunpack.c.l.b16 %v4285
        %v4950 = vunpack.c.h.b16 %v4285
        %v4951 = vunpack.c.l.b16 %v4286
        %v4952 = vunpack.c.h.b16 %v4286
        %v4953 = vunpack.c.l.b16 %v4287
        %v4954 = vunpack.c.l.b16 %v4288
        %v4955 = vunpack.c.h.b16 %v4288
        %v4956 = vunpack.c.l.b16 %v4289
        %v4957 = vunpack.c.h.b16 %v4289
        %v4958 = vunpack.c.l.b16 %v4290
        %v4959 = vunpack.c.h.b16 %v4290
        %v4960 = vunpack.c.l.b16 %v4291
        %v4961 = vunpack.c.l.b16 %v4292
        %v4962 = vunpack.c.h.b16 %v4292
        %v4963 = vunpack.c.l.b16 %v4293
        %v4964 = vunpack.c.h.b16 %v4293
        %v4965 = vunpack.c.l.b16 %v4294
        %v4966 = vunpack.c.h.b16 %v4294
        %v4967 = vunpack.c.l.b16 %v4295
        %v4968 = vunpack.c.l.b16 %v4296
        %v4969 = vunpack.c.h.b16 %v4296
        %v4970 = vunpack.c.l.b16 %v4297
        %v4971 = vunpack.c.h.b16 %v4297
        %v4972 = vunpack.c.l.b16 %v4298
        %v4973 = vunpack.c.h.b16 %v4298
        %v4974 = vunpack.c.l.b16 %v4299
        %v4975 = vunpack.c.l.b16 %v4300
        %v4976 = vunpack.c.h.b16 %v4300
        %v4977 = vunpack.c.l.b16 %v4301
        %v4978 = vunpack.c.h.b16 %v4301
        %v4979 = vunpack.c.l.b16 %v4302
        %v4980 = vunpack.c.h.b16 %v4302
        %v4981 = vunpack.c.l.b16 %v4303
        %v4982 = vunpack.c.l.b16 %v4304
        %v4983 = vunpack.c.h.b16 %v4304
        %v4984 = vunpack.c.l.b16 %v4305
        %v4985 = vunpack.c.h.b16 %v4305
        %v4986 = vunpack.c.l.b16 %v4306
        %v4987 = vunpack.c.h.b16 %v4306
        %v4988 = vunpack.c.l.b16 %v4307
        %v4989 = vunpack.c.l.b16 %v4308
        %v4990 = vunpack.c.h.b16 %v4308
        %v4991 = vunpack.c.l.b16 %v4309
        %v4992 = vunpack.c.h.b16 %v4309
        %v4993 = vunpack.c.l.b16 %v4310
        %v4994 = vunpack.c.h.b16 %v4310
        %v4995 = vunpack.c.l.b16 %v4311
        %v4996 = vunpack.c.l.b16 %v4312
        %v4997 = vunpack.c.h.b16 %v4312
        %v4998 = vunpack.c.l.b16 %v4313
        %v4999 = vunpack.c.h.b16 %v4313
        %v5000 = vunpack.c.l.b16 %v4314
        %v5001 = vunpack.c.h.b16 %v4314
        %v5002 = vunpack.c.l.b16 %v4315
        %v5003 = vunpack.c.l.b16 %v4316
        %v5004 = vunpack.c.h.b16 %v4316
        %v5005 = vunpack.c.l.b16 %v4317
        %v5006 = vunpack.c.h.b16 %v4317
        %v5007 = vunpack.c.l.b16 %v4318
        %v5008 = vunpack.c.h.b16 %v4318
        %v5009 = vunpack.c.l.b16 %v4319
        %v5010 = vunpack.c.l.b16 %v4320
        %v5011 = vunpack.c.h.b16 %v4320
        %v5012 = vunpack.c.l.b16 %v4321
        %v5013 = vunpack.c.h.b16 %v4321
        %v5014 = vunpack.c.l.b16 %v4322
        %v5015 = vunpack.c.h.b16 %v4322
        %v5016 = vunpack.c.l.b16 %v4323
        %v5017 = vunpack.c.l.b16 %v4324
        %v5018 = vunpack.c.h.b16 %v4324
        %v5019 = vunpack.c.l.b16 %v4325
        %v5020 = vunpack.c.h.b16 %v4325
        %v5021 = vunpack.c.l.b16 %v4326
        %v5022 = vunpack.c.h.b16 %v4326
        %v5023 = vunpack.c.l.b16 %v4327
        %v5024 = vunpack.c.l.b16 %v4328
        %v5025 = vunpack.c.h.b16 %v4328
        %v5026 = vunpack.c.l.b16 %v4329
        %v5027 = vunpack.c.h.b16 %v4329
        %v5028 = vunpack.c.l.b16 %v4330
        %v5029 = vunpack.c.h.b16 %v4330
        %v5030 = vunpack.c.l.b16 %v4331
        %v5031 = vunpack.c.l.b16 %v4332
        %v5032 = vunpack.c.h.b16 %v4332
        %v5033 = vunpack.c.l.b16 %v4333
        %v5034 = vunpack.c.h.b16 %v4333
        %v5035 = vunpack.c.l.b16 %v4334
        %v5036 = vunpack.c.h.b16 %v4334
        %v5037 = vunpack.c.l.b16 %v4335
        %v5038 = vunpack.c.l.b16 %v4336
        %v5039 = vunpack.c.h.b16 %v4336
        %v5040 = vunpack.c.l.b16 %v4337
        %v5041 = vunpack.c.h.b16 %v4337
        %v5042 = vunpack.c.l.b16 %v4338
        %v5043 = vunpack.c.h.b16 %v4338
        %v5044 = vunpack.c.l.b16 %v4339
        %v5045 = vunpack.c.l.b16 %v4340
        %v5046 = vunpack.c.h.b16 %v4340
        %v5047 = vunpack.c.l.b16 %v4341
        %v5048 = vunpack.c.h.b16 %v4341
        %v5049 = vunpack.c.l.b16 %v4342
        %v5050 = vunpack.c.h.b16 %v4342
        %v5051 = vunpack.c.l.b16 %v4343
        %v5052 = vunpack.c.l.b16 %v4344
        %v5053 = vunpack.c.h.b16 %v4344
        %v5054 = vunpack.c.l.b16 %v4345
        %v5055 = vunpack.c.h.b16 %v4345
        %v5056 = vunpack.c.l.b16 %v4346
        %v5057 = vunpack.c.h.b16 %v4346
        %v5058 = vunpack.c.l.b16 %v4347
        %v5059 = vunpack.c.l.b16 %v4348
        %v5060 = vunpack.c.h.b16 %v4348
        %v5061 = vunpack.c.l.b16 %v4349
        %v5062 = vunpack.c.h.b16 %v4349
        %v5063 = vunpack.c.l.b16 %v4350
        %v5064 = vunpack.c.h.b16 %v4350
        %v5065 = vunpack.c.l.b16 %v4351
        %v5066 = vunpack.c.l.b16 %v4352
        %v5067 = vunpack.c.h.b16 %v4352
        %v5068 = vunpack.c.l.b16 %v4353
        %v5069 = vunpack.c.h.b16 %v4353
        %v5070 = vunpack.c.l.b16 %v4354
        %v5071 = vunpack.c.h.b16 %v4354
        %v5072 = vunpack.c.l.b16 %v4355
        %v5073 = vunpack.c.l.b16 %v4356
        %v5074 = vunpack.c.h.b16 %v4356
        %v5075 = vunpack.c.l.b16 %v4357
        %v5076 = vunpack.c.h.b16 %v4357
        %v5077 = vunpack.c.l.b16 %v4358
        %v5078 = vunpack.c.h.b16 %v4358
        %v5079 = vunpack.c.l.b16 %v4359
        %v5080 = vunpack.c.l.b16 %v4360
        %v5081 = vunpack.c.h.b16 %v4360
        %v5082 = vunpack.c.l.b16 %v4361
        %v5083 = vunpack.c.h.b16 %v4361
        %v5084 = vunpack.c.l.b16 %v4362
        %v5085 = vunpack.c.h.b16 %v4362
        %v5086 = vunpack.c.l.b16 %v4363
        %v5087 = vunpack.c.l.b16 %v4364
        %v5088 = vunpack.c.h.b16 %v4364
        %v5089 = vunpack.c.l.b16 %v4365
        %v5090 = vunpack.c.h.b16 %v4365
        %v5091 = vunpack.c.l.b16 %v4366
        %v5092 = vunpack.c.h.b16 %v4366
        %v5093 = vunpack.c.l.b16 %v4367
        %v5094 = vunpack.c.l.b16 %v4368
        %v5095 = vunpack.c.h.b16 %v4368
        %v5096 = vunpack.c.l.b16 %v4369
        %v5097 = vunpack.c.h.b16 %v4369
        %v5098 = vunpack.c.l.b16 %v4370
        %v5099 = vunpack.c.h.b16 %v4370
        %v5100 = vunpack.c.l.b16 %v4371
        %v5101 = vunpack.c.l.b16 %v4372
        %v5102 = vunpack.c.h.b16 %v4372
        %v5103 = vunpack.c.l.b16 %v4373
        %v5104 = vunpack.c.h.b16 %v4373
        %v5105 = vunpack.c.l.b16 %v4374
        %v5106 = vunpack.c.h.b16 %v4374
        %v5107 = vunpack.c.l.b16 %v4375
        %v5108 = vunpack.c.l.b16 %v4376
        %v5109 = vunpack.c.h.b16 %v4376
        %v5110 = vunpack.c.l.b16 %v4377
        %v5111 = vunpack.c.h.b16 %v4377
        %v5112 = vunpack.c.l.b16 %v4378
        %v5113 = vunpack.c.h.b16 %v4378
        %v5114 = vunpack.c.l.b16 %v4379
        %v5115 = vunpack.c.l.b16 %v4380
        %v5116 = vunpack.c.h.b16 %v4380
        %v5117 = vunpack.c.l.b16 %v4381
        %v5118 = vunpack.c.h.b16 %v4381
        %v5119 = vunpack.c.l.b16 %v4382
        %v5120 = vunpack.c.h.b16 %v4382
        %v5121 = vunpack.c.l.b16 %v4383
        %v5122 = vunpack.c.l.b16 %v4384
        %v5123 = vunpack.c.h.b16 %v4384
        %v5124 = vunpack.c.l.b16 %v4385
        %v5125 = vunpack.c.h.b16 %v4385
        %v5126 = vunpack.c.l.b16 %v4386
        %v5127 = vunpack.c.h.b16 %v4386
        %v5128 = vunpack.c.l.b16 %v4387
        %v5129 = vpack.c.b16 %v4688, %v4681
        %v5130 = vpack.c.b16 %v4689, %v4682
        %v5131 = vpack.c.b16 %v4690, %v4683
        %v5132 = vpack.c.b16 %v4691, %v4684
        %v5133 = vpack.c.b16 %v4692, %v4685
        %v5134 = vpack.c.b16 %v4693, %v4686
        %v5135 = vpack.c.b16 %v4694, %v4687
        %v5136 = vpack.c.b16 %v4702, %v4695
        %v5137 = vpack.c.b16 %v4703, %v4696
        %v5138 = vpack.c.b16 %v4704, %v4697
        %v5139 = vpack.c.b16 %v4705, %v4698
        %v5140 = vpack.c.b16 %v4706, %v4699
        %v5141 = vpack.c.b16 %v4707, %v4700
        %v5142 = vpack.c.b16 %v4708, %v4701
        %v5143 = vpack.c.b16 %v4716, %v4709
        %v5144 = vpack.c.b16 %v4717, %v4710
        %v5145 = vpack.c.b16 %v4718, %v4711
        %v5146 = vpack.c.b16 %v4719, %v4712
        %v5147 = vpack.c.b16 %v4720, %v4713
        %v5148 = vpack.c.b16 %v4721, %v4714
        %v5149 = vpack.c.b16 %v4722, %v4715
        %v5150 = vpack.c.b16 %v4730, %v4723
        %v5151 = vpack.c.b16 %v4731, %v4724
        %v5152 = vpack.c.b16 %v4732, %v4725
        %v5153 = vpack.c.b16 %v4733, %v4726
        %v5154 = vpack.c.b16 %v4734, %v4727
        %v5155 = vpack.c.b16 %v4735, %v4728
        %v5156 = vpack.c.b16 %v4736, %v4729
        %v5157 = vpack.c.b16 %v4744, %v4737
        %v5158 = vpack.c.b16 %v4745, %v4738
        %v5159 = vpack.c.b16 %v4746, %v4739
        %v5160 = vpack.c.b16 %v4747, %v4740
        %v5161 = vpack.c.b16 %v4748, %v4741
        %v5162 = vpack.c.b16 %v4749, %v4742
        %v5163 = vpack.c.b16 %v4750, %v4743
        %v5164 = vpack.c.b16 %v4758, %v4751
        %v5165 = vpack.c.b16 %v4759, %v4752
        %v5166 = vpack.c.b16 %v4760, %v4753
        %v5167 = vpack.c.b16 %v4761, %v4754
        %v5168 = vpack.c.b16 %v4762, %v4755
        %v5169 = vpack.c.b16 %v4763, %v4756
        %v5170 = vpack.c.b16 %v4764, %v4757
        %v5171 = vpack.c.b16 %v4772, %v4765
        %v5172 = vpack.c.b16 %v4773, %v4766
        %v5173 = vpack.c.b16 %v4774, %v4767
        %v5174 = vpack.c.b16 %v4775, %v4768
        %v5175 = vpack.c.b16 %v4776, %v4769
        %v5176 = vpack.c.b16 %v4777, %v4770
        %v5177 = vpack.c.b16 %v4778, %v4771
        %v5178 = vpack.c.b16 %v4786, %v4779
        %v5179 = vpack.c.b16 %v4787, %v4780
        %v5180 = vpack.c.b16 %v4788, %v4781
        %v5181 = vpack.c.b16 %v4789, %v4782
        %v5182 = vpack.c.b16 %v4790, %v4783
        %v5183 = vpack.c.b16 %v4791, %v4784
        %v5184 = vpack.c.b16 %v4792, %v4785
        %v5185 = vpack.c.b16 %v4800, %v4793
        %v5186 = vpack.c.b16 %v4801, %v4794
        %v5187 = vpack.c.b16 %v4802, %v4795
        %v5188 = vpack.c.b16 %v4803, %v4796
        %v5189 = vpack.c.b16 %v4804, %v4797
        %v5190 = vpack.c.b16 %v4805, %v4798
        %v5191 = vpack.c.b16 %v4806, %v4799
        %v5192 = vpack.c.b16 %v4814, %v4807
        %v5193 = vpack.c.b16 %v4815, %v4808
        %v5194 = vpack.c.b16 %v4816, %v4809
        %v5195 = vpack.c.b16 %v4817, %v4810
        %v5196 = vpack.c.b16 %v4818, %v4811
        %v5197 = vpack.c.b16 %v4819, %v4812
        %v5198 = vpack.c.b16 %v4820, %v4813
        %v5199 = vpack.c.b16 %v4828, %v4821
        %v5200 = vpack.c.b16 %v4829, %v4822
        %v5201 = vpack.c.b16 %v4830, %v4823
        %v5202 = vpack.c.b16 %v4831, %v4824
        %v5203 = vpack.c.b16 %v4832, %v4825
        %v5204 = vpack.c.b16 %v4833, %v4826
        %v5205 = vpack.c.b16 %v4834, %v4827
        %v5206 = vpack.c.b16 %v4842, %v4835
        %v5207 = vpack.c.b16 %v4843, %v4836
        %v5208 = vpack.c.b16 %v4844, %v4837
        %v5209 = vpack.c.b16 %v4845, %v4838
        %v5210 = vpack.c.b16 %v4846, %v4839
        %v5211 = vpack.c.b16 %v4847, %v4840
        %v5212 = vpack.c.b16 %v4848, %v4841
        %v5213 = vpack.c.b16 %v4856, %v4849
        %v5214 = vpack.c.b16 %v4857, %v4850
        %v5215 = vpack.c.b16 %v4858, %v4851
        %v5216 = vpack.c.b16 %v4859, %v4852
        %v5217 = vpack.c.b16 %v4860, %v4853
        %v5218 = vpack.c.b16 %v4861, %v4854
        %v5219 = vpack.c.b16 %v4862, %v4855
        %v5220 = vpack.c.b16 %v4870, %v4863
        %v5221 = vpack.c.b16 %v4871, %v4864
        %v5222 = vpack.c.b16 %v4872, %v4865
        %v5223 = vpack.c.b16 %v4873, %v4866
        %v5224 = vpack.c.b16 %v4874, %v4867
        %v5225 = vpack.c.b16 %v4875, %v4868
        %v5226 = vpack.c.b16 %v4876, %v4869
        %v5227 = vpack.c.b16 %v4884, %v4877
        %v5228 = vpack.c.b16 %v4885, %v4878
        %v5229 = vpack.c.b16 %v4886, %v4879
        %v5230 = vpack.c.b16 %v4887, %v4880
        %v5231 = vpack.c.b16 %v4888, %v4881
        %v5232 = vpack.c.b16 %v4889, %v4882
        %v5233 = vpack.c.b16 %v4890, %v4883
        %v5234 = vpack.c.b16 %v4898, %v4891
        %v5235 = vpack.c.b16 %v4899, %v4892
        %v5236 = vpack.c.b16 %v4900, %v4893
        %v5237 = vpack.c.b16 %v4901, %v4894
        %v5238 = vpack.c.b16 %v4902, %v4895
        %v5239 = vpack.c.b16 %v4903, %v4896
        %v5240 = vpack.c.b16 %v4904, %v4897
        %v5241 = vpack.c.b16 %v4912, %v4905
        %v5242 = vpack.c.b16 %v4913, %v4906
        %v5243 = vpack.c.b16 %v4914, %v4907
        %v5244 = vpack.c.b16 %v4915, %v4908
        %v5245 = vpack.c.b16 %v4916, %v4909
        %v5246 = vpack.c.b16 %v4917, %v4910
        %v5247 = vpack.c.b16 %v4918, %v4911
        %v5248 = vpack.c.b16 %v4926, %v4919
        %v5249 = vpack.c.b16 %v4927, %v4920
        %v5250 = vpack.c.b16 %v4928, %v4921
        %v5251 = vpack.c.b16 %v4929, %v4922
        %v5252 = vpack.c.b16 %v4930, %v4923
        %v5253 = vpack.c.b16 %v4931, %v4924
        %v5254 = vpack.c.b16 %v4932, %v4925
        %v5255 = vpack.c.b16 %v4940, %v4933
        %v5256 = vpack.c.b16 %v4941, %v4934
        %v5257 = vpack.c.b16 %v4942, %v4935
        %v5258 = vpack.c.b16 %v4943, %v4936
        %v5259 = vpack.c.b16 %v4944, %v4937
        %v5260 = vpack.c.b16 %v4945, %v4938
        %v5261 = vpack.c.b16 %v4946, %v4939
        %v5262 = vpack.c.b16 %v4954, %v4947
        %v5263 = vpack.c.b16 %v4955, %v4948
        %v5264 = vpack.c.b16 %v4956, %v4949
        %v5265 = vpack.c.b16 %v4957, %v4950
        %v5266 = vpack.c.b16 %v4958, %v4951
        %v5267 = vpack.c.b16 %v4959, %v4952
        %v5268 = vpack.c.b16 %v4960, %v4953
        %v5269 = vpack.c.b16 %v4968, %v4961
        %v5270 = vpack.c.b16 %v4969, %v4962
        %v5271 = vpack.c.b16 %v4970, %v4963
        %v5272 = vpack.c.b16 %v4971, %v4964
        %v5273 = vpack.c.b16 %v4972, %v4965
        %v5274 = vpack.c.b16 %v4973, %v4966
        %v5275 = vpack.c.b16 %v4974, %v4967
        %v5276 = vpack.c.b16 %v4982, %v4975
        %v5277 = vpack.c.b16 %v4983, %v4976
        %v5278 = vpack.c.b16 %v4984, %v4977
        %v5279 = vpack.c.b16 %v4985, %v4978
        %v5280 = vpack.c.b16 %v4986, %v4979
        %v5281 = vpack.c.b16 %v4987, %v4980
        %v5282 = vpack.c.b16 %v4988, %v4981
        %v5283 = vpack.c.b16 %v4996, %v4989
        %v5284 = vpack.c.b16 %v4997, %v4990
        %v5285 = vpack.c.b16 %v4998, %v4991
        %v5286 = vpack.c.b16 %v4999, %v4992
        %v5287 = vpack.c.b16 %v5000, %v4993
        %v5288 = vpack.c.b16 %v5001, %v4994
        %v5289 = vpack.c.b16 %v5002, %v4995
        %v5290 = vpack.c.b16 %v5010, %v5003
        %v5291 = vpack.c.b16 %v5011, %v5004
        %v5292 = vpack.c.b16 %v5012, %v5005
        %v5293 = vpack.c.b16 %v5013, %v5006
        %v5294 = vpack.c.b16 %v5014, %v5007
        %v5295 = vpack.c.b16 %v5015, %v5008
        %v5296 = vpack.c.b16 %v5016, %v5009
        %v5297 = vpack.c.b16 %v5024, %v5017
        %v5298 = vpack.c.b16 %v5025, %v5018
        %v5299 = vpack.c.b16 %v5026, %v5019
        %v5300 = vpack.c.b16 %v5027, %v5020
        %v5301 = vpack.c.b16 %v5028, %v5021
        %v5302 = vpack.c.b16 %v5029, %v5022
        %v5303 = vpack.c.b16 %v5030, %v5023
        %v5304 = vpack.c.b16 %v5038, %v5031
        %v5305 = vpack.c.b16 %v5039, %v5032
        %v5306 = vpack.c.b16 %v5040, %v5033
        %v5307 = vpack.c.b16 %v5041, %v5034
        %v5308 = vpack.c.b16 %v5042, %v5035
        %v5309 = vpack.c.b16 %v5043, %v5036
        %v5310 = vpack.c.b16 %v5044, %v5037
        %v5311 = vpack.c.b16 %v5052, %v5045
        %v5312 = vpack.c.b16 %v5053, %v5046
        %v5313 = vpack.c.b16 %v5054, %v5047
        %v5314 = vpack.c.b16 %v5055, %v5048
        %v5315 = vpack.c.b16 %v5056, %v5049
        %v5316 = vpack.c.b16 %v5057, %v5050
        %v5317 = vpack.c.b16 %v5058, %v5051
        %v5318 = vpack.c.b16 %v5066, %v5059
        %v5319 = vpack.c.b16 %v5067, %v5060
        %v5320 = vpack.c.b16 %v5068, %v5061
        %v5321 = vpack.c.b16 %v5069, %v5062
        %v5322 = vpack.c.b16 %v5070, %v5063
        %v5323 = vpack.c.b16 %v5071, %v5064
        %v5324 = vpack.c.b16 %v5072, %v5065
        %v5325 = vpack.c.b16 %v5080, %v5073
        %v5326 = vpack.c.b16 %v5081, %v5074
        %v5327 = vpack.c.b16 %v5082, %v5075
        %v5328 = vpack.c.b16 %v5083, %v5076
        %v5329 = vpack.c.b16 %v5084, %v5077
        %v5330 = vpack.c.b16 %v5085, %v5078
        %v5331 = vpack.c.b16 %v5086, %v5079
        %v5332 = vpack.c.b16 %v5094, %v5087
        %v5333 = vpack.c.b16 %v5095, %v5088
        %v5334 = vpack.c.b16 %v5096, %v5089
        %v5335 = vpack.c.b16 %v5097, %v5090
        %v5336 = vpack.c.b16 %v5098, %v5091
        %v5337 = vpack.c.b16 %v5099, %v5092
        %v5338 = vpack.c.b16 %v5100, %v5093
        %v5339 = vpack.c.b16 %v5108, %v5101
        %v5340 = vpack.c.b16 %v5109, %v5102
        %v5341 = vpack.c.b16 %v5110, %v5103
        %v5342 = vpack.c.b16 %v5111, %v5104
        %v5343 = vpack.c.b16 %v5112, %v5105
        %v5344 = vpack.c.b16 %v5113, %v5106
        %v5345 = vpack.c.b16 %v5114, %v5107
        %v5346 = vpack.c.b16 %v5122, %v5115
        %v5347 = vpack.c.b16 %v5123, %v5116
        %v5348 = vpack.c.b16 %v5124, %v5117
        %v5349 = vpack.c.b16 %v5125, %v5118
        %v5350 = vpack.c.b16 %v5126, %v5119
        %v5351 = vpack.c.b16 %v5127, %v5120
        %v5352 = vpack.c.b16 %v5128, %v5121
        %5577 = vmatprep.subr.bf16.mxu0 %v5130
        %5578 = vmatpush1.bf16.msra.mxu0 %v5129
        %5579 = vmatprep.subr.bf16.mxu0 %v5137
        %5580 = vmatpush1.bf16.msra.mxu0 %v5136
        %5581 = vmatprep.subr.bf16.mxu0 %v5144
        %5582 = vmatpush1.bf16.msra.mxu0 %v5143
        %5583 = vmatprep.subr.bf16.mxu0 %v5151
        %5584 = vmatpush1.bf16.msra.mxu0 %v5150
        %5585 = vmatprep.subr.bf16.mxu0 %v5158
        %5586 = vmatpush1.bf16.msra.mxu0 %v5157
        %5587 = vmatprep.subr.bf16.mxu0 %v5165
        %5588 = vmatpush1.bf16.msra.mxu0 %v5164
        %5589 = vmatprep.subr.bf16.mxu0 %v5172
        %5590 = vmatpush1.bf16.msra.mxu0 %v5171
        %5591 = vmatprep.subr.bf16.mxu0 %v5179
        %5592 = vmatpush1.bf16.msra.mxu0 %v5178
        %5593 = vmatprep.subr.bf16.mxu0 %v5186
        %5594 = vmatpush1.bf16.msra.mxu0 %v5185
        %5595 = vmatprep.subr.bf16.mxu0 %v5193
        %5596 = vmatpush1.bf16.msra.mxu0 %v5192
        %5597 = vmatprep.subr.bf16.mxu0 %v5200
        %5598 = vmatpush1.bf16.msra.mxu0 %v5199
        %5599 = vmatprep.subr.bf16.mxu0 %v5207
        %5600 = vmatpush1.bf16.msra.mxu0 %v5206
        %5601 = vmatprep.subr.bf16.mxu0 %v5214
        %5602 = vmatpush1.bf16.msra.mxu0 %v5213
        %5603 = vmatprep.subr.bf16.mxu0 %v5221
        %5604 = vmatpush1.bf16.msra.mxu0 %v5220
        %5605 = vmatprep.subr.bf16.mxu0 %v5228
        %5606 = vmatpush1.bf16.msra.mxu0 %v5227
        %5607 = vmatprep.subr.bf16.mxu0 %v5235
        %5608 = vmatpush1.bf16.msra.mxu0 %v5234
        %5609 = vmatprep.mubr.bf16.mxu0 %v4129
        %5610 = vmatmul.mubr.bf16.gmra.mrb[0].mxu0 %v4128
        %v5611 = vpop.f32.mrb[0].mxu0
        %v5612 = vadd.f32 %v4393, %v5611
        %v5613 = vpop.f32.mrb[0].mxu0
        %v5614 = vadd.f32 %v4397, %v5613
        %v5615 = vpop.f32.mrb[0].mxu0
        %v5616 = vadd.f32 %v4393, %v5615
        %v5617 = vpop.f32.mrb[0].mxu0
        %v5618 = vadd.f32 %v4397, %v5617
        %5619 = vdwg.mxu0
        %5620 = vmatprep.subr.bf16.mxu0 %v5242
        %5621 = vmatpush1.bf16.msra.mxu0 %v5241
        %5622 = vmatprep.subr.bf16.mxu0 %v5249
        %5623 = vmatpush1.bf16.msra.mxu0 %v5248
        %5624 = vmatprep.subr.bf16.mxu0 %v5256
        %5625 = vmatpush1.bf16.msra.mxu0 %v5255
        %5626 = vmatprep.subr.bf16.mxu0 %v5263
        %5627 = vmatpush1.bf16.msra.mxu0 %v5262
        %5628 = vmatprep.subr.bf16.mxu0 %v5270
        %5629 = vmatpush1.bf16.msra.mxu0 %v5269
        %5630 = vmatprep.subr.bf16.mxu0 %v5277
        %5631 = vmatpush1.bf16.msra.mxu0 %v5276
        %5632 = vmatprep.subr.bf16.mxu0 %v5284
        %5633 = vmatpush1.bf16.msra.mxu0 %v5283
        %5634 = vmatprep.subr.bf16.mxu0 %v5291
        %5635 = vmatpush1.bf16.msra.mxu0 %v5290
        %5636 = vmatprep.subr.bf16.mxu0 %v5298
        %5637 = vmatpush1.bf16.msra.mxu0 %v5297
        %5638 = vmatprep.subr.bf16.mxu0 %v5305
        %5639 = vmatpush1.bf16.msra.mxu0 %v5304
        %5640 = vmatprep.subr.bf16.mxu0 %v5312
        %5641 = vmatpush1.bf16.msra.mxu0 %v5311
        %5642 = vmatprep.subr.bf16.mxu0 %v5319
        %5643 = vmatpush1.bf16.msra.mxu0 %v5318
        %5644 = vmatprep.subr.bf16.mxu0 %v5326
        %5645 = vmatpush1.bf16.msra.mxu0 %v5325
        %5646 = vmatprep.subr.bf16.mxu0 %v5333
        %5647 = vmatpush1.bf16.msra.mxu0 %v5332
        %5648 = vmatprep.subr.bf16.mxu0 %v5340
        %5649 = vmatpush1.bf16.msra.mxu0 %v5339
        %5650 = vmatprep.subr.bf16.mxu0 %v5347
        %5651 = vmatpush1.bf16.msra.mxu0 %v5346
        %5652 = vmatprep.mubr.bf16.mxu0 %v4131
        %5653 = vmatmul.mubr.bf16.gmra.mrb[0].mxu0 %v4130
        %v5654 = vpop.f32.mrb[0].mxu0
        %v5655 = vadd.f32 %v5612, %v5654
        %v5656 = vpop.f32.mrb[0].mxu0
        %v5657 = vadd.f32 %v5614, %v5656
        %v5658 = vpop.f32.mrb[0].mxu0
        %v5659 = vadd.f32 %v5616, %v5658
        %v5660 = vpop.f32.mrb[0].mxu0
        %v5661 = vadd.f32 %v5618, %v5660
        %5662 = vdwg.mxu0
        %5663 = vmatprep.subr.bf16.mxu0 %v5132
        %5664 = vmatpush1.bf16.msra.mxu0 %v5131
        %5665 = vmatprep.subr.bf16.mxu0 %v5139
        %5666 = vmatpush1.bf16.msra.mxu0 %v5138
        %5667 = vmatprep.subr.bf16.mxu0 %v5146
        %5668 = vmatpush1.bf16.msra.mxu0 %v5145
        %5669 = vmatprep.subr.bf16.mxu0 %v5153
        %5670 = vmatpush1.bf16.msra.mxu0 %v5152
        %5671 = vmatprep.subr.bf16.mxu0 %v5160
        %5672 = vmatpush1.bf16.msra.mxu0 %v5159
        %5673 = vmatprep.subr.bf16.mxu0 %v5167
        %5674 = vmatpush1.bf16.msra.mxu0 %v5166
        %5675 = vmatprep.subr.bf16.mxu0 %v5174
        %5676 = vmatpush1.bf16.msra.mxu0 %v5173
        %5677 = vmatprep.subr.bf16.mxu0 %v5181
        %5678 = vmatpush1.bf16.msra.mxu0 %v5180
        %5679 = vmatprep.subr.bf16.mxu0 %v5188
        %5680 = vmatpush1.bf16.msra.mxu0 %v5187
        %5681 = vmatprep.subr.bf16.mxu0 %v5195
        %5682 = vmatpush1.bf16.msra.mxu0 %v5194
        %5683 = vmatprep.subr.bf16.mxu0 %v5202
        %5684 = vmatpush1.bf16.msra.mxu0 %v5201
        %5685 = vmatprep.subr.bf16.mxu0 %v5209
        %5686 = vmatpush1.bf16.msra.mxu0 %v5208
        %5687 = vmatprep.subr.bf16.mxu0 %v5216
        %5688 = vmatpush1.bf16.msra.mxu0 %v5215
        %5689 = vmatprep.subr.bf16.mxu0 %v5223
        %5690 = vmatpush1.bf16.msra.mxu0 %v5222
        %5691 = vmatprep.subr.bf16.mxu0 %v5230
        %5692 = vmatpush1.bf16.msra.mxu0 %v5229
        %5693 = vmatprep.subr.bf16.mxu0 %v5237
        %5694 = vmatpush1.bf16.msra.mxu0 %v5236
        %5695 = vmatprep.mubr.bf16.mxu0 %v4129
        %5696 = vmatmul.mubr.bf16.gmra.mrb[0].mxu0 %v4128
        %v5697 = vpop.f32.mrb[0].mxu0
        %v5698 = vadd.f32 %v4401, %v5697
        %v5699 = vpop.f32.mrb[0].mxu0
        %v5700 = vadd.f32 %v4405, %v5699
        %v5701 = vpop.f32.mrb[0].mxu0
        %v5702 = vadd.f32 %v4401, %v5701
        %v5703 = vpop.f32.mrb[0].mxu0
        %v5704 = vadd.f32 %v4405, %v5703
        %5705 = vdwg.mxu0
        %5706 = vmatprep.subr.bf16.mxu0 %v5244
        %5707 = vmatpush1.bf16.msra.mxu0 %v5243
        %5708 = vmatprep.subr.bf16.mxu0 %v5251
        %5709 = vmatpush1.bf16.msra.mxu0 %v5250
        %5710 = vmatprep.subr.bf16.mxu0 %v5258
        %5711 = vmatpush1.bf16.msra.mxu0 %v5257
        %5712 = vmatprep.subr.bf16.mxu0 %v5265
        %5713 = vmatpush1.bf16.msra.mxu0 %v5264
        %5714 = vmatprep.subr.bf16.mxu0 %v5272
        %5715 = vmatpush1.bf16.msra.mxu0 %v5271
        %5716 = vmatprep.subr.bf16.mxu0 %v5279
        %5717 = vmatpush1.bf16.msra.mxu0 %v5278
        %5718 = vmatprep.subr.bf16.mxu0 %v5286
        %5719 = vmatpush1.bf16.msra.mxu0 %v5285
        %5720 = vmatprep.subr.bf16.mxu0 %v5293
        %5721 = vmatpush1.bf16.msra.mxu0 %v5292
        %5722 = vmatprep.subr.bf16.mxu0 %v5300
        %5723 = vmatpush1.bf16.msra.mxu0 %v5299
        %5724 = vmatprep.subr.bf16.mxu0 %v5307
        %5725 = vmatpush1.bf16.msra.mxu0 %v5306
        %5726 = vmatprep.subr.bf16.mxu0 %v5314
        %5727 = vmatpush1.bf16.msra.mxu0 %v5313
        %5728 = vmatprep.subr.bf16.mxu0 %v5321
        %5729 = vmatpush1.bf16.msra.mxu0 %v5320
        %5730 = vmatprep.subr.bf16.mxu0 %v5328
        %5731 = vmatpush1.bf16.msra.mxu0 %v5327
        %5732 = vmatprep.subr.bf16.mxu0 %v5335
        %5733 = vmatpush1.bf16.msra.mxu0 %v5334
        %5734 = vmatprep.subr.bf16.mxu0 %v5342
        %5735 = vmatpush1.bf16.msra.mxu0 %v5341
        %5736 = vmatprep.subr.bf16.mxu0 %v5349
        %5737 = vmatpush1.bf16.msra.mxu0 %v5348
        %5738 = vmatprep.mubr.bf16.mxu0 %v4131
        %5739 = vmatmul.mubr.bf16.gmra.mrb[0].mxu0 %v4130
        %v5740 = vpop.f32.mrb[0].mxu0
        %v5741 = vadd.f32 %v5698, %v5740
        %v5742 = vpop.f32.mrb[0].mxu0
        %v5743 = vadd.f32 %v5700, %v5742
        %v5744 = vpop.f32.mrb[0].mxu0
        %v5745 = vadd.f32 %v5702, %v5744
        %v5746 = vpop.f32.mrb[0].mxu0
        %v5747 = vadd.f32 %v5704, %v5746
        %5748 = vdwg.mxu0
        %5749 = vmatprep.subr.bf16.mxu0 %v5134
        %5750 = vmatpush1.bf16.msra.mxu0 %v5133
        %5751 = vmatprep.subr.bf16.mxu0 %v5141
        %5752 = vmatpush1.bf16.msra.mxu0 %v5140
        %5753 = vmatprep.subr.bf16.mxu0 %v5148
        %5754 = vmatpush1.bf16.msra.mxu0 %v5147
        %5755 = vmatprep.subr.bf16.mxu0 %v5155
        %5756 = vmatpush1.bf16.msra.mxu0 %v5154
        %5757 = vmatprep.subr.bf16.mxu0 %v5162
        %5758 = vmatpush1.bf16.msra.mxu0 %v5161
        %5759 = vmatprep.subr.bf16.mxu0 %v5169
        %5760 = vmatpush1.bf16.msra.mxu0 %v5168
        %5761 = vmatprep.subr.bf16.mxu0 %v5176
        %5762 = vmatpush1.bf16.msra.mxu0 %v5175
        %5763 = vmatprep.subr.bf16.mxu0 %v5183
        %5764 = vmatpush1.bf16.msra.mxu0 %v5182
        %5765 = vmatprep.subr.bf16.mxu0 %v5190
        %5766 = vmatpush1.bf16.msra.mxu0 %v5189
        %5767 = vmatprep.subr.bf16.mxu0 %v5197
        %5768 = vmatpush1.bf16.msra.mxu0 %v5196
        %5769 = vmatprep.subr.bf16.mxu0 %v5204
        %5770 = vmatpush1.bf16.msra.mxu0 %v5203
        %5771 = vmatprep.subr.bf16.mxu0 %v5211
        %5772 = vmatpush1.bf16.msra.mxu0 %v5210
        %5773 = vmatprep.subr.bf16.mxu0 %v5218
        %5774 = vmatpush1.bf16.msra.mxu0 %v5217
        %5775 = vmatprep.subr.bf16.mxu0 %v5225
        %5776 = vmatpush1.bf16.msra.mxu0 %v5224
        %5777 = vmatprep.subr.bf16.mxu0 %v5232
        %5778 = vmatpush1.bf16.msra.mxu0 %v5231
        %5779 = vmatprep.subr.bf16.mxu0 %v5239
        %5780 = vmatpush1.bf16.msra.mxu0 %v5238
        %5781 = vmatprep.mubr.bf16.mxu0 %v4129
        %5782 = vmatmul.mubr.bf16.gmra.mrb[0].mxu0 %v4128
        %v5783 = vpop.f32.mrb[0].mxu0
        %v5784 = vadd.f32 %v4409, %v5783
        %v5785 = vpop.f32.mrb[0].mxu0
        %v5786 = vadd.f32 %v4413, %v5785
        %v5787 = vpop.f32.mrb[0].mxu0
        %v5788 = vadd.f32 %v4409, %v5787
        %v5789 = vpop.f32.mrb[0].mxu0
        %v5790 = vadd.f32 %v4413, %v5789
        %5791 = vdwg.mxu0
        %5792 = vmatprep.subr.bf16.mxu0 %v5246
        %5793 = vmatpush1.bf16.msra.mxu0 %v5245
        %5794 = vmatprep.subr.bf16.mxu0 %v5253
        %5795 = vmatpush1.bf16.msra.mxu0 %v5252
        %5796 = vmatprep.subr.bf16.mxu0 %v5260
        %5797 = vmatpush1.bf16.msra.mxu0 %v5259
        %5798 = vmatprep.subr.bf16.mxu0 %v5267
        %5799 = vmatpush1.bf16.msra.mxu0 %v5266
        %5800 = vmatprep.subr.bf16.mxu0 %v5274
        %5801 = vmatpush1.bf16.msra.mxu0 %v5273
        %5802 = vmatprep.subr.bf16.mxu0 %v5281
        %5803 = vmatpush1.bf16.msra.mxu0 %v5280
        %5804 = vmatprep.subr.bf16.mxu0 %v5288
        %5805 = vmatpush1.bf16.msra.mxu0 %v5287
        %5806 = vmatprep.subr.bf16.mxu0 %v5295
        %5807 = vmatpush1.bf16.msra.mxu0 %v5294
        %5808 = vmatprep.subr.bf16.mxu0 %v5302
        %5809 = vmatpush1.bf16.msra.mxu0 %v5301
        %5810 = vmatprep.subr.bf16.mxu0 %v5309
        %5811 = vmatpush1.bf16.msra.mxu0 %v5308
        %5812 = vmatprep.subr.bf16.mxu0 %v5316
        %5813 = vmatpush1.bf16.msra.mxu0 %v5315
        %5814 = vmatprep.subr.bf16.mxu0 %v5323
        %5815 = vmatpush1.bf16.msra.mxu0 %v5322
        %5816 = vmatprep.subr.bf16.mxu0 %v5330
        %5817 = vmatpush1.bf16.msra.mxu0 %v5329
        %5818 = vmatprep.subr.bf16.mxu0 %v5337
        %5819 = vmatpush1.bf16.msra.mxu0 %v5336
        %5820 = vmatprep.subr.bf16.mxu0 %v5344
        %5821 = vmatpush1.bf16.msra.mxu0 %v5343
        %5822 = vmatprep.subr.bf16.mxu0 %v5351
        %5823 = vmatpush1.bf16.msra.mxu0 %v5350
        %5824 = vmatprep.mubr.bf16.mxu0 %v4131
        %5825 = vmatmul.mubr.bf16.gmra.mrb[0].mxu0 %v4130
        %v5826 = vpop.f32.mrb[0].mxu0
        %v5827 = vadd.f32 %v5784, %v5826
        %v5828 = vpop.f32.mrb[0].mxu0
        %v5829 = vadd.f32 %v5786, %v5828
        %v5830 = vpop.f32.mrb[0].mxu0
        %v5831 = vadd.f32 %v5788, %v5830
        %v5832 = vpop.f32.mrb[0].mxu0
        %v5833 = vadd.f32 %v5790, %v5832
        %5834 = vdwg.mxu0
        %5835 = vmatprep.subr.bf16.mxu0 0
        %5836 = vmatpush1.bf16.msra.mxu0 %v5135
        %5837 = vmatprep.subr.bf16.mxu0 0
        %5838 = vmatpush1.bf16.msra.mxu0 %v5142
        %5839 = vmatprep.subr.bf16.mxu0 0
        %5840 = vmatpush1.bf16.msra.mxu0 %v5149
        %5841 = vmatprep.subr.bf16.mxu0 0
        %5842 = vmatpush1.bf16.msra.mxu0 %v5156
        %5843 = vmatprep.subr.bf16.mxu0 0
        %5844 = vmatpush1.bf16.msra.mxu0 %v5163
        %5845 = vmatprep.subr.bf16.mxu0 0
        %5846 = vmatpush1.bf16.msra.mxu0 %v5170
        %5847 = vmatprep.subr.bf16.mxu0 0
        %5848 = vmatpush1.bf16.msra.mxu0 %v5177
        %5849 = vmatprep.subr.bf16.mxu0 0
        %5850 = vmatpush1.bf16.msra.mxu0 %v5184
        %5851 = vmatprep.subr.bf16.mxu0 0
        %5852 = vmatpush1.bf16.msra.mxu0 %v5191
        %5853 = vmatprep.subr.bf16.mxu0 0
        %5854 = vmatpush1.bf16.msra.mxu0 %v5198
        %5855 = vmatprep.subr.bf16.mxu0 0
        %5856 = vmatpush1.bf16.msra.mxu0 %v5205
        %5857 = vmatprep.subr.bf16.mxu0 0
        %5858 = vmatpush1.bf16.msra.mxu0 %v5212
        %5859 = vmatprep.subr.bf16.mxu0 0
        %5860 = vmatpush1.bf16.msra.mxu0 %v5219
        %5861 = vmatprep.subr.bf16.mxu0 0
        %5862 = vmatpush1.bf16.msra.mxu0 %v5226
        %5863 = vmatprep.subr.bf16.mxu0 0
        %5864 = vmatpush1.bf16.msra.mxu0 %v5233
        %5865 = vmatprep.subr.bf16.mxu0 0
        %5866 = vmatpush1.bf16.msra.mxu0 %v5240
        %5867 = vmatprep.mubr.bf16.mxu0 %v4129
        %5868 = vmatmul.mubr.bf16.gmra.mrb[0].mxu0 %v4128
        %v5869 = vpop.f32.mrb[0].mxu0
        %v5870 = vadd.f32 %v4417, %v5869
        %v5871 = vpop.f32.mrb[0].mxu0
        %v5872 = vpop.f32.mrb[0].mxu0
        %v5873 = vadd.f32 %v4417, %v5872
        %v5874 = vpop.f32.mrb[0].mxu0
        %5875 = vdwg.mxu0
        %5876 = vmatprep.subr.bf16.mxu0 0
        %5877 = vmatpush1.bf16.msra.mxu0 %v5247
        %5878 = vmatprep.subr.bf16.mxu0 0
        %5879 = vmatpush1.bf16.msra.mxu0 %v5254
        %5880 = vmatprep.subr.bf16.mxu0 0
        %5881 = vmatpush1.bf16.msra.mxu0 %v5261
        %5882 = vmatprep.subr.bf16.mxu0 0
        %5883 = vmatpush1.bf16.msra.mxu0 %v5268
        %5884 = vmatprep.subr.bf16.mxu0 0
        %5885 = vmatpush1.bf16.msra.mxu0 %v5275
        %5886 = vmatprep.subr.bf16.mxu0 0
        %5887 = vmatpush1.bf16.msra.mxu0 %v5282
        %5888 = vmatprep.subr.bf16.mxu0 0
        %5889 = vmatpush1.bf16.msra.mxu0 %v5289
        %5890 = vmatprep.subr.bf16.mxu0 0
        %5891 = vmatpush1.bf16.msra.mxu0 %v5296
        %5892 = vmatprep.subr.bf16.mxu0 0
        %5893 = vmatpush1.bf16.msra.mxu0 %v5303
        %5894 = vmatprep.subr.bf16.mxu0 0
        %5895 = vmatpush1.bf16.msra.mxu0 %v5310
        %5896 = vmatprep.subr.bf16.mxu0 0
        %5897 = vmatpush1.bf16.msra.mxu0 %v5317
        %5898 = vmatprep.subr.bf16.mxu0 0
        %5899 = vmatpush1.bf16.msra.mxu0 %v5324
        %5900 = vmatprep.subr.bf16.mxu0 0
        %5901 = vmatpush1.bf16.msra.mxu0 %v5331
        %5902 = vmatprep.subr.bf16.mxu0 0
        %5903 = vmatpush1.bf16.msra.mxu0 %v5338
        %5904 = vmatprep.subr.bf16.mxu0 0
        %5905 = vmatpush1.bf16.msra.mxu0 %v5345
        %5906 = vmatprep.subr.bf16.mxu0 0
        %5907 = vmatpush1.bf16.msra.mxu0 %v5352
        %5908 = vmatprep.mubr.bf16.mxu0 %v4131
        %5909 = vmatmul.mubr.bf16.gmra.mrb[0].mxu0 %v4130
        %v5910 = vpop.f32.mrb[0].mxu0
        %v5911 = vadd.f32 %v5870, %v5910
        %v5912 = vpop.f32.mrb[0].mxu0
        %v5913 = vpop.f32.mrb[0].mxu0
        %v5914 = vadd.f32 %v5873, %v5913
        %v5915 = vpop.f32.mrb[0].mxu0
        %5916 = vdwg.mxu0
        %v5917 = vxor.u32 %v5655, 2147483648
        %v5918 = vxor.u32 %v5657, 2147483648
        %v5919 = vxor.u32 %v5741, 2147483648
        %v5920 = vxor.u32 %v5743, 2147483648
        %v5921 = vxor.u32 %v5827, 2147483648
        %v5922 = vxor.u32 %v5829, 2147483648
        %v5923 = vxor.u32 %v5911, 2147483648
        %v5924 = vxor.u32 %v5659, 2147483648
        %v5925 = vxor.u32 %v5661, 2147483648
        %v5926 = vxor.u32 %v5745, 2147483648
        %v5927 = vxor.u32 %v5747, 2147483648
        %v5928 = vxor.u32 %v5831, 2147483648
        %v5929 = vxor.u32 %v5833, 2147483648
        %v5930 = vxor.u32 %v5914, 2147483648
        %v5931 = vmul.f32 %v5917, 1.442695
        %v5932 = vpow.pop %v5931
        %v5933 = vmul.f32 %v5918, 1.442695
        %v5934 = vpow.pop %v5933
        %v5935 = vmul.f32 %v5919, 1.442695
        %v5936 = vpow.pop %v5935
        %v5937 = vmul.f32 %v5920, 1.442695
        %v5938 = vpow.pop %v5937
        %v5939 = vmul.f32 %v5921, 1.442695
        %v5940 = vpow.pop %v5939
        %v5941 = vmul.f32 %v5922, 1.442695
        %v5942 = vpow.pop %v5941
        %v5943 = vmul.f32 %v5923, 1.442695
        %v5944 = vpow.pop %v5943
        %v5945 = vmul.f32 %v5924, 1.442695
        %v5946 = vpow.pop %v5945
        %v5947 = vmul.f32 %v5925, 1.442695
        %v5948 = vpow.pop %v5947
        %v5949 = vmul.f32 %v5926, 1.442695
        %v5950 = vpow.pop %v5949
        %v5951 = vmul.f32 %v5927, 1.442695
        %v5952 = vpow.pop %v5951
        %v5953 = vmul.f32 %v5928, 1.442695
        %v5954 = vpow.pop %v5953
        %v5955 = vmul.f32 %v5929, 1.442695
        %v5956 = vpow.pop %v5955
        %v5957 = vmul.f32 %v5930, 1.442695
        %v5958 = vpow.pop %v5957
        %v5959 = vadd.f32 %v5932, 1.0
        %v5960 = vadd.f32 %v5934, 1.0
        %v5961 = vadd.f32 %v5936, 1.0
        %v5962 = vadd.f32 %v5938, 1.0
        %v5963 = vadd.f32 %v5940, 1.0
        %v5964 = vadd.f32 %v5942, 1.0
        %v5965 = vadd.f32 %v5944, 1.0
        %v5966 = vadd.f32 %v5946, 1.0
        %v5967 = vadd.f32 %v5948, 1.0
        %v5968 = vadd.f32 %v5950, 1.0
        %v5969 = vadd.f32 %v5952, 1.0
        %v5970 = vadd.f32 %v5954, 1.0
        %v5971 = vadd.f32 %v5956, 1.0
        %v5972 = vadd.f32 %v5958, 1.0
        %v5973 = vrcp.pop %v5959
        %v5974 = vmul.f32 1.0, %v5973
        %v5975 = vrcp.pop %v5960
        %v5976 = vmul.f32 1.0, %v5975
        %v5977 = vrcp.pop %v5961
        %v5978 = vmul.f32 1.0, %v5977
        %v5979 = vrcp.pop %v5962
        %v5980 = vmul.f32 1.0, %v5979
        %v5981 = vrcp.pop %v5963
        %v5982 = vmul.f32 1.0, %v5981
        %v5983 = vrcp.pop %v5964
        %v5984 = vmul.f32 1.0, %v5983
        %v5985 = vrcp.pop %v5965
        %v5986 = vmul.f32 1.0, %v5985
        %v5987 = vrcp.pop %v5966
        %v5988 = vmul.f32 1.0, %v5987
        %v5989 = vrcp.pop %v5967
        %v5990 = vmul.f32 1.0, %v5989
        %v5991 = vrcp.pop %v5968
        %v5992 = vmul.f32 1.0, %v5991
        %v5993 = vrcp.pop %v5969
        %v5994 = vmul.f32 1.0, %v5993
        %v5995 = vrcp.pop %v5970
        %v5996 = vmul.f32 1.0, %v5995
        %v5997 = vrcp.pop %v5971
        %v5998 = vmul.f32 1.0, %v5997
        %v5999 = vrcp.pop %v5972
        %v6000 = vmul.f32 1.0, %v5999
        %v6001 = vpack.c.bf16 %v5988, %v5974
        %v6002 = vpack.c.bf16 %v5990, %v5976
        %v6003 = vpack.c.bf16 %v5992, %v5978
        %v6004 = vpack.c.bf16 %v5994, %v5980
        %v6005 = vpack.c.bf16 %v5996, %v5982
        %v6006 = vpack.c.bf16 %v5998, %v5984
        %v6007 = vpack.c.bf16 %v6000, %v5986
        %v6015 = vunpack.c.l.b16 %v6001
        %v6016 = vunpack.c.l.b16 %v6002
        %v6017 = vunpack.c.l.b16 %v6003
        %v6018 = vunpack.c.l.b16 %v6004
        %v6019 = vunpack.c.l.b16 %v6005
        %v6020 = vunpack.c.l.b16 %v6006
        %v6021 = vunpack.c.l.b16 %v6007
        %v6022 = vunpack.c.h.b16 %v6001
        %v6023 = vunpack.c.h.b16 %v6002
        %v6024 = vunpack.c.h.b16 %v6003
        %v6025 = vunpack.c.h.b16 %v6004
        %v6026 = vunpack.c.h.b16 %v6005
        %v6027 = vunpack.c.h.b16 %v6006
        %v6028 = vunpack.c.h.b16 %v6007
        %v6029 = vpack.c.b16 %v6016, %v6015
        %v6030 = vpack.c.b16 %v6018, %v6017
        %v6031 = vpack.c.b16 %v6020, %v6019
        %v6032 = vpack.c.b16 %v6021, %v6021
        %v6033 = vpack.c.b16 %v6023, %v6022
        %v6034 = vpack.c.b16 %v6025, %v6024
        %v6035 = vpack.c.b16 %v6027, %v6026
        %v6036 = vpack.c.b16 %v6028, %v6028
        %6045 = vst [vmem:[%s747] sm:$0xff] %v6029
        %6046 = vst [vmem:[%s747 + $0x8] sm:$0xff] %v6030
        %6047 = vst [vmem:[%s747 + $0x10] sm:$0xff] %v6031
        %6048 = vst [vmem:[%s747 + $0x18] sm:$0xf] %v6032
        %6049 = vst [vmem:[%s747 + $0x1c] sm:$0xff] %v6033
        %6050 = vst [vmem:[%s747 + $0x24] sm:$0xff] %v6034
        %6051 = vst [vmem:[%s747 + $0x2c] sm:$0xff] %v6035
        %6052 = vst [vmem:[%s747 + $0x34] sm:$0xf] %v6036
        %s6053 = smul.u32 2, %s36
        %p6054 = scmp.lt.s32.totalorder %s6053, 3
        %s6055 = scalar_select %p6054, %s6053, 3
        %s6056 = smul.addr %s6055, 7
        %s6057 = smul.addr %s6056, 4
        %s6058 = scalar_lea.vmem %s19, %s6057
        // Predicated region
        $region137: #{autoencoder_forward.1} parent=95 // pred_check
          %p6059 = pneg %p458
        $region138: #{autoencoder_forward.1} parent=95 // pred_check_branch
          %6061 = sbr.rel (%p6059) target = $region140
        $region139: #{autoencoder_forward.1} parent=95 // pred_region
          %s6062 = smul.u32 2, %s36
        $region140: #{autoencoder_forward.1} parent=95 // pred_fallthru
          _
      $region96: #{autoencoder_forward.1} parent=5 // pred_fallthru
        _
      %p6063 = scmp.le.s32.totalorder 2, %s31
      // Predicated region
      $region141: #{autoencoder_forward.1} parent=5 // pred_check
        %p6064 = pneg %p6063
      $region142: #{autoencoder_forward.1} parent=5 // pred_check_branch
        %6066 = sbr.rel (%p6064) target = $region144
      $region143: #{autoencoder_forward.1} parent=5 // pred_region
        %s6067 = ssub.s32 %s31, 2
        // Predicated region
        $region145: #{autoencoder_forward.1} parent=143 // pred_check
          %p6068 = pneg %p464
        $region146: #{autoencoder_forward.1} parent=143 // pred_check_branch
          %6070 = sbr.rel (%p6068) target = $region148
        $region147: #{autoencoder_forward.1} parent=143 // pred_region
          %s6071 = smul.u32 2, %s37
          %p6072 = scmp.lt.s32.totalorder %s6071, 3
          %s6073 = scalar_select %p6072, %s6071, 3
          %s6074 = smul.addr %s6073, 7
          %s6075 = smul.addr %s6074, 4
          %s6076 = scalar_lea.vmem %s19, %s6075
        $region148: #{autoencoder_forward.1} parent=143 // pred_fallthru
          _
      $region144: #{autoencoder_forward.1} parent=5 // pred_fallthru
        _
    $region6: #{autoencoder_forward.1} parent=1 // loop_footer
      %s35 = sadd.s32 1, %s31
    $region7: #{autoencoder_forward.1} parent=1 // loop_footer_branch
      %30 = sbr.rel target = $region3
    $region8: #{autoencoder_forward.1} parent=1 // loop_exit
      _
    %6077 = vsyncpa [#allocation3], 1
    %s6078 = scalar_lea.sflag [#allocation3], 1
    %6079 = vsyncpa %s6078, 1
    %6080 = vsyncpa [#allocation5], 1
    %6081 = vsyncpa [#allocation8], 1
    %6082 = vsyncpa [#allocation11], 1
    %6083 = vsyncpa [#allocation14], 1
    %6084 = vsyncpa [#allocation17], 1

</llo_original>
